<compile_context>
chip_gen: v5e
topology: v5e:2x2
jax: 0.10.0
libtpu: 0.0.40
codegen_flags: <defaults>
</compile_context>

<pallas_src>
import functools

import jax
import jax.numpy as jnp
from jax.experimental import pallas as pl
from jax.experimental.pallas import tpu as pltpu

_BN_EPS = 1e-5
_VMEM_LIMIT = 32 * 1024 * 1024


def _row_tile(m):
    """Largest row tile (<=1024) that divides m, to avoid pad/slice round trips."""
    for t in (1024, 512, 256, 128, 64, 32, 16, 8):
        if m % t == 0:
            return t
    return m


# ---------------------------------------------------------------------------
# Kernel A: one-pass per-channel sum / sum-of-squares (BatchNorm batch stats)
# ---------------------------------------------------------------------------
def _channel_stats_kernel(x_ref, sum_ref, sq_ref):
    @pl.when(pl.program_id(0) == 0)
    def _():
        sum_ref[...] = jnp.zeros_like(sum_ref)
        sq_ref[...] = jnp.zeros_like(sq_ref)

    x = x_ref[...].astype(jnp.float32)                       # bf16 in, f32 accumulate
    sum_ref[...] += jnp.sum(x, axis=0, keepdims=True)
    sq_ref[...] += jnp.sum(x * x, axis=0, keepdims=True)


def pallas_channel_stats(x2d):
    m, c = x2d.shape
    tm = _row_tile(m)
    s, sq = pl.pallas_call(
        _channel_stats_kernel,
        out_shape=(jax.ShapeDtypeStruct((1, c), jnp.float32),
                   jax.ShapeDtypeStruct((1, c), jnp.float32)),
        grid=(m // tm,),
        in_specs=[pl.BlockSpec((tm, c), lambda i: (i, 0))],
        out_specs=(pl.BlockSpec((1, c), lambda i: (0, 0)),
                   pl.BlockSpec((1, c), lambda i: (0, 0))),
        compiler_params=pltpu.CompilerParams(
            dimension_semantics=("arbitrary",), vmem_limit_bytes=_VMEM_LIMIT),
    )(x2d)
    return s[0], sq[0]


# ---------------------------------------------------------------------------
# Kernel B: fused  relu(x*scale+shift) @ W1  (norm1+relu1+conv1_1x1)
#           with norm2 batch-stats (sum / sumsq of f32 y) accumulated as epilogue;
#           intermediate y is written back to HBM in bf16.
# ---------------------------------------------------------------------------
def _bn_relu_conv1x1_stats_kernel(x_ref, s_ref, b_ref, w_ref,
                                  y_ref, ysum_ref, ysq_ref):
    @pl.when(pl.program_id(0) == 0)
    def _():
        ysum_ref[...] = jnp.zeros_like(ysum_ref)
        ysq_ref[...] = jnp.zeros_like(ysq_ref)

    z = jnp.maximum(x_ref[...].astype(jnp.float32) * s_ref[...] + b_ref[...], 0.0)
    y = jnp.dot(z.astype(jnp.bfloat16), w_ref[...],
                preferred_element_type=jnp.float32)          # bf16 MXU, f32 acc
    y_ref[...] = y.astype(y_ref.dtype)                       # bf16 HBM writeback
    ysum_ref[...] += jnp.sum(y, axis=0, keepdims=True)       # stats from exact f32 acc
    ysq_ref[...] += jnp.sum(y * y, axis=0, keepdims=True)


def pallas_bn_relu_conv1x1_stats(x2d, scale, shift, w):
    m, cin = x2d.shape
    cm = w.shape[1]
    tm = _row_tile(m)
    y, ys, ysq = pl.pallas_call(
        _bn_relu_conv1x1_stats_kernel,
        out_shape=(jax.ShapeDtypeStruct((m, cm), jnp.bfloat16),
                   jax.ShapeDtypeStruct((1, cm), jnp.float32),
                   jax.ShapeDtypeStruct((1, cm), jnp.float32)),
        grid=(m // tm,),
        in_specs=[pl.BlockSpec((tm, cin), lambda i: (i, 0)),
                  pl.BlockSpec((1, cin), lambda i: (0, 0)),
                  pl.BlockSpec((1, cin), lambda i: (0, 0)),
                  pl.BlockSpec((cin, cm), lambda i: (0, 0))],
        out_specs=(pl.BlockSpec((tm, cm), lambda i: (i, 0)),
                   pl.BlockSpec((1, cm), lambda i: (0, 0)),
                   pl.BlockSpec((1, cm), lambda i: (0, 0))),
        compiler_params=pltpu.CompilerParams(
            dimension_semantics=("arbitrary",), vmem_limit_bytes=_VMEM_LIMIT),
    )(x2d, scale.reshape(1, cin), shift.reshape(1, cin), w)
    return y, ys[0], ysq[0]


# ---------------------------------------------------------------------------
# Kernel C: fused  norm2 + relu2 + conv2 (3x3, stride 1, pad 1)
#           One image per grid step; z is written once into a zero-padded VMEM
#           scratch and the conv is 9 shifted matmuls accumulated in f32 (no im2col).
# ---------------------------------------------------------------------------
def _bn_relu_conv3x3_kernel(y_ref, s_ref, b_ref, w_ref, ml_ref, mr_ref,
                            o_ref, zpad_ref, *, W):
    HW, cm = y_ref.shape
    g = o_ref.shape[1]
    pad = W + 8                                    # zero halo rows above / below

    # norm2 + relu2 in f32, written once into the padded scratch.
    z = jnp.maximum(y_ref[...].astype(jnp.float32) * s_ref[...] + b_ref[...], 0.0)
    zpad_ref[0:pad, :] = jnp.zeros((pad, cm), jnp.float32)
    zpad_ref[pad + HW:pad + HW + pad, :] = jnp.zeros((pad, cm), jnp.float32)
    zpad_ref[pad:pad + HW, :] = z

    ml = ml_ref[...]       # (HW, 1) 0/1 mask: column > 0     (left neighbour valid)
    mr = mr_ref[...]       # (HW, 1) 0/1 mask: column < W-1   (right neighbour valid)

    acc = jnp.zeros((HW, g), jnp.float32)
    for dw, mask in ((-1, ml), (0, None), (1, mr)):
        part = jnp.zeros((HW, g), jnp.float32)
        for dh in (-1, 0, 1):
            k = (dh + 1) * 3 + (dw + 1)
            start = pad + dh * W + dw
            patch = zpad_ref[start:start + HW, :]            # shifted view of padded z
            part = part + jnp.dot(patch.astype(jnp.bfloat16), w_ref[k],
                                  preferred_element_type=jnp.float32)
        if mask is not None:
            part = part * mask       # zero contributions that wrapped across image rows
        acc = acc + part
    o_ref[...] = acc


def pallas_bn_relu_conv3x3(y3d, scale, shift, w9, W):
    b, hw, cm = y3d.shape
    g = w9.shape[-1]
    pad = W + 8
    padrows = hw + 2 * pad

    col = jnp.arange(hw, dtype=jnp.int32) % W
    ml = (col != 0).astype(jnp.float32).reshape(hw, 1)
    mr = (col != W - 1).astype(jnp.float32).reshape(hw, 1)

    kernel = functools.partial(_bn_relu_conv3x3_kernel, W=W)
    return pl.pallas_call(
        kernel,
        out_shape=jax.ShapeDtypeStruct((b, hw, g), jnp.float32),
        grid=(b,),
        in_specs=[pl.BlockSpec((None, hw, cm), lambda i: (i, 0, 0)),
                  pl.BlockSpec((1, cm), lambda i: (0, 0)),
                  pl.BlockSpec((1, cm), lambda i: (0, 0)),
                  pl.BlockSpec((9, cm, g), lambda i: (0, 0, 0)),
                  pl.BlockSpec((hw, 1), lambda i: (0, 0)),
                  pl.BlockSpec((hw, 1), lambda i: (0, 0))],
        out_specs=pl.BlockSpec((None, hw, g), lambda i: (i, 0, 0)),
        scratch_shapes=[pltpu.VMEM((padrows, cm), jnp.float32)],
        compiler_params=pltpu.CompilerParams(
            dimension_semantics=("parallel",), vmem_limit_bytes=_VMEM_LIMIT),
    )(y3d, scale.reshape(1, cm), shift.reshape(1, cm), w9, ml, mr)


# ---------------------------------------------------------------------------
# BatchNorm scale/shift from accumulated stats (training-mode batch statistics)
# ---------------------------------------------------------------------------
def _bn_scale_shift(csum, csq, count, gamma, beta):
    mean = csum / count
    var = jnp.maximum(csq / count - mean * mean, 0.0)     # biased variance
    inv = jax.lax.rsqrt(var + _BN_EPS)
    scale = gamma * inv
    shift = beta - mean * scale
    return scale, shift


# ---------------------------------------------------------------------------
# DenseLayer forward (accepts a single NCHW tensor or a list, like the module)
# ---------------------------------------------------------------------------
def dense_layer_forward(params, inputs, drop_rate=0.0, rng=None):
    if not isinstance(inputs, (list, tuple)):
        inputs = [inputs]
    # NCHW -> NHWC, cast once to bf16 (halves HBM traffic of both passes over x);
    # all BN / ReLU arithmetic inside the kernels is carried out in f32.
    feats = [jnp.transpose(t, (0, 2, 3, 1)).astype(jnp.bfloat16) for t in inputs]
    x = feats[0] if len(feats) == 1 else jnp.concatenate(feats, axis=-1)   # torch.cat(., 1)
    b, h, w, cin = x.shape
    m = b * h * w
    xf = x.reshape(m, cin)

    # norm1 batch stats: one-pass Pallas reduction.
    xs, xsq = pallas_channel_stats(xf)
    scale1, shift1 = _bn_scale_shift(xs, xsq, m, params['gamma1'], params['beta1'])

    # relu1 + conv1 (1x1) fused; norm2 batch stats fused as the kernel's epilogue.
    y, ys, ysq = pallas_bn_relu_conv1x1_stats(xf, scale1, shift1, params['conv1'])
    scale2, shift2 = _bn_scale_shift(ys, ysq, m, params['gamma2'], params['beta2'])

    # norm2 + relu2 + conv2 (3x3, pad 1) fused; halo kept in VMEM (no im2col).
    cm = params['conv1'].shape[1]
    g = params['conv2'].shape[-1]
    out = pallas_bn_relu_conv3x3(y.reshape(b, h * w, cm), scale2, shift2,
                                 params['conv2'], w)
    out = out.reshape(b, h, w, g)

    if drop_rate > 0.0:
        # TODO(synk): PyTorch F.dropout RNG stream cannot be reproduced; plain-JAX dropout.
        keep = 1.0 - drop_rate
        mask = jax.random.bernoulli(rng, keep, out.shape).astype(out.dtype)
        out = out * mask * (1.0 / keep)

    return jnp.transpose(out, (0, 3, 1, 2))   # NHWC -> NCHW


# ---------------------------------------------------------------------------
# Parameters (PyTorch layouts converted to matmul layouts, bf16 MXU operands)
# ---------------------------------------------------------------------------
def _kaiming_conv(key, cout, cin, kh, kw):
    std = (2.0 / (cin * kh * kw)) ** 0.5
    return jax.random.normal(key, (cout, cin, kh, kw), jnp.float32) * std


def make_dense_layer_params(key, input_features, growth_rate, bn_size):
    k1, k2 = jax.random.split(key)
    cm = bn_size * growth_rate
    w1 = _kaiming_conv(k1, cm, input_features, 1, 1)    # torch (Cm, Cin, 1, 1)
    w2 = _kaiming_conv(k2, growth_rate, cm, 3, 3)       # torch (G, Cm, 3, 3)
    return {
        'conv1': jnp.transpose(w1[:, :, 0, 0], (1, 0)).astype(jnp.bfloat16),   # (Cin, Cm)
        'conv2': jnp.transpose(w2, (2, 3, 1, 0))
                    .reshape(9, cm, growth_rate).astype(jnp.bfloat16),          # (kh*3+kw, Cm, G)
        'gamma1': jnp.ones((input_features,), jnp.float32),
        'beta1': jnp.zeros((input_features,), jnp.float32),
        'gamma2': jnp.ones((cm,), jnp.float32),
        'beta2': jnp.zeros((cm,), jnp.float32),
    }


# ---------------------------------------------------------------------------
# Plain-JAX f32 reference (same bf16 weights upcast) for a numeric sanity check
# ---------------------------------------------------------------------------
def _reference_dense_layer(params, inputs):
    feats = [jnp.transpose(t.astype(jnp.float32), (0, 2, 3, 1)) for t in inputs]
    x = jnp.concatenate(feats, axis=-1)

    def bn(v, gamma, beta):
        mean = jnp.mean(v, axis=(0, 1, 2))
        var = jnp.maximum(jnp.mean(v * v, axis=(0, 1, 2)) - mean * mean, 0.0)
        return (v - mean) / jnp.sqrt(var + _BN_EPS) * gamma + beta

    z1 = jnp.maximum(bn(x, params['gamma1'], params['beta1']), 0.0)
    w1 = params['conv1'].astype(jnp.float32)
    y = jnp.einsum('bhwc,cm->bhwm', z1, w1)
    z2 = jnp.maximum(bn(y, params['gamma2'], params['beta2']), 0.0)
    cm, g = w1.shape[1], params['conv2'].shape[-1]
    w2 = params['conv2'].astype(jnp.float32).reshape(3, 3, cm, g)     # HWIO
    out = jax.lax.conv_general_dilated(
        z2, w2, window_strides=(1, 1), padding='SAME',
        dimension_numbers=('NHWC', 'HWIO', 'NHWC'))
    return jnp.transpose(out, (0, 3, 1, 2))


# ---------------------------------------------------------------------------
if __name__ == "__main__":
    key = jax.random.PRNGKey(0)
    kp, ka, kb = jax.random.split(key, 3)

    growth_rate, bn_size, drop_rate = 8, 2, 0.0
    # Two previous feature maps (NCHW) exercise the torch.cat(inputs, 1) list path.
    feat_a = jax.random.normal(ka, (2, 16, 16, 16), jnp.float32)
    feat_b = jax.random.normal(kb, (2, 8, 16, 16), jnp.float32)
    input_features = feat_a.shape[1] + feat_b.shape[1]

    params = make_dense_layer_params(kp, input_features, growth_rate, bn_size)

    fwd = jax.jit(lambda a, b: dense_layer_forward(params, [a, b], drop_rate))
    out = jax.block_until_ready(fwd(feat_a, feat_b))

    assert out.shape == (2, growth_rate, 16, 16), out.shape
    assert bool(jnp.all(jnp.isfinite(out)))

    ref = _reference_dense_layer(params, [feat_a, feat_b])
    max_err = float(jnp.max(jnp.abs(out - ref)))
    assert max_err < 1e-1, f"max |pallas - reference| = {max_err}"

    print("KERNEL_OK")
</pallas_src>

<mosaic_0001>
module attributes {stable_mosaic.version = 11 : i64} {
  func.func @_bn_relu_conv1x1_stats_kernel(%arg0: i32, %arg1: memref<512x24xbf16, #tpu.memory_space<vmem>>, %arg2: memref<1x24xf32, #tpu.memory_space<vmem>>, %arg3: memref<1x24xf32, #tpu.memory_space<vmem>>, %arg4: memref<24x16xbf16, #tpu.memory_space<vmem>>, %arg5: memref<512x16xbf16, #tpu.memory_space<vmem>>, %arg6: memref<1x16xf32, #tpu.memory_space<vmem>>, %arg7: memref<1x16xf32, #tpu.memory_space<vmem>>) attributes {dimension_semantics = [#tpu.dimension_semantics<arbitrary>], iteration_bounds = array<i64: 1>, scalar_prefetch = 0 : i64, scratch_operands = 0 : i64, tpu.core_type = #tpu.core_type<tc>, window_params = [{transform_indices = @transform_0, window_bounds = array<i64: 512, 24>}, {pipeline_mode = #tpu.pipeline_mode<synchronous>, transform_indices = @transform_1, window_bounds = array<i64: 1, 24>}, {pipeline_mode = #tpu.pipeline_mode<synchronous>, transform_indices = @transform_2, window_bounds = array<i64: 1, 24>}, {pipeline_mode = #tpu.pipeline_mode<synchronous>, transform_indices = @transform_3, window_bounds = array<i64: 24, 16>}, {transform_indices = @transform_4, window_bounds = array<i64: 512, 16>}, {pipeline_mode = #tpu.pipeline_mode<synchronous>, transform_indices = @transform_5, window_bounds = array<i64: 1, 16>}, {pipeline_mode = #tpu.pipeline_mode<synchronous>, transform_indices = @transform_6, window_bounds = array<i64: 1, 16>}]} {
    %c0_i32 = arith.constant 0 : i32
    %0 = arith.cmpi eq, %arg0, %c0_i32 : i32
    %1 = arith.extui %0 : i1 to i32
    %c0_i32_0 = arith.constant 0 : i32
    %2 = arith.cmpi ne, %1, %c0_i32_0 : i32
    scf.if %2 {
      %cst_21 = arith.constant 0.000000e+00 : f32
      %29 = vector.broadcast %cst_21 : f32 to vector<1x16xf32>
      %c0_22 = arith.constant 0 : index
      %c0_23 = arith.constant 0 : index
      %30 = vector.load %arg6[%c0_22, %c0_23] : memref<1x16xf32, #tpu.memory_space<vmem>>, vector<1x16xf32>
      tpu.vector_store %arg6[%c0_22, %c0_23], %29 {strides = array<i32>} : memref<1x16xf32, #tpu.memory_space<vmem>>, vector<1x16xf32>,
      %cst_24 = arith.constant 0.000000e+00 : f32
      %31 = vector.broadcast %cst_24 : f32 to vector<1x16xf32>
      %c0_25 = arith.constant 0 : index
      %c0_26 = arith.constant 0 : index
      %32 = vector.load %arg7[%c0_25, %c0_26] : memref<1x16xf32, #tpu.memory_space<vmem>>, vector<1x16xf32>
      tpu.vector_store %arg7[%c0_25, %c0_26], %31 {strides = array<i32>} : memref<1x16xf32, #tpu.memory_space<vmem>>, vector<1x16xf32>,
    } else {
    }
    %c0 = arith.constant 0 : index
    %c0_1 = arith.constant 0 : index
    %3 = vector.load %arg1[%c0, %c0_1] : memref<512x24xbf16, #tpu.memory_space<vmem>>, vector<512x24xbf16>
    %4 = arith.extf %3 : vector<512x24xbf16> to vector<512x24xf32>
    %c0_2 = arith.constant 0 : index
    %c0_3 = arith.constant 0 : index
    %5 = vector.load %arg2[%c0_2, %c0_3] : memref<1x24xf32, #tpu.memory_space<vmem>>, vector<1x24xf32>
    %6 = vector.broadcast %5 : vector<1x24xf32> to vector<512x24xf32>
    %7 = arith.mulf %4, %6 : vector<512x24xf32>
    %c0_4 = arith.constant 0 : index
    %c0_5 = arith.constant 0 : index
    %8 = vector.load %arg3[%c0_4, %c0_5] : memref<1x24xf32, #tpu.memory_space<vmem>>, vector<1x24xf32>
    %9 = vector.broadcast %8 : vector<1x24xf32> to vector<512x24xf32>
    %10 = arith.addf %7, %9 : vector<512x24xf32>
    %cst = arith.constant 0.000000e+00 : f32
    %11 = vector.broadcast %cst : f32 to vector<512x24xf32>
    %12 = arith.maximumf %10, %11 : vector<512x24xf32>
    %13 = arith.truncf %12 : vector<512x24xf32> to vector<512x24xbf16>
    %c0_6 = arith.constant 0 : index
    %c0_7 = arith.constant 0 : index
    %14 = vector.load %arg4[%c0_6, %c0_7] : memref<24x16xbf16, #tpu.memory_space<vmem>>, vector<24x16xbf16>
    %cst_8 = arith.constant dense<0.000000e+00> : vector<512x16xf32>
    %15 = tpu.matmul %13, %14, %cst_8 {dimension_numbers = #tpu.dot_dimension_numbers<[1], [0], [0], [1], [0, 0, 1, 1], [], []>} : vector<512x24xbf16>, vector<24x16xbf16>, vector<512x16xf32> -> vector<512x16xf32>
    %16 = arith.truncf %15 : vector<512x16xf32> to vector<512x16xbf16>
    %c0_9 = arith.constant 0 : index
    %c0_10 = arith.constant 0 : index
    %17 = vector.load %arg5[%c0_9, %c0_10] : memref<512x16xbf16, #tpu.memory_space<vmem>>, vector<512x16xbf16>
    tpu.vector_store %arg5[%c0_9, %c0_10], %16 {strides = array<i32>} : memref<512x16xbf16, #tpu.memory_space<vmem>>, vector<512x16xbf16>,
    %c0_11 = arith.constant 0 : index
    %c0_12 = arith.constant 0 : index
    %18 = vector.load %arg6[%c0_11, %c0_12] : memref<1x16xf32, #tpu.memory_space<vmem>>, vector<1x16xf32>
    %cst_13 = arith.constant dense<0.000000e+00> : vector<16xf32>
    %19 = vector.multi_reduction <add>, %15, %cst_13 [0] : vector<512x16xf32> to vector<16xf32>
    %20 = vector.shape_cast %19 : vector<16xf32> to vector<1x16xf32>
    %21 = arith.addf %18, %20 : vector<1x16xf32>
    %c0_14 = arith.constant 0 : index
    %c0_15 = arith.constant 0 : index
    %22 = vector.load %arg6[%c0_14, %c0_15] : memref<1x16xf32, #tpu.memory_space<vmem>>, vector<1x16xf32>
    tpu.vector_store %arg6[%c0_14, %c0_15], %21 {strides = array<i32>} : memref<1x16xf32, #tpu.memory_space<vmem>>, vector<1x16xf32>,
    %c0_16 = arith.constant 0 : index
    %c0_17 = arith.constant 0 : index
    %23 = vector.load %arg7[%c0_16, %c0_17] : memref<1x16xf32, #tpu.memory_space<vmem>>, vector<1x16xf32>
    %24 = arith.mulf %15, %15 : vector<512x16xf32>
    %cst_18 = arith.constant dense<0.000000e+00> : vector<16xf32>
    %25 = vector.multi_reduction <add>, %24, %cst_18 [0] : vector<512x16xf32> to vector<16xf32>
    %26 = vector.shape_cast %25 : vector<16xf32> to vector<1x16xf32>
    %27 = arith.addf %23, %26 : vector<1x16xf32>
    %c0_19 = arith.constant 0 : index
    %c0_20 = arith.constant 0 : index
    %28 = vector.load %arg7[%c0_19, %c0_20] : memref<1x16xf32, #tpu.memory_space<vmem>>, vector<1x16xf32>
    tpu.vector_store %arg7[%c0_19, %c0_20], %27 {strides = array<i32>} : memref<1x16xf32, #tpu.memory_space<vmem>>, vector<1x16xf32>,
    return
  }
  func.func @transform_0(%arg0: i32) -> (i32, i32) {
    %c0_i32 = arith.constant 0 : i32
    %c0_i32_0 = arith.constant 0 : i32
    return %arg0, %c0_i32 : i32, i32
  }
  func.func @transform_1(%arg0: i32) -> (i32, i32) {
    %c0_i32 = arith.constant 0 : i32
    %c0_i32_0 = arith.constant 0 : i32
    %c0_i32_1 = arith.constant 0 : i32
    return %c0_i32, %c0_i32_0 : i32, i32
  }
  func.func @transform_2(%arg0: i32) -> (i32, i32) {
    %c0_i32 = arith.constant 0 : i32
    %c0_i32_0 = arith.constant 0 : i32
    %c0_i32_1 = arith.constant 0 : i32
    return %c0_i32, %c0_i32_0 : i32, i32
  }
  func.func @transform_3(%arg0: i32) -> (i32, i32) {
    %c0_i32 = arith.constant 0 : i32
    %c0_i32_0 = arith.constant 0 : i32
    %c0_i32_1 = arith.constant 0 : i32
    return %c0_i32, %c0_i32_0 : i32, i32
  }
  func.func @transform_4(%arg0: i32) -> (i32, i32) {
    %c0_i32 = arith.constant 0 : i32
    %c0_i32_0 = arith.constant 0 : i32
    return %arg0, %c0_i32 : i32, i32
  }
  func.func @transform_5(%arg0: i32) -> (i32, i32) {
    %c0_i32 = arith.constant 0 : i32
    %c0_i32_0 = arith.constant 0 : i32
    %c0_i32_1 = arith.constant 0 : i32
    return %c0_i32, %c0_i32_0 : i32, i32
  }
  func.func @transform_6(%arg0: i32) -> (i32, i32) {
    %c0_i32 = arith.constant 0 : i32
    %c0_i32_0 = arith.constant 0 : i32
    %c0_i32_1 = arith.constant 0 : i32
    return %c0_i32, %c0_i32_0 : i32, i32
  }
}

module attributes {stable_mosaic.version = 11 : i64} {
  func.func @_channel_stats_kernel(%arg0: i32, %arg1: memref<512x24xbf16, #tpu.memory_space<vmem>>, %arg2: memref<1x24xf32, #tpu.memory_space<vmem>>, %arg3: memref<1x24xf32, #tpu.memory_space<vmem>>) attributes {dimension_semantics = [#tpu.dimension_semantics<arbitrary>], iteration_bounds = array<i64: 1>, scalar_prefetch = 0 : i64, scratch_operands = 0 : i64, tpu.core_type = #tpu.core_type<tc>, window_params = [{transform_indices = @transform_0, window_bounds = array<i64: 512, 24>}, {pipeline_mode = #tpu.pipeline_mode<synchronous>, transform_indices = @transform_1, window_bounds = array<i64: 1, 24>}, {pipeline_mode = #tpu.pipeline_mode<synchronous>, transform_indices = @transform_2, window_bounds = array<i64: 1, 24>}]} {
    %c0_i32 = arith.constant 0 : i32
    %0 = arith.cmpi eq, %arg0, %c0_i32 : i32
    %1 = arith.extui %0 : i1 to i32
    %c0_i32_0 = arith.constant 0 : i32
    %2 = arith.cmpi ne, %1, %c0_i32_0 : i32
    scf.if %2 {
      %cst_11 = arith.constant 0.000000e+00 : f32
      %16 = vector.broadcast %cst_11 : f32 to vector<1x24xf32>
      %c0_12 = arith.constant 0 : index
      %c0_13 = arith.constant 0 : index
      %17 = vector.load %arg2[%c0_12, %c0_13] : memref<1x24xf32, #tpu.memory_space<vmem>>, vector<1x24xf32>
      tpu.vector_store %arg2[%c0_12, %c0_13], %16 {strides = array<i32>} : memref<1x24xf32, #tpu.memory_space<vmem>>, vector<1x24xf32>,
      %cst_14 = arith.constant 0.000000e+00 : f32
      %18 = vector.broadcast %cst_14 : f32 to vector<1x24xf32>
      %c0_15 = arith.constant 0 : index
      %c0_16 = arith.constant 0 : index
      %19 = vector.load %arg3[%c0_15, %c0_16] : memref<1x24xf32, #tpu.memory_space<vmem>>, vector<1x24xf32>
      tpu.vector_store %arg3[%c0_15, %c0_16], %18 {strides = array<i32>} : memref<1x24xf32, #tpu.memory_space<vmem>>, vector<1x24xf32>,
    } else {
    }
    %c0 = arith.constant 0 : index
    %c0_1 = arith.constant 0 : index
    %3 = vector.load %arg1[%c0, %c0_1] : memref<512x24xbf16, #tpu.memory_space<vmem>>, vector<512x24xbf16>
    %4 = arith.extf %3 : vector<512x24xbf16> to vector<512x24xf32>
    %c0_2 = arith.constant 0 : index
    %c0_3 = arith.constant 0 : index
    %5 = vector.load %arg2[%c0_2, %c0_3] : memref<1x24xf32, #tpu.memory_space<vmem>>, vector<1x24xf32>
    %cst = arith.constant dense<0.000000e+00> : vector<24xf32>
    %6 = vector.multi_reduction <add>, %4, %cst [0] : vector<512x24xf32> to vector<24xf32>
    %7 = vector.shape_cast %6 : vector<24xf32> to vector<1x24xf32>
    %8 = arith.addf %5, %7 : vector<1x24xf32>
    %c0_4 = arith.constant 0 : index
    %c0_5 = arith.constant 0 : index
    %9 = vector.load %arg2[%c0_4, %c0_5] : memref<1x24xf32, #tpu.memory_space<vmem>>, vector<1x24xf32>
    tpu.vector_store %arg2[%c0_4, %c0_5], %8 {strides = array<i32>} : memref<1x24xf32, #tpu.memory_space<vmem>>, vector<1x24xf32>,
    %c0_6 = arith.constant 0 : index
    %c0_7 = arith.constant 0 : index
    %10 = vector.load %arg3[%c0_6, %c0_7] : memref<1x24xf32, #tpu.memory_space<vmem>>, vector<1x24xf32>
    %11 = arith.mulf %4, %4 : vector<512x24xf32>
    %cst_8 = arith.constant dense<0.000000e+00> : vector<24xf32>
    %12 = vector.multi_reduction <add>, %11, %cst_8 [0] : vector<512x24xf32> to vector<24xf32>
    %13 = vector.shape_cast %12 : vector<24xf32> to vector<1x24xf32>
    %14 = arith.addf %10, %13 : vector<1x24xf32>
    %c0_9 = arith.constant 0 : index
    %c0_10 = arith.constant 0 : index
    %15 = vector.load %arg3[%c0_9, %c0_10] : memref<1x24xf32, #tpu.memory_space<vmem>>, vector<1x24xf32>
    tpu.vector_store %arg3[%c0_9, %c0_10], %14 {strides = array<i32>} : memref<1x24xf32, #tpu.memory_space<vmem>>, vector<1x24xf32>,
    return
  }
  func.func @transform_0(%arg0: i32) -> (i32, i32) {
    %c0_i32 = arith.constant 0 : i32
    %c0_i32_0 = arith.constant 0 : i32
    return %arg0, %c0_i32 : i32, i32
  }
  func.func @transform_1(%arg0: i32) -> (i32, i32) {
    %c0_i32 = arith.constant 0 : i32
    %c0_i32_0 = arith.constant 0 : i32
    %c0_i32_1 = arith.constant 0 : i32
    return %c0_i32, %c0_i32_0 : i32, i32
  }
  func.func @transform_2(%arg0: i32) -> (i32, i32) {
    %c0_i32 = arith.constant 0 : i32
    %c0_i32_0 = arith.constant 0 : i32
    %c0_i32_1 = arith.constant 0 : i32
    return %c0_i32, %c0_i32_0 : i32, i32
  }
}

module attributes {stable_mosaic.version = 11 : i64} {
  func.func @_bn_relu_conv3x3_kernel(%arg0: i32, %arg1: memref<1x256x16xbf16, #tpu.memory_space<vmem>>, %arg2: memref<1x16xf32, #tpu.memory_space<vmem>>, %arg3: memref<1x16xf32, #tpu.memory_space<vmem>>, %arg4: memref<9x16x8xbf16, #tpu.memory_space<vmem>>, %arg5: memref<256x1xf32, #tpu.memory_space<vmem>>, %arg6: memref<256x1xf32, #tpu.memory_space<vmem>>, %arg7: memref<1x256x8xf32, #tpu.memory_space<vmem>>, %arg8: memref<304x16xf32, #tpu.memory_space<vmem>>) attributes {dimension_semantics = [#tpu.dimension_semantics<parallel>], iteration_bounds = array<i64: 2>, scalar_prefetch = 0 : i64, scratch_operands = 1 : i64, tpu.core_type = #tpu.core_type<tc>, window_params = [{transform_indices = @transform_0, window_bounds = array<i64: 1, 256, 16>}, {pipeline_mode = #tpu.pipeline_mode<synchronous>, transform_indices = @transform_1, window_bounds = array<i64: 1, 16>}, {pipeline_mode = #tpu.pipeline_mode<synchronous>, transform_indices = @transform_2, window_bounds = array<i64: 1, 16>}, {pipeline_mode = #tpu.pipeline_mode<synchronous>, transform_indices = @transform_3, window_bounds = array<i64: 9, 16, 8>}, {pipeline_mode = #tpu.pipeline_mode<synchronous>, transform_indices = @transform_4, window_bounds = array<i64: 256, 1>}, {pipeline_mode = #tpu.pipeline_mode<synchronous>, transform_indices = @transform_5, window_bounds = array<i64: 256, 1>}, {transform_indices = @transform_6, window_bounds = array<i64: 1, 256, 8>}]} {
    %c0 = arith.constant 0 : index
    %c0_0 = arith.constant 0 : index
    %c0_1 = arith.constant 0 : index
    %0 = vector.load %arg1[%c0, %c0_0, %c0_1] : memref<1x256x16xbf16, #tpu.memory_space<vmem>>, vector<1x256x16xbf16>
    %1 = vector.shape_cast %0 : vector<1x256x16xbf16> to vector<256x16xbf16>
    %2 = arith.extf %1 : vector<256x16xbf16> to vector<256x16xf32>
    %c0_2 = arith.constant 0 : index
    %c0_3 = arith.constant 0 : index
    %3 = vector.load %arg2[%c0_2, %c0_3] : memref<1x16xf32, #tpu.memory_space<vmem>>, vector<1x16xf32>
    %4 = vector.broadcast %3 : vector<1x16xf32> to vector<256x16xf32>
    %5 = arith.mulf %2, %4 : vector<256x16xf32>
    %c0_4 = arith.constant 0 : index
    %c0_5 = arith.constant 0 : index
    %6 = vector.load %arg3[%c0_4, %c0_5] : memref<1x16xf32, #tpu.memory_space<vmem>>, vector<1x16xf32>
    %7 = vector.broadcast %6 : vector<1x16xf32> to vector<256x16xf32>
    %8 = arith.addf %5, %7 : vector<256x16xf32>
    %cst = arith.constant 0.000000e+00 : f32
    %9 = vector.broadcast %cst : f32 to vector<256x16xf32>
    %10 = arith.maximumf %8, %9 : vector<256x16xf32>
    %cst_6 = arith.constant 0.000000e+00 : f32
    %11 = vector.broadcast %cst_6 : f32 to vector<24x16xf32>
    %c0_7 = arith.constant 0 : index
    %c0_8 = arith.constant 0 : index
    %12 = vector.load %arg8[%c0_7, %c0_8] : memref<304x16xf32, #tpu.memory_space<vmem>>, vector<24x16xf32>
    tpu.vector_store %arg8[%c0_7, %c0_8], %11 {strides = array<i32>} : memref<304x16xf32, #tpu.memory_space<vmem>>, vector<24x16xf32>,
    %cst_9 = arith.constant 0.000000e+00 : f32
    %13 = vector.broadcast %cst_9 : f32 to vector<24x16xf32>
    %c280 = arith.constant 280 : index
    %c0_10 = arith.constant 0 : index
    %14 = vector.load %arg8[%c280, %c0_10] : memref<304x16xf32, #tpu.memory_space<vmem>>, vector<24x16xf32>
    tpu.vector_store %arg8[%c280, %c0_10], %13 {strides = array<i32>} : memref<304x16xf32, #tpu.memory_space<vmem>>, vector<24x16xf32>,
    %c24 = arith.constant 24 : index
    %c0_11 = arith.constant 0 : index
    %15 = vector.load %arg8[%c24, %c0_11] : memref<304x16xf32, #tpu.memory_space<vmem>>, vector<256x16xf32>
    tpu.vector_store %arg8[%c24, %c0_11], %10 {strides = array<i32>} : memref<304x16xf32, #tpu.memory_space<vmem>>, vector<256x16xf32>,
    %c0_12 = arith.constant 0 : index
    %c0_13 = arith.constant 0 : index
    %16 = vector.load %arg5[%c0_12, %c0_13] : memref<256x1xf32, #tpu.memory_space<vmem>>, vector<256x1xf32>
    %c0_14 = arith.constant 0 : index
    %c0_15 = arith.constant 0 : index
    %17 = vector.load %arg6[%c0_14, %c0_15] : memref<256x1xf32, #tpu.memory_space<vmem>>, vector<256x1xf32>
    %cst_16 = arith.constant 0.000000e+00 : f32
    %18 = vector.broadcast %cst_16 : f32 to vector<256x8xf32>
    %cst_17 = arith.constant 0.000000e+00 : f32
    %19 = vector.broadcast %cst_17 : f32 to vector<256x8xf32>
    %c7 = arith.constant 7 : index
    %c0_18 = arith.constant 0 : index
    %20 = vector.load %arg8[%c7, %c0_18] : memref<304x16xf32, #tpu.memory_space<vmem>>, vector<256x16xf32>
    %21 = arith.truncf %20 : vector<256x16xf32> to vector<256x16xbf16>
    %c0_19 = arith.constant 0 : index
    %c0_20 = arith.constant 0 : index
    %c0_21 = arith.constant 0 : index
    %22 = vector.load %arg4[%c0_19, %c0_20, %c0_21] : memref<9x16x8xbf16, #tpu.memory_space<vmem>>, vector<1x16x8xbf16>
    %23 = vector.shape_cast %22 : vector<1x16x8xbf16> to vector<16x8xbf16>
    %cst_22 = arith.constant dense<0.000000e+00> : vector<256x8xf32>
    %24 = tpu.matmul %21, %23, %cst_22 {dimension_numbers = #tpu.dot_dimension_numbers<[1], [0], [0], [1], [0, 0, 1, 1], [], []>} : vector<256x16xbf16>, vector<16x8xbf16>, vector<256x8xf32> -> vector<256x8xf32>
    %25 = arith.addf %19, %24 : vector<256x8xf32>
    %c23 = arith.constant 23 : index
    %c0_23 = arith.constant 0 : index
    %26 = vector.load %arg8[%c23, %c0_23] : memref<304x16xf32, #tpu.memory_space<vmem>>, vector<256x16xf32>
    %27 = arith.truncf %26 : vector<256x16xf32> to vector<256x16xbf16>
    %c3 = arith.constant 3 : index
    %c0_24 = arith.constant 0 : index
    %c0_25 = arith.constant 0 : index
    %28 = vector.load %arg4[%c3, %c0_24, %c0_25] : memref<9x16x8xbf16, #tpu.memory_space<vmem>>, vector<1x16x8xbf16>
    %29 = vector.shape_cast %28 : vector<1x16x8xbf16> to vector<16x8xbf16>
    %cst_26 = arith.constant dense<0.000000e+00> : vector<256x8xf32>
    %30 = tpu.matmul %27, %29, %cst_26 {dimension_numbers = #tpu.dot_dimension_numbers<[1], [0], [0], [1], [0, 0, 1, 1], [], []>} : vector<256x16xbf16>, vector<16x8xbf16>, vector<256x8xf32> -> vector<256x8xf32>
    %31 = arith.addf %25, %30 : vector<256x8xf32>
    %c39 = arith.constant 39 : index
    %c0_27 = arith.constant 0 : index
    %32 = vector.load %arg8[%c39, %c0_27] : memref<304x16xf32, #tpu.memory_space<vmem>>, vector<256x16xf32>
    %33 = arith.truncf %32 : vector<256x16xf32> to vector<256x16xbf16>
    %c6 = arith.constant 6 : index
    %c0_28 = arith.constant 0 : index
    %c0_29 = arith.constant 0 : index
    %34 = vector.load %arg4[%c6, %c0_28, %c0_29] : memref<9x16x8xbf16, #tpu.memory_space<vmem>>, vector<1x16x8xbf16>
    %35 = vector.shape_cast %34 : vector<1x16x8xbf16> to vector<16x8xbf16>
    %cst_30 = arith.constant dense<0.000000e+00> : vector<256x8xf32>
    %36 = tpu.matmul %33, %35, %cst_30 {dimension_numbers = #tpu.dot_dimension_numbers<[1], [0], [0], [1], [0, 0, 1, 1], [], []>} : vector<256x16xbf16>, vector<16x8xbf16>, vector<256x8xf32> -> vector<256x8xf32>
    %37 = arith.addf %31, %36 : vector<256x8xf32>
    %38 = vector.broadcast %16 : vector<256x1xf32> to vector<256x8xf32>
    %39 = arith.mulf %37, %38 : vector<256x8xf32>
    %40 = arith.addf %18, %39 : vector<256x8xf32>
    %cst_31 = arith.constant 0.000000e+00 : f32
    %41 = vector.broadcast %cst_31 : f32 to vector<256x8xf32>
    %c8 = arith.constant 8 : index
    %c0_32 = arith.constant 0 : index
    %42 = vector.load %arg8[%c8, %c0_32] : memref<304x16xf32, #tpu.memory_space<vmem>>, vector<256x16xf32>
    %43 = arith.truncf %42 : vector<256x16xf32> to vector<256x16xbf16>
    %c1 = arith.constant 1 : index
    %c0_33 = arith.constant 0 : index
    %c0_34 = arith.constant 0 : index
    %44 = vector.load %arg4[%c1, %c0_33, %c0_34] : memref<9x16x8xbf16, #tpu.memory_space<vmem>>, vector<1x16x8xbf16>
    %45 = vector.shape_cast %44 : vector<1x16x8xbf16> to vector<16x8xbf16>
    %cst_35 = arith.constant dense<0.000000e+00> : vector<256x8xf32>
    %46 = tpu.matmul %43, %45, %cst_35 {dimension_numbers = #tpu.dot_dimension_numbers<[1], [0], [0], [1], [0, 0, 1, 1], [], []>} : vector<256x16xbf16>, vector<16x8xbf16>, vector<256x8xf32> -> vector<256x8xf32>
    %47 = arith.addf %41, %46 : vector<256x8xf32>
    %c24_36 = arith.constant 24 : index
    %c0_37 = arith.constant 0 : index
    %48 = vector.load %arg8[%c24_36, %c0_37] : memref<304x16xf32, #tpu.memory_space<vmem>>, vector<256x16xf32>
    %49 = arith.truncf %48 : vector<256x16xf32> to vector<256x16xbf16>
    %c4 = arith.constant 4 : index
    %c0_38 = arith.constant 0 : index
    %c0_39 = arith.constant 0 : index
    %50 = vector.load %arg4[%c4, %c0_38, %c0_39] : memref<9x16x8xbf16, #tpu.memory_space<vmem>>, vector<1x16x8xbf16>
    %51 = vector.shape_cast %50 : vector<1x16x8xbf16> to vector<16x8xbf16>
    %cst_40 = arith.constant dense<0.000000e+00> : vector<256x8xf32>
    %52 = tpu.matmul %49, %51, %cst_40 {dimension_numbers = #tpu.dot_dimension_numbers<[1], [0], [0], [1], [0, 0, 1, 1], [], []>} : vector<256x16xbf16>, vector<16x8xbf16>, vector<256x8xf32> -> vector<256x8xf32>
    %53 = arith.addf %47, %52 : vector<256x8xf32>
    %c40 = arith.constant 40 : index
    %c0_41 = arith.constant 0 : index
    %54 = vector.load %arg8[%c40, %c0_41] : memref<304x16xf32, #tpu.memory_space<vmem>>, vector<256x16xf32>
    %55 = arith.truncf %54 : vector<256x16xf32> to vector<256x16xbf16>
    %c7_42 = arith.constant 7 : index
    %c0_43 = arith.constant 0 : index
    %c0_44 = arith.constant 0 : index
    %56 = vector.load %arg4[%c7_42, %c0_43, %c0_44] : memref<9x16x8xbf16, #tpu.memory_space<vmem>>, vector<1x16x8xbf16>
    %57 = vector.shape_cast %56 : vector<1x16x8xbf16> to vector<16x8xbf16>
    %cst_45 = arith.constant dense<0.000000e+00> : vector<256x8xf32>
    %58 = tpu.matmul %55, %57, %cst_45 {dimension_numbers = #tpu.dot_dimension_numbers<[1], [0], [0], [1], [0, 0, 1, 1], [], []>} : vector<256x16xbf16>, vector<16x8xbf16>, vector<256x8xf32> -> vector<256x8xf32>
    %59 = arith.addf %53, %58 : vector<256x8xf32>
    %60 = arith.addf %40, %59 : vector<256x8xf32>
    %cst_46 = arith.constant 0.000000e+00 : f32
    %61 = vector.broadcast %cst_46 : f32 to vector<256x8xf32>
    %c9 = arith.constant 9 : index
    %c0_47 = arith.constant 0 : index
    %62 = vector.load %arg8[%c9, %c0_47] : memref<304x16xf32, #tpu.memory_space<vmem>>, vector<256x16xf32>
    %63 = arith.truncf %62 : vector<256x16xf32> to vector<256x16xbf16>
    %c2 = arith.constant 2 : index
    %c0_48 = arith.constant 0 : index
    %c0_49 = arith.constant 0 : index
    %64 = vector.load %arg4[%c2, %c0_48, %c0_49] : memref<9x16x8xbf16, #tpu.memory_space<vmem>>, vector<1x16x8xbf16>
    %65 = vector.shape_cast %64 : vector<1x16x8xbf16> to vector<16x8xbf16>
    %cst_50 = arith.constant dense<0.000000e+00> : vector<256x8xf32>
    %66 = tpu.matmul %63, %65, %cst_50 {dimension_numbers = #tpu.dot_dimension_numbers<[1], [0], [0], [1], [0, 0, 1, 1], [], []>} : vector<256x16xbf16>, vector<16x8xbf16>, vector<256x8xf32> -> vector<256x8xf32>
    %67 = arith.addf %61, %66 : vector<256x8xf32>
    %c25 = arith.constant 25 : index
    %c0_51 = arith.constant 0 : index
    %68 = vector.load %arg8[%c25, %c0_51] : memref<304x16xf32, #tpu.memory_space<vmem>>, vector<256x16xf32>
    %69 = arith.truncf %68 : vector<256x16xf32> to vector<256x16xbf16>
    %c5 = arith.constant 5 : index
    %c0_52 = arith.constant 0 : index
    %c0_53 = arith.constant 0 : index
    %70 = vector.load %arg4[%c5, %c0_52, %c0_53] : memref<9x16x8xbf16, #tpu.memory_space<vmem>>, vector<1x16x8xbf16>
    %71 = vector.shape_cast %70 : vector<1x16x8xbf16> to vector<16x8xbf16>
    %cst_54 = arith.constant dense<0.000000e+00> : vector<256x8xf32>
    %72 = tpu.matmul %69, %71, %cst_54 {dimension_numbers = #tpu.dot_dimension_numbers<[1], [0], [0], [1], [0, 0, 1, 1], [], []>} : vector<256x16xbf16>, vector<16x8xbf16>, vector<256x8xf32> -> vector<256x8xf32>
    %73 = arith.addf %67, %72 : vector<256x8xf32>
    %c41 = arith.constant 41 : index
    %c0_55 = arith.constant 0 : index
    %74 = vector.load %arg8[%c41, %c0_55] : memref<304x16xf32, #tpu.memory_space<vmem>>, vector<256x16xf32>
    %75 = arith.truncf %74 : vector<256x16xf32> to vector<256x16xbf16>
    %c8_56 = arith.constant 8 : index
    %c0_57 = arith.constant 0 : index
    %c0_58 = arith.constant 0 : index
    %76 = vector.load %arg4[%c8_56, %c0_57, %c0_58] : memref<9x16x8xbf16, #tpu.memory_space<vmem>>, vector<1x16x8xbf16>
    %77 = vector.shape_cast %76 : vector<1x16x8xbf16> to vector<16x8xbf16>
    %cst_59 = arith.constant dense<0.000000e+00> : vector<256x8xf32>
    %78 = tpu.matmul %75, %77, %cst_59 {dimension_numbers = #tpu.dot_dimension_numbers<[1], [0], [0], [1], [0, 0, 1, 1], [], []>} : vector<256x16xbf16>, vector<16x8xbf16>, vector<256x8xf32> -> vector<256x8xf32>
    %79 = arith.addf %73, %78 : vector<256x8xf32>
    %80 = vector.broadcast %17 : vector<256x1xf32> to vector<256x8xf32>
    %81 = arith.mulf %79, %80 : vector<256x8xf32>
    %82 = arith.addf %60, %81 : vector<256x8xf32>
    %c0_60 = arith.constant 0 : index
    %c0_61 = arith.constant 0 : index
    %c0_62 = arith.constant 0 : index
    %83 = vector.load %arg7[%c0_60, %c0_61, %c0_62] : memref<1x256x8xf32, #tpu.memory_space<vmem>>, vector<1x256x8xf32>
    %84 = vector.shape_cast %83 : vector<1x256x8xf32> to vector<256x8xf32>
    %85 = vector.shape_cast %82 : vector<256x8xf32> to vector<1x256x8xf32>
    tpu.vector_store %arg7[%c0_60, %c0_61, %c0_62], %85 {strides = array<i32>} : memref<1x256x8xf32, #tpu.memory_space<vmem>>, vector<1x256x8xf32>,
    return
  }
  func.func @transform_0(%arg0: i32) -> (i32, i32, i32) {
    %c0_i32 = arith.constant 0 : i32
    %c0_i32_0 = arith.constant 0 : i32
    %c0_i32_1 = arith.constant 0 : i32
    return %arg0, %c0_i32, %c0_i32_0 : i32, i32, i32
  }
  func.func @transform_1(%arg0: i32) -> (i32, i32) {
    %c0_i32 = arith.constant 0 : i32
    %c0_i32_0 = arith.constant 0 : i32
    %c0_i32_1 = arith.constant 0 : i32
    return %c0_i32, %c0_i32_0 : i32, i32
  }
  func.func @transform_2(%arg0: i32) -> (i32, i32) {
    %c0_i32 = arith.constant 0 : i32
    %c0_i32_0 = arith.constant 0 : i32
    %c0_i32_1 = arith.constant 0 : i32
    return %c0_i32, %c0_i32_0 : i32, i32
  }
  func.func @transform_3(%arg0: i32) -> (i32, i32, i32) {
    %c0_i32 = arith.constant 0 : i32
    %c0_i32_0 = arith.constant 0 : i32
    %c0_i32_1 = arith.constant 0 : i32
    %c0_i32_2 = arith.constant 0 : i32
    return %c0_i32, %c0_i32_0, %c0_i32_1 : i32, i32, i32
  }
  func.func @transform_4(%arg0: i32) -> (i32, i32) {
    %c0_i32 = arith.constant 0 : i32
    %c0_i32_0 = arith.constant 0 : i32
    %c0_i32_1 = arith.constant 0 : i32
    return %c0_i32, %c0_i32_0 : i32, i32
  }
  func.func @transform_5(%arg0: i32) -> (i32, i32) {
    %c0_i32 = arith.constant 0 : i32
    %c0_i32_0 = arith.constant 0 : i32
    %c0_i32_1 = arith.constant 0 : i32
    return %c0_i32, %c0_i32_0 : i32, i32
  }
  func.func @transform_6(%arg0: i32) -> (i32, i32, i32) {
    %c0_i32 = arith.constant 0 : i32
    %c0_i32_0 = arith.constant 0 : i32
    %c0_i32_1 = arith.constant 0 : i32
    return %arg0, %c0_i32, %c0_i32_0 : i32, i32, i32
  }
}

</mosaic_0001>

<llo_original>
// kernel: _lambda_.3
$region0: #{_lambda_.3}
  #allocation0 [shape = 'u32[]', space=smem, size = 0x4, offset = 0x4, fixed_abs, tag = 'smem constant byte address 0x4 - core index']
  #allocation1 [shape = 'u32[72,128]{1,0:T(1,128)}', space=vmem, size = 0x9000, scoped, tag = 'internal scratch']
  %s0 = inlined_call_operand.vmem [shape: bf16[512,24], index: 0, kind: input, shape index: {}]
  %s1 = inlined_call_operand.vmem [shape: f32[1,24], index: 1, kind: output, shape index: {0}]
  %s2 = inlined_call_operand.vmem [shape: f32[1,24], index: 2, kind: output, shape index: {1}]
  %3 = xla_tuple %s1, %s2
  %s4 = sld [smem:[#allocation0]]
  $region26: #{_lambda_.3} parent=0
    _
  %s6 = ssub.s32 1, %s4
  %s7 = scalar_select 0, %s6, %s4
  // Predicated region
  $region2: #{_lambda_.3} parent=0 // pred_check
    _
  $region3: #{_lambda_.3} parent=0 // pred_check_branch
    %9 = sbr.rel (0) target = $region5
  $region4: #{_lambda_.3} parent=0 // pred_region
    _
  $region5: #{_lambda_.3} parent=0 // pred_fallthru
    _
  %p10 = scmp.eq.s32.totalorder 0, 0
  // Predicated region
  $region6: #{_lambda_.3} parent=0 // pred_check
    %p11 = pneg %p10
  $region7: #{_lambda_.3} parent=0 // pred_check_branch
    %13 = sbr.rel (%p11) target = $region9
  $region8: #{_lambda_.3} parent=0 // pred_region
    %vm14 = vcmask 188416
    %15 = vst.msk [vmem:[%s1] sm:$0x1] %vm14, 0.0
    %16 = vst.msk [vmem:[%s2] sm:$0x1] %vm14, 0.0
  $region9: #{_lambda_.3} parent=0 // pred_fallthru
    _
  %v17 = vld [vmem:[%s0] sm:$0xf]
  %v18 = vld [vmem:[%s0 + $0x4] sm:$0xf]
  %v19 = vld [vmem:[%s0 + $0x8] sm:$0xf]
  %v20 = vld [vmem:[%s0 + $0xc] sm:$0xf]
  %v21 = vld [vmem:[%s0 + $0x10] sm:$0xf]
  %v22 = vld [vmem:[%s0 + $0x14] sm:$0xf]
  %v23 = vld [vmem:[%s0 + $0x18] sm:$0xf]
  %v24 = vld [vmem:[%s0 + $0x1c] sm:$0xf]
  %v25 = vld [vmem:[%s0 + $0x20] sm:$0xf]
  %v26 = vld [vmem:[%s0 + $0x24] sm:$0xf]
  %v27 = vld [vmem:[%s0 + $0x28] sm:$0xf]
  %v28 = vld [vmem:[%s0 + $0x2c] sm:$0xf]
  %v29 = vld [vmem:[%s0 + $0x30] sm:$0xf]
  %v30 = vld [vmem:[%s0 + $0x34] sm:$0xf]
  %v31 = vld [vmem:[%s0 + $0x38] sm:$0xf]
  %v32 = vld [vmem:[%s0 + $0x3c] sm:$0xf]
  %v33 = vld [vmem:[%s0 + $0x40] sm:$0xf]
  %v34 = vld [vmem:[%s0 + $0x44] sm:$0xf]
  %v35 = vld [vmem:[%s0 + $0x48] sm:$0xf]
  %v36 = vld [vmem:[%s0 + $0x4c] sm:$0xf]
  %v37 = vld [vmem:[%s0 + $0x50] sm:$0xf]
  %v38 = vld [vmem:[%s0 + $0x54] sm:$0xf]
  %v39 = vld [vmem:[%s0 + $0x58] sm:$0xf]
  %v40 = vld [vmem:[%s0 + $0x5c] sm:$0xf]
  %v41 = vld [vmem:[%s0 + $0x60] sm:$0xf]
  %v42 = vld [vmem:[%s0 + $0x64] sm:$0xf]
  %v43 = vld [vmem:[%s0 + $0x68] sm:$0xf]
  %v44 = vld [vmem:[%s0 + $0x6c] sm:$0xf]
  %v45 = vld [vmem:[%s0 + $0x70] sm:$0xf]
  %v46 = vld [vmem:[%s0 + $0x74] sm:$0xf]
  %v47 = vld [vmem:[%s0 + $0x78] sm:$0xf]
  %v48 = vld [vmem:[%s0 + $0x7c] sm:$0xf]
  %v49 = vld [vmem:[%s0 + $0x80] sm:$0xf]
  %v50 = vld [vmem:[%s0 + $0x84] sm:$0xf]
  %v51 = vld [vmem:[%s0 + $0x88] sm:$0xf]
  %v52 = vld [vmem:[%s0 + $0x8c] sm:$0xf]
  %v53 = vld [vmem:[%s0 + $0x90] sm:$0xf]
  %v54 = vld [vmem:[%s0 + $0x94] sm:$0xf]
  %v55 = vld [vmem:[%s0 + $0x98] sm:$0xf]
  %v56 = vld [vmem:[%s0 + $0x9c] sm:$0xf]
  %v57 = vld [vmem:[%s0 + $0xa0] sm:$0xf]
  %v58 = vld [vmem:[%s0 + $0xa4] sm:$0xf]
  %v59 = vld [vmem:[%s0 + $0xa8] sm:$0xf]
  %v60 = vld [vmem:[%s0 + $0xac] sm:$0xf]
  %v61 = vld [vmem:[%s0 + $0xb0] sm:$0xf]
  %v62 = vld [vmem:[%s0 + $0xb4] sm:$0xf]
  %v63 = vld [vmem:[%s0 + $0xb8] sm:$0xf]
  %v64 = vld [vmem:[%s0 + $0xbc] sm:$0xf]
  %v65 = vld [vmem:[%s0 + $0xc0] sm:$0xf]
  %v66 = vld [vmem:[%s0 + $0xc4] sm:$0xf]
  %v67 = vld [vmem:[%s0 + $0xc8] sm:$0xf]
  %v68 = vld [vmem:[%s0 + $0xcc] sm:$0xf]
  %v69 = vld [vmem:[%s0 + $0xd0] sm:$0xf]
  %v70 = vld [vmem:[%s0 + $0xd4] sm:$0xf]
  %v71 = vld [vmem:[%s0 + $0xd8] sm:$0xf]
  %v72 = vld [vmem:[%s0 + $0xdc] sm:$0xf]
  %v73 = vld [vmem:[%s0 + $0xe0] sm:$0xf]
  %v74 = vld [vmem:[%s0 + $0xe4] sm:$0xf]
  %v75 = vld [vmem:[%s0 + $0xe8] sm:$0xf]
  %v76 = vld [vmem:[%s0 + $0xec] sm:$0xf]
  %v77 = vld [vmem:[%s0 + $0xf0] sm:$0xf]
  %v78 = vld [vmem:[%s0 + $0xf4] sm:$0xf]
  %v79 = vld [vmem:[%s0 + $0xf8] sm:$0xf]
  %v80 = vld [vmem:[%s0 + $0xfc] sm:$0xf]
  %v81 = vunpack.c.l.bf16 %v17
  %v82 = vunpack.c.l.bf16 %v18
  %v83 = vunpack.c.l.bf16 %v19
  %v84 = vunpack.c.l.bf16 %v20
  %v85 = vunpack.c.l.bf16 %v21
  %v86 = vunpack.c.l.bf16 %v22
  %v87 = vunpack.c.l.bf16 %v23
  %v88 = vunpack.c.l.bf16 %v24
  %v89 = vunpack.c.l.bf16 %v25
  %v90 = vunpack.c.l.bf16 %v26
  %v91 = vunpack.c.l.bf16 %v27
  %v92 = vunpack.c.l.bf16 %v28
  %v93 = vunpack.c.l.bf16 %v29
  %v94 = vunpack.c.l.bf16 %v30
  %v95 = vunpack.c.l.bf16 %v31
  %v96 = vunpack.c.l.bf16 %v32
  %v97 = vunpack.c.l.bf16 %v33
  %v98 = vunpack.c.l.bf16 %v34
  %v99 = vunpack.c.l.bf16 %v35
  %v100 = vunpack.c.l.bf16 %v36
  %v101 = vunpack.c.l.bf16 %v37
  %v102 = vunpack.c.l.bf16 %v38
  %v103 = vunpack.c.l.bf16 %v39
  %v104 = vunpack.c.l.bf16 %v40
  %v105 = vunpack.c.l.bf16 %v41
  %v106 = vunpack.c.l.bf16 %v42
  %v107 = vunpack.c.l.bf16 %v43
  %v108 = vunpack.c.l.bf16 %v44
  %v109 = vunpack.c.l.bf16 %v45
  %v110 = vunpack.c.l.bf16 %v46
  %v111 = vunpack.c.l.bf16 %v47
  %v112 = vunpack.c.l.bf16 %v48
  %v113 = vunpack.c.l.bf16 %v49
  %v114 = vunpack.c.l.bf16 %v50
  %v115 = vunpack.c.l.bf16 %v51
  %v116 = vunpack.c.l.bf16 %v52
  %v117 = vunpack.c.l.bf16 %v53
  %v118 = vunpack.c.l.bf16 %v54
  %v119 = vunpack.c.l.bf16 %v55
  %v120 = vunpack.c.l.bf16 %v56
  %v121 = vunpack.c.l.bf16 %v57
  %v122 = vunpack.c.l.bf16 %v58
  %v123 = vunpack.c.l.bf16 %v59
  %v124 = vunpack.c.l.bf16 %v60
  %v125 = vunpack.c.l.bf16 %v61
  %v126 = vunpack.c.l.bf16 %v62
  %v127 = vunpack.c.l.bf16 %v63
  %v128 = vunpack.c.l.bf16 %v64
  %v129 = vunpack.c.l.bf16 %v65
  %v130 = vunpack.c.l.bf16 %v66
  %v131 = vunpack.c.l.bf16 %v67
  %v132 = vunpack.c.l.bf16 %v68
  %v133 = vunpack.c.l.bf16 %v69
  %v134 = vunpack.c.l.bf16 %v70
  %v135 = vunpack.c.l.bf16 %v71
  %v136 = vunpack.c.l.bf16 %v72
  %v137 = vunpack.c.l.bf16 %v73
  %v138 = vunpack.c.l.bf16 %v74
  %v139 = vunpack.c.l.bf16 %v75
  %v140 = vunpack.c.l.bf16 %v76
  %v141 = vunpack.c.l.bf16 %v77
  %v142 = vunpack.c.l.bf16 %v78
  %v143 = vunpack.c.l.bf16 %v79
  %v144 = vunpack.c.l.bf16 %v80
  %v145 = vld [vmem:[%s1] sm:$0x1]
  %vm146 = vcmask 195584
  %v147 = vsel %vm146, %v81, 0.0
  %v148 = vsel %vm146, %v82, 0.0
  %v149 = vadd.f32 %v147, %v148
  %v150 = vsel %vm146, %v83, 0.0
  %v151 = vadd.f32 %v149, %v150
  %v152 = vsel %vm146, %v84, 0.0
  %v153 = vadd.f32 %v151, %v152
  %v154 = vsel %vm146, %v85, 0.0
  %v155 = vadd.f32 %v153, %v154
  %v156 = vsel %vm146, %v86, 0.0
  %v157 = vadd.f32 %v155, %v156
  %v158 = vsel %vm146, %v87, 0.0
  %v159 = vadd.f32 %v157, %v158
  %v160 = vsel %vm146, %v88, 0.0
  %v161 = vadd.f32 %v159, %v160
  %v162 = vsel %vm146, %v89, 0.0
  %v163 = vadd.f32 %v161, %v162
  %v164 = vsel %vm146, %v90, 0.0
  %v165 = vadd.f32 %v163, %v164
  %v166 = vsel %vm146, %v91, 0.0
  %v167 = vadd.f32 %v165, %v166
  %v168 = vsel %vm146, %v92, 0.0
  %v169 = vadd.f32 %v167, %v168
  %v170 = vsel %vm146, %v93, 0.0
  %v171 = vadd.f32 %v169, %v170
  %v172 = vsel %vm146, %v94, 0.0
  %v173 = vadd.f32 %v171, %v172
  %v174 = vsel %vm146, %v95, 0.0
  %v175 = vadd.f32 %v173, %v174
  %v176 = vsel %vm146, %v96, 0.0
  %v177 = vadd.f32 %v175, %v176
  %v178 = vsel %vm146, %v97, 0.0
  %v179 = vadd.f32 %v177, %v178
  %v180 = vsel %vm146, %v98, 0.0
  %v181 = vadd.f32 %v179, %v180
  %v182 = vsel %vm146, %v99, 0.0
  %v183 = vadd.f32 %v181, %v182
  %v184 = vsel %vm146, %v100, 0.0
  %v185 = vadd.f32 %v183, %v184
  %v186 = vsel %vm146, %v101, 0.0
  %v187 = vadd.f32 %v185, %v186
  %v188 = vsel %vm146, %v102, 0.0
  %v189 = vadd.f32 %v187, %v188
  %v190 = vsel %vm146, %v103, 0.0
  %v191 = vadd.f32 %v189, %v190
  %v192 = vsel %vm146, %v104, 0.0
  %v193 = vadd.f32 %v191, %v192
  %v194 = vsel %vm146, %v105, 0.0
  %v195 = vadd.f32 %v193, %v194
  %v196 = vsel %vm146, %v106, 0.0
  %v197 = vadd.f32 %v195, %v196
  %v198 = vsel %vm146, %v107, 0.0
  %v199 = vadd.f32 %v197, %v198
  %v200 = vsel %vm146, %v108, 0.0
  %v201 = vadd.f32 %v199, %v200
  %v202 = vsel %vm146, %v109, 0.0
  %v203 = vadd.f32 %v201, %v202
  %v204 = vsel %vm146, %v110, 0.0
  %v205 = vadd.f32 %v203, %v204
  %v206 = vsel %vm146, %v111, 0.0
  %v207 = vadd.f32 %v205, %v206
  %v208 = vsel %vm146, %v112, 0.0
  %v209 = vadd.f32 %v207, %v208
  %v210 = vsel %vm146, %v113, 0.0
  %v211 = vadd.f32 %v209, %v210
  %v212 = vsel %vm146, %v114, 0.0
  %v213 = vadd.f32 %v211, %v212
  %v214 = vsel %vm146, %v115, 0.0
  %v215 = vadd.f32 %v213, %v214
  %v216 = vsel %vm146, %v116, 0.0
  %v217 = vadd.f32 %v215, %v216
  %v218 = vsel %vm146, %v117, 0.0
  %v219 = vadd.f32 %v217, %v218
  %v220 = vsel %vm146, %v118, 0.0
  %v221 = vadd.f32 %v219, %v220
  %v222 = vsel %vm146, %v119, 0.0
  %v223 = vadd.f32 %v221, %v222
  %v224 = vsel %vm146, %v120, 0.0
  %v225 = vadd.f32 %v223, %v224
  %v226 = vsel %vm146, %v121, 0.0
  %v227 = vadd.f32 %v225, %v226
  %v228 = vsel %vm146, %v122, 0.0
  %v229 = vadd.f32 %v227, %v228
  %v230 = vsel %vm146, %v123, 0.0
  %v231 = vadd.f32 %v229, %v230
  %v232 = vsel %vm146, %v124, 0.0
  %v233 = vadd.f32 %v231, %v232
  %v234 = vsel %vm146, %v125, 0.0
  %v235 = vadd.f32 %v233, %v234
  %v236 = vsel %vm146, %v126, 0.0
  %v237 = vadd.f32 %v235, %v236
  %v238 = vsel %vm146, %v127, 0.0
  %v239 = vadd.f32 %v237, %v238
  %v240 = vsel %vm146, %v128, 0.0
  %v241 = vadd.f32 %v239, %v240
  %v242 = vsel %vm146, %v129, 0.0
  %v243 = vadd.f32 %v241, %v242
  %v244 = vsel %vm146, %v130, 0.0
  %v245 = vadd.f32 %v243, %v244
  %v246 = vsel %vm146, %v131, 0.0
  %v247 = vadd.f32 %v245, %v246
  %v248 = vsel %vm146, %v132, 0.0
  %v249 = vadd.f32 %v247, %v248
  %v250 = vsel %vm146, %v133, 0.0
  %v251 = vadd.f32 %v249, %v250
  %v252 = vsel %vm146, %v134, 0.0
  %v253 = vadd.f32 %v251, %v252
  %v254 = vsel %vm146, %v135, 0.0
  %v255 = vadd.f32 %v253, %v254
  %v256 = vsel %vm146, %v136, 0.0
  %v257 = vadd.f32 %v255, %v256
  %v258 = vsel %vm146, %v137, 0.0
  %v259 = vadd.f32 %v257, %v258
  %v260 = vsel %vm146, %v138, 0.0
  %v261 = vadd.f32 %v259, %v260
  %v262 = vsel %vm146, %v139, 0.0
  %v263 = vadd.f32 %v261, %v262
  %v264 = vsel %vm146, %v140, 0.0
  %v265 = vadd.f32 %v263, %v264
  %v266 = vsel %vm146, %v141, 0.0
  %v267 = vadd.f32 %v265, %v266
  %v268 = vsel %vm146, %v142, 0.0
  %v269 = vadd.f32 %v267, %v268
  %v270 = vsel %vm146, %v143, 0.0
  %v271 = vadd.f32 %v269, %v270
  %v272 = vsel %vm146, %v144, 0.0
  %v273 = vadd.f32 %v271, %v272
  %v274 = vrot.slane %v273, 4
  %v275 = vadd.f32 %v273, %v274
  %v276 = vrot.slane %v275, 2
  %v277 = vadd.f32 %v275, %v276
  %v278 = vrot.slane %v277, 1
  %v279 = vadd.f32 %v277, %v278
  %v280 = vadd.f32 %v145, %v279
  %vm281 = vcmask 188416
  %282 = vst.msk [vmem:[%s1] sm:$0x1] %vm281, %v280
  %v283 = vld [vmem:[%s2] sm:$0x1]
  %v284 = vmul.f32 %v81, %v81
  %v285 = vmul.f32 %v82, %v82
  %v286 = vmul.f32 %v83, %v83
  %v287 = vmul.f32 %v84, %v84
  %v288 = vmul.f32 %v85, %v85
  %v289 = vmul.f32 %v86, %v86
  %v290 = vmul.f32 %v87, %v87
  %v291 = vmul.f32 %v88, %v88
  %v292 = vmul.f32 %v89, %v89
  %v293 = vmul.f32 %v90, %v90
  %v294 = vmul.f32 %v91, %v91
  %v295 = vmul.f32 %v92, %v92
  %v296 = vmul.f32 %v93, %v93
  %v297 = vmul.f32 %v94, %v94
  %v298 = vmul.f32 %v95, %v95
  %v299 = vmul.f32 %v96, %v96
  %v300 = vmul.f32 %v97, %v97
  %v301 = vmul.f32 %v98, %v98
  %v302 = vmul.f32 %v99, %v99
  %v303 = vmul.f32 %v100, %v100
  %v304 = vmul.f32 %v101, %v101
  %v305 = vmul.f32 %v102, %v102
  %v306 = vmul.f32 %v103, %v103
  %v307 = vmul.f32 %v104, %v104
  %v308 = vmul.f32 %v105, %v105
  %v309 = vmul.f32 %v106, %v106
  %v310 = vmul.f32 %v107, %v107
  %v311 = vmul.f32 %v108, %v108
  %v312 = vmul.f32 %v109, %v109
  %v313 = vmul.f32 %v110, %v110
  %v314 = vmul.f32 %v111, %v111
  %v315 = vmul.f32 %v112, %v112
  %v316 = vmul.f32 %v113, %v113
  %v317 = vmul.f32 %v114, %v114
  %v318 = vmul.f32 %v115, %v115
  %v319 = vmul.f32 %v116, %v116
  %v320 = vmul.f32 %v117, %v117
  %v321 = vmul.f32 %v118, %v118
  %v322 = vmul.f32 %v119, %v119
  %v323 = vmul.f32 %v120, %v120
  %v324 = vmul.f32 %v121, %v121
  %v325 = vmul.f32 %v122, %v122
  %v326 = vmul.f32 %v123, %v123
  %v327 = vmul.f32 %v124, %v124
  %v328 = vmul.f32 %v125, %v125
  %v329 = vmul.f32 %v126, %v126
  %v330 = vmul.f32 %v127, %v127
  %v331 = vmul.f32 %v128, %v128
  %v332 = vmul.f32 %v129, %v129
  %v333 = vmul.f32 %v130, %v130
  %v334 = vmul.f32 %v131, %v131
  %v335 = vmul.f32 %v132, %v132
  %v336 = vmul.f32 %v133, %v133
  %v337 = vmul.f32 %v134, %v134
  %v338 = vmul.f32 %v135, %v135
  %v339 = vmul.f32 %v136, %v136
  %v340 = vmul.f32 %v137, %v137
  %v341 = vmul.f32 %v138, %v138
  %v342 = vmul.f32 %v139, %v139
  %v343 = vmul.f32 %v140, %v140
  %v344 = vmul.f32 %v141, %v141
  %v345 = vmul.f32 %v142, %v142
  %v346 = vmul.f32 %v143, %v143
  %v347 = vmul.f32 %v144, %v144
  %v348 = vsel %vm146, %v284, 0.0
  %v349 = vsel %vm146, %v285, 0.0
  %v350 = vadd.f32 %v348, %v349
  %v351 = vsel %vm146, %v286, 0.0
  %v352 = vadd.f32 %v350, %v351
  %v353 = vsel %vm146, %v287, 0.0
  %v354 = vadd.f32 %v352, %v353
  %v355 = vsel %vm146, %v288, 0.0
  %v356 = vadd.f32 %v354, %v355
  %v357 = vsel %vm146, %v289, 0.0
  %v358 = vadd.f32 %v356, %v357
  %v359 = vsel %vm146, %v290, 0.0
  %v360 = vadd.f32 %v358, %v359
  %v361 = vsel %vm146, %v291, 0.0
  %v362 = vadd.f32 %v360, %v361
  %v363 = vsel %vm146, %v292, 0.0
  %v364 = vadd.f32 %v362, %v363
  %v365 = vsel %vm146, %v293, 0.0
  %v366 = vadd.f32 %v364, %v365
  %v367 = vsel %vm146, %v294, 0.0
  %v368 = vadd.f32 %v366, %v367
  %v369 = vsel %vm146, %v295, 0.0
  %v370 = vadd.f32 %v368, %v369
  %v371 = vsel %vm146, %v296, 0.0
  %v372 = vadd.f32 %v370, %v371
  %v373 = vsel %vm146, %v297, 0.0
  %v374 = vadd.f32 %v372, %v373
  %v375 = vsel %vm146, %v298, 0.0
  %v376 = vadd.f32 %v374, %v375
  %v377 = vsel %vm146, %v299, 0.0
  %v378 = vadd.f32 %v376, %v377
  %v379 = vsel %vm146, %v300, 0.0
  %v380 = vadd.f32 %v378, %v379
  %v381 = vsel %vm146, %v301, 0.0
  %v382 = vadd.f32 %v380, %v381
  %v383 = vsel %vm146, %v302, 0.0
  %v384 = vadd.f32 %v382, %v383
  %v385 = vsel %vm146, %v303, 0.0
  %v386 = vadd.f32 %v384, %v385
  %v387 = vsel %vm146, %v304, 0.0
  %v388 = vadd.f32 %v386, %v387
  %v389 = vsel %vm146, %v305, 0.0
  %v390 = vadd.f32 %v388, %v389
  %v391 = vsel %vm146, %v306, 0.0
  %v392 = vadd.f32 %v390, %v391
  %v393 = vsel %vm146, %v307, 0.0
  %v394 = vadd.f32 %v392, %v393
  %v395 = vsel %vm146, %v308, 0.0
  %v396 = vadd.f32 %v394, %v395
  %v397 = vsel %vm146, %v309, 0.0
  %v398 = vadd.f32 %v396, %v397
  %v399 = vsel %vm146, %v310, 0.0
  %v400 = vadd.f32 %v398, %v399
  %v401 = vsel %vm146, %v311, 0.0
  %v402 = vadd.f32 %v400, %v401
  %v403 = vsel %vm146, %v312, 0.0
  %v404 = vadd.f32 %v402, %v403
  %v405 = vsel %vm146, %v313, 0.0
  %v406 = vadd.f32 %v404, %v405
  %v407 = vsel %vm146, %v314, 0.0
  %v408 = vadd.f32 %v406, %v407
  %v409 = vsel %vm146, %v315, 0.0
  %v410 = vadd.f32 %v408, %v409
  %v411 = vsel %vm146, %v316, 0.0
  %v412 = vadd.f32 %v410, %v411
  %v413 = vsel %vm146, %v317, 0.0
  %v414 = vadd.f32 %v412, %v413
  %v415 = vsel %vm146, %v318, 0.0
  %v416 = vadd.f32 %v414, %v415
  %v417 = vsel %vm146, %v319, 0.0
  %v418 = vadd.f32 %v416, %v417
  %v419 = vsel %vm146, %v320, 0.0
  %v420 = vadd.f32 %v418, %v419
  %v421 = vsel %vm146, %v321, 0.0
  %v422 = vadd.f32 %v420, %v421
  %v423 = vsel %vm146, %v322, 0.0
  %v424 = vadd.f32 %v422, %v423
  %v425 = vsel %vm146, %v323, 0.0
  %v426 = vadd.f32 %v424, %v425
  %v427 = vsel %vm146, %v324, 0.0
  %v428 = vadd.f32 %v426, %v427
  %v429 = vsel %vm146, %v325, 0.0
  %v430 = vadd.f32 %v428, %v429
  %v431 = vsel %vm146, %v326, 0.0
  %v432 = vadd.f32 %v430, %v431
  %v433 = vsel %vm146, %v327, 0.0
  %v434 = vadd.f32 %v432, %v433
  %v435 = vsel %vm146, %v328, 0.0
  %v436 = vadd.f32 %v434, %v435
  %v437 = vsel %vm146, %v329, 0.0
  %v438 = vadd.f32 %v436, %v437
  %v439 = vsel %vm146, %v330, 0.0
  %v440 = vadd.f32 %v438, %v439
  %v441 = vsel %vm146, %v331, 0.0
  %v442 = vadd.f32 %v440, %v441
  %v443 = vsel %vm146, %v332, 0.0
  %v444 = vadd.f32 %v442, %v443
  %v445 = vsel %vm146, %v333, 0.0
  %v446 = vadd.f32 %v444, %v445
  %v447 = vsel %vm146, %v334, 0.0
  %v448 = vadd.f32 %v446, %v447
  %v449 = vsel %vm146, %v335, 0.0
  %v450 = vadd.f32 %v448, %v449
  %v451 = vsel %vm146, %v336, 0.0
  %v452 = vadd.f32 %v450, %v451
  %v453 = vsel %vm146, %v337, 0.0
  %v454 = vadd.f32 %v452, %v453
  %v455 = vsel %vm146, %v338, 0.0
  %v456 = vadd.f32 %v454, %v455
  %v457 = vsel %vm146, %v339, 0.0
  %v458 = vadd.f32 %v456, %v457
  %v459 = vsel %vm146, %v340, 0.0
  %v460 = vadd.f32 %v458, %v459
  %v461 = vsel %vm146, %v341, 0.0
  %v462 = vadd.f32 %v460, %v461
  %v463 = vsel %vm146, %v342, 0.0
  %v464 = vadd.f32 %v462, %v463
  %v465 = vsel %vm146, %v343, 0.0
  %v466 = vadd.f32 %v464, %v465
  %v467 = vsel %vm146, %v344, 0.0
  %v468 = vadd.f32 %v466, %v467
  %v469 = vsel %vm146, %v345, 0.0
  %v470 = vadd.f32 %v468, %v469
  %v471 = vsel %vm146, %v346, 0.0
  %v472 = vadd.f32 %v470, %v471
  %v473 = vsel %vm146, %v347, 0.0
  %v474 = vadd.f32 %v472, %v473
  %v475 = vrot.slane %v474, 4
  %v476 = vadd.f32 %v474, %v475
  %v477 = vrot.slane %v476, 2
  %v478 = vadd.f32 %v476, %v477
  %v479 = vrot.slane %v478, 1
  %v480 = vadd.f32 %v478, %v479
  %v481 = vadd.f32 %v283, %v480
  %482 = vst.msk [vmem:[%s2] sm:$0x1] %vm281, %v481
  // Predicated region
  $region10: #{_lambda_.3} parent=0 // pred_check
    _
  $region11: #{_lambda_.3} parent=0 // pred_check_branch
    %484 = sbr.rel (0) target = $region13
  $region12: #{_lambda_.3} parent=0 // pred_region
    _
  $region13: #{_lambda_.3} parent=0 // pred_fallthru
    _
  // Predicated region
  $region14: #{_lambda_.3} parent=0 // pred_check
    _
  $region15: #{_lambda_.3} parent=0 // pred_check_branch
    %486 = sbr.rel (0) target = $region17
  $region16: #{_lambda_.3} parent=0 // pred_region
    _
  $region17: #{_lambda_.3} parent=0 // pred_fallthru
    _
  // Predicated region
  $region18: #{_lambda_.3} parent=0 // pred_check
    _
  $region19: #{_lambda_.3} parent=0 // pred_check_branch
    %488 = sbr.rel (0) target = $region21
  $region20: #{_lambda_.3} parent=0 // pred_region
    _
  $region21: #{_lambda_.3} parent=0 // pred_fallthru
    _
  // Predicated region
  $region22: #{_lambda_.3} parent=0 // pred_check
    _
  $region23: #{_lambda_.3} parent=0 // pred_check_branch
    %490 = sbr.rel (0) target = $region25
  $region24: #{_lambda_.3} parent=0 // pred_region
    _
  $region25: #{_lambda_.3} parent=0 // pred_fallthru
    _

// kernel: _lambda_.4
$region0: #{_lambda_.4}
  #allocation0 [shape = 'u32[]', space=smem, size = 0x4, offset = 0x4, fixed_abs, tag = 'smem constant byte address 0x4 - core index']
  #allocation1 [shape = 'u32[72,128]{1,0:T(1,128)}', space=vmem, size = 0x9000, scoped, tag = 'internal scratch']
  %s0 = inlined_call_operand.vmem [shape: bf16[512,24], index: 0, kind: input, shape index: {}]
  %s1 = inlined_call_operand.vmem [shape: f32[1,24], index: 1, kind: input, shape index: {}]
  %s2 = inlined_call_operand.vmem [shape: f32[1,24], index: 2, kind: input, shape index: {}]
  %s3 = inlined_call_operand.vmem [shape: bf16[24,16], index: 3, kind: input, shape index: {}]
  %s4 = inlined_call_operand.vmem [shape: bf16[512,16], index: 4, kind: output, shape index: {0}]
  %s5 = inlined_call_operand.vmem [shape: f32[1,16], index: 5, kind: output, shape index: {1}]
  %s6 = inlined_call_operand.vmem [shape: f32[1,16], index: 6, kind: output, shape index: {2}]
  %7 = xla_tuple %s4, %s5, %s6
  %s8 = sld [smem:[#allocation0]]
  $region46: #{_lambda_.4} parent=0
    _
  %s10 = ssub.s32 1, %s8
  %s11 = scalar_select 0, %s10, %s8
  // Predicated region
  $region2: #{_lambda_.4} parent=0 // pred_check
    _
  $region3: #{_lambda_.4} parent=0 // pred_check_branch
    %13 = sbr.rel (0) target = $region5
  $region4: #{_lambda_.4} parent=0 // pred_region
    _
  $region5: #{_lambda_.4} parent=0 // pred_fallthru
    _
  // Predicated region
  $region6: #{_lambda_.4} parent=0 // pred_check
    _
  $region7: #{_lambda_.4} parent=0 // pred_check_branch
    %15 = sbr.rel (0) target = $region9
  $region8: #{_lambda_.4} parent=0 // pred_region
    _
  $region9: #{_lambda_.4} parent=0 // pred_fallthru
    _
  // Predicated region
  $region10: #{_lambda_.4} parent=0 // pred_check
    _
  $region11: #{_lambda_.4} parent=0 // pred_check_branch
    %17 = sbr.rel (0) target = $region13
  $region12: #{_lambda_.4} parent=0 // pred_region
    _
  $region13: #{_lambda_.4} parent=0 // pred_fallthru
    _
  // Predicated region
  $region14: #{_lambda_.4} parent=0 // pred_check
    _
  $region15: #{_lambda_.4} parent=0 // pred_check_branch
    %19 = sbr.rel (0) target = $region17
  $region16: #{_lambda_.4} parent=0 // pred_region
    _
  $region17: #{_lambda_.4} parent=0 // pred_fallthru
    _
  %p21 = scmp.eq.s32.totalorder 0, 0
  // Predicated region
  $region18: #{_lambda_.4} parent=0 // pred_check
    %p22 = pneg %p21
  $region19: #{_lambda_.4} parent=0 // pred_check_branch
    %24 = sbr.rel (%p22) target = $region21
  $region20: #{_lambda_.4} parent=0 // pred_region
    %vm25 = vcmask 122880
    %26 = vst.msk [vmem:[%s5] sm:$0x1] %vm25, 0.0
    %27 = vst.msk [vmem:[%s6] sm:$0x1] %vm25, 0.0
  $region21: #{_lambda_.4} parent=0 // pred_fallthru
    _
  %v28 = vld [vmem:[%s0] sm:$0xf]
  %v29 = vld [vmem:[%s0 + $0x4] sm:$0xf]
  %v30 = vld [vmem:[%s0 + $0x8] sm:$0xf]
  %v31 = vld [vmem:[%s0 + $0xc] sm:$0xf]
  %v32 = vld [vmem:[%s0 + $0x10] sm:$0xf]
  %v33 = vld [vmem:[%s0 + $0x14] sm:$0xf]
  %v34 = vld [vmem:[%s0 + $0x18] sm:$0xf]
  %v35 = vld [vmem:[%s0 + $0x1c] sm:$0xf]
  %v36 = vld [vmem:[%s0 + $0x20] sm:$0xf]
  %v37 = vld [vmem:[%s0 + $0x24] sm:$0xf]
  %v38 = vld [vmem:[%s0 + $0x28] sm:$0xf]
  %v39 = vld [vmem:[%s0 + $0x2c] sm:$0xf]
  %v40 = vld [vmem:[%s0 + $0x30] sm:$0xf]
  %v41 = vld [vmem:[%s0 + $0x34] sm:$0xf]
  %v42 = vld [vmem:[%s0 + $0x38] sm:$0xf]
  %v43 = vld [vmem:[%s0 + $0x3c] sm:$0xf]
  %v44 = vld [vmem:[%s0 + $0x40] sm:$0xf]
  %v45 = vld [vmem:[%s0 + $0x44] sm:$0xf]
  %v46 = vld [vmem:[%s0 + $0x48] sm:$0xf]
  %v47 = vld [vmem:[%s0 + $0x4c] sm:$0xf]
  %v48 = vld [vmem:[%s0 + $0x50] sm:$0xf]
  %v49 = vld [vmem:[%s0 + $0x54] sm:$0xf]
  %v50 = vld [vmem:[%s0 + $0x58] sm:$0xf]
  %v51 = vld [vmem:[%s0 + $0x5c] sm:$0xf]
  %v52 = vld [vmem:[%s0 + $0x60] sm:$0xf]
  %v53 = vld [vmem:[%s0 + $0x64] sm:$0xf]
  %v54 = vld [vmem:[%s0 + $0x68] sm:$0xf]
  %v55 = vld [vmem:[%s0 + $0x6c] sm:$0xf]
  %v56 = vld [vmem:[%s0 + $0x70] sm:$0xf]
  %v57 = vld [vmem:[%s0 + $0x74] sm:$0xf]
  %v58 = vld [vmem:[%s0 + $0x78] sm:$0xf]
  %v59 = vld [vmem:[%s0 + $0x7c] sm:$0xf]
  %v60 = vld [vmem:[%s0 + $0x80] sm:$0xf]
  %v61 = vld [vmem:[%s0 + $0x84] sm:$0xf]
  %v62 = vld [vmem:[%s0 + $0x88] sm:$0xf]
  %v63 = vld [vmem:[%s0 + $0x8c] sm:$0xf]
  %v64 = vld [vmem:[%s0 + $0x90] sm:$0xf]
  %v65 = vld [vmem:[%s0 + $0x94] sm:$0xf]
  %v66 = vld [vmem:[%s0 + $0x98] sm:$0xf]
  %v67 = vld [vmem:[%s0 + $0x9c] sm:$0xf]
  %v68 = vld [vmem:[%s0 + $0xa0] sm:$0xf]
  %v69 = vld [vmem:[%s0 + $0xa4] sm:$0xf]
  %v70 = vld [vmem:[%s0 + $0xa8] sm:$0xf]
  %v71 = vld [vmem:[%s0 + $0xac] sm:$0xf]
  %v72 = vld [vmem:[%s0 + $0xb0] sm:$0xf]
  %v73 = vld [vmem:[%s0 + $0xb4] sm:$0xf]
  %v74 = vld [vmem:[%s0 + $0xb8] sm:$0xf]
  %v75 = vld [vmem:[%s0 + $0xbc] sm:$0xf]
  %v76 = vld [vmem:[%s0 + $0xc0] sm:$0xf]
  %v77 = vld [vmem:[%s0 + $0xc4] sm:$0xf]
  %v78 = vld [vmem:[%s0 + $0xc8] sm:$0xf]
  %v79 = vld [vmem:[%s0 + $0xcc] sm:$0xf]
  %v80 = vld [vmem:[%s0 + $0xd0] sm:$0xf]
  %v81 = vld [vmem:[%s0 + $0xd4] sm:$0xf]
  %v82 = vld [vmem:[%s0 + $0xd8] sm:$0xf]
  %v83 = vld [vmem:[%s0 + $0xdc] sm:$0xf]
  %v84 = vld [vmem:[%s0 + $0xe0] sm:$0xf]
  %v85 = vld [vmem:[%s0 + $0xe4] sm:$0xf]
  %v86 = vld [vmem:[%s0 + $0xe8] sm:$0xf]
  %v87 = vld [vmem:[%s0 + $0xec] sm:$0xf]
  %v88 = vld [vmem:[%s0 + $0xf0] sm:$0xf]
  %v89 = vld [vmem:[%s0 + $0xf4] sm:$0xf]
  %v90 = vld [vmem:[%s0 + $0xf8] sm:$0xf]
  %v91 = vld [vmem:[%s0 + $0xfc] sm:$0xf]
  %v92 = vunpack.c.l.bf16 %v28
  %v93 = vunpack.c.l.bf16 %v29
  %v94 = vunpack.c.l.bf16 %v30
  %v95 = vunpack.c.l.bf16 %v31
  %v96 = vunpack.c.l.bf16 %v32
  %v97 = vunpack.c.l.bf16 %v33
  %v98 = vunpack.c.l.bf16 %v34
  %v99 = vunpack.c.l.bf16 %v35
  %v100 = vunpack.c.l.bf16 %v36
  %v101 = vunpack.c.l.bf16 %v37
  %v102 = vunpack.c.l.bf16 %v38
  %v103 = vunpack.c.l.bf16 %v39
  %v104 = vunpack.c.l.bf16 %v40
  %v105 = vunpack.c.l.bf16 %v41
  %v106 = vunpack.c.l.bf16 %v42
  %v107 = vunpack.c.l.bf16 %v43
  %v108 = vunpack.c.l.bf16 %v44
  %v109 = vunpack.c.l.bf16 %v45
  %v110 = vunpack.c.l.bf16 %v46
  %v111 = vunpack.c.l.bf16 %v47
  %v112 = vunpack.c.l.bf16 %v48
  %v113 = vunpack.c.l.bf16 %v49
  %v114 = vunpack.c.l.bf16 %v50
  %v115 = vunpack.c.l.bf16 %v51
  %v116 = vunpack.c.l.bf16 %v52
  %v117 = vunpack.c.l.bf16 %v53
  %v118 = vunpack.c.l.bf16 %v54
  %v119 = vunpack.c.l.bf16 %v55
  %v120 = vunpack.c.l.bf16 %v56
  %v121 = vunpack.c.l.bf16 %v57
  %v122 = vunpack.c.l.bf16 %v58
  %v123 = vunpack.c.l.bf16 %v59
  %v124 = vunpack.c.l.bf16 %v60
  %v125 = vunpack.c.l.bf16 %v61
  %v126 = vunpack.c.l.bf16 %v62
  %v127 = vunpack.c.l.bf16 %v63
  %v128 = vunpack.c.l.bf16 %v64
  %v129 = vunpack.c.l.bf16 %v65
  %v130 = vunpack.c.l.bf16 %v66
  %v131 = vunpack.c.l.bf16 %v67
  %v132 = vunpack.c.l.bf16 %v68
  %v133 = vunpack.c.l.bf16 %v69
  %v134 = vunpack.c.l.bf16 %v70
  %v135 = vunpack.c.l.bf16 %v71
  %v136 = vunpack.c.l.bf16 %v72
  %v137 = vunpack.c.l.bf16 %v73
  %v138 = vunpack.c.l.bf16 %v74
  %v139 = vunpack.c.l.bf16 %v75
  %v140 = vunpack.c.l.bf16 %v76
  %v141 = vunpack.c.l.bf16 %v77
  %v142 = vunpack.c.l.bf16 %v78
  %v143 = vunpack.c.l.bf16 %v79
  %v144 = vunpack.c.l.bf16 %v80
  %v145 = vunpack.c.l.bf16 %v81
  %v146 = vunpack.c.l.bf16 %v82
  %v147 = vunpack.c.l.bf16 %v83
  %v148 = vunpack.c.l.bf16 %v84
  %v149 = vunpack.c.l.bf16 %v85
  %v150 = vunpack.c.l.bf16 %v86
  %v151 = vunpack.c.l.bf16 %v87
  %v152 = vunpack.c.l.bf16 %v88
  %v153 = vunpack.c.l.bf16 %v89
  %v154 = vunpack.c.l.bf16 %v90
  %v155 = vunpack.c.l.bf16 %v91
  %v156 = vld [vmem:[%s1] sm:$0x1]
  %v158 = vperm.slane %v156, 0
  %v160 = vmul.f32 %v92, %v158
  %v161 = vmul.f32 %v93, %v158
  %v162 = vmul.f32 %v94, %v158
  %v163 = vmul.f32 %v95, %v158
  %v164 = vmul.f32 %v96, %v158
  %v165 = vmul.f32 %v97, %v158
  %v166 = vmul.f32 %v98, %v158
  %v167 = vmul.f32 %v99, %v158
  %v168 = vmul.f32 %v100, %v158
  %v169 = vmul.f32 %v101, %v158
  %v170 = vmul.f32 %v102, %v158
  %v171 = vmul.f32 %v103, %v158
  %v172 = vmul.f32 %v104, %v158
  %v173 = vmul.f32 %v105, %v158
  %v174 = vmul.f32 %v106, %v158
  %v175 = vmul.f32 %v107, %v158
  %v176 = vmul.f32 %v108, %v158
  %v177 = vmul.f32 %v109, %v158
  %v178 = vmul.f32 %v110, %v158
  %v179 = vmul.f32 %v111, %v158
  %v180 = vmul.f32 %v112, %v158
  %v181 = vmul.f32 %v113, %v158
  %v182 = vmul.f32 %v114, %v158
  %v183 = vmul.f32 %v115, %v158
  %v184 = vmul.f32 %v116, %v158
  %v185 = vmul.f32 %v117, %v158
  %v186 = vmul.f32 %v118, %v158
  %v187 = vmul.f32 %v119, %v158
  %v188 = vmul.f32 %v120, %v158
  %v189 = vmul.f32 %v121, %v158
  %v190 = vmul.f32 %v122, %v158
  %v191 = vmul.f32 %v123, %v158
  %v192 = vmul.f32 %v124, %v158
  %v193 = vmul.f32 %v125, %v158
  %v194 = vmul.f32 %v126, %v158
  %v195 = vmul.f32 %v127, %v158
  %v196 = vmul.f32 %v128, %v158
  %v197 = vmul.f32 %v129, %v158
  %v198 = vmul.f32 %v130, %v158
  %v199 = vmul.f32 %v131, %v158
  %v200 = vmul.f32 %v132, %v158
  %v201 = vmul.f32 %v133, %v158
  %v202 = vmul.f32 %v134, %v158
  %v203 = vmul.f32 %v135, %v158
  %v204 = vmul.f32 %v136, %v158
  %v205 = vmul.f32 %v137, %v158
  %v206 = vmul.f32 %v138, %v158
  %v207 = vmul.f32 %v139, %v158
  %v208 = vmul.f32 %v140, %v158
  %v209 = vmul.f32 %v141, %v158
  %v210 = vmul.f32 %v142, %v158
  %v211 = vmul.f32 %v143, %v158
  %v212 = vmul.f32 %v144, %v158
  %v213 = vmul.f32 %v145, %v158
  %v214 = vmul.f32 %v146, %v158
  %v215 = vmul.f32 %v147, %v158
  %v216 = vmul.f32 %v148, %v158
  %v217 = vmul.f32 %v149, %v158
  %v218 = vmul.f32 %v150, %v158
  %v219 = vmul.f32 %v151, %v158
  %v220 = vmul.f32 %v152, %v158
  %v221 = vmul.f32 %v153, %v158
  %v222 = vmul.f32 %v154, %v158
  %v223 = vmul.f32 %v155, %v158
  %v224 = vld [vmem:[%s2] sm:$0x1]
  %v226 = vperm.slane %v224, 0
  %v228 = vadd.f32 %v160, %v226
  %v229 = vadd.f32 %v161, %v226
  %v230 = vadd.f32 %v162, %v226
  %v231 = vadd.f32 %v163, %v226
  %v232 = vadd.f32 %v164, %v226
  %v233 = vadd.f32 %v165, %v226
  %v234 = vadd.f32 %v166, %v226
  %v235 = vadd.f32 %v167, %v226
  %v236 = vadd.f32 %v168, %v226
  %v237 = vadd.f32 %v169, %v226
  %v238 = vadd.f32 %v170, %v226
  %v239 = vadd.f32 %v171, %v226
  %v240 = vadd.f32 %v172, %v226
  %v241 = vadd.f32 %v173, %v226
  %v242 = vadd.f32 %v174, %v226
  %v243 = vadd.f32 %v175, %v226
  %v244 = vadd.f32 %v176, %v226
  %v245 = vadd.f32 %v177, %v226
  %v246 = vadd.f32 %v178, %v226
  %v247 = vadd.f32 %v179, %v226
  %v248 = vadd.f32 %v180, %v226
  %v249 = vadd.f32 %v181, %v226
  %v250 = vadd.f32 %v182, %v226
  %v251 = vadd.f32 %v183, %v226
  %v252 = vadd.f32 %v184, %v226
  %v253 = vadd.f32 %v185, %v226
  %v254 = vadd.f32 %v186, %v226
  %v255 = vadd.f32 %v187, %v226
  %v256 = vadd.f32 %v188, %v226
  %v257 = vadd.f32 %v189, %v226
  %v258 = vadd.f32 %v190, %v226
  %v259 = vadd.f32 %v191, %v226
  %v260 = vadd.f32 %v192, %v226
  %v261 = vadd.f32 %v193, %v226
  %v262 = vadd.f32 %v194, %v226
  %v263 = vadd.f32 %v195, %v226
  %v264 = vadd.f32 %v196, %v226
  %v265 = vadd.f32 %v197, %v226
  %v266 = vadd.f32 %v198, %v226
  %v267 = vadd.f32 %v199, %v226
  %v268 = vadd.f32 %v200, %v226
  %v269 = vadd.f32 %v201, %v226
  %v270 = vadd.f32 %v202, %v226
  %v271 = vadd.f32 %v203, %v226
  %v272 = vadd.f32 %v204, %v226
  %v273 = vadd.f32 %v205, %v226
  %v274 = vadd.f32 %v206, %v226
  %v275 = vadd.f32 %v207, %v226
  %v276 = vadd.f32 %v208, %v226
  %v277 = vadd.f32 %v209, %v226
  %v278 = vadd.f32 %v210, %v226
  %v279 = vadd.f32 %v211, %v226
  %v280 = vadd.f32 %v212, %v226
  %v281 = vadd.f32 %v213, %v226
  %v282 = vadd.f32 %v214, %v226
  %v283 = vadd.f32 %v215, %v226
  %v284 = vadd.f32 %v216, %v226
  %v285 = vadd.f32 %v217, %v226
  %v286 = vadd.f32 %v218, %v226
  %v287 = vadd.f32 %v219, %v226
  %v288 = vadd.f32 %v220, %v226
  %v289 = vadd.f32 %v221, %v226
  %v290 = vadd.f32 %v222, %v226
  %v291 = vadd.f32 %v223, %v226
  %v292 = vmax.f32 %v228, 0.0
  %v293 = vmax.f32 %v229, 0.0
  %v294 = vmax.f32 %v230, 0.0
  %v295 = vmax.f32 %v231, 0.0
  %v296 = vmax.f32 %v232, 0.0
  %v297 = vmax.f32 %v233, 0.0
  %v298 = vmax.f32 %v234, 0.0
  %v299 = vmax.f32 %v235, 0.0
  %v300 = vmax.f32 %v236, 0.0
  %v301 = vmax.f32 %v237, 0.0
  %v302 = vmax.f32 %v238, 0.0
  %v303 = vmax.f32 %v239, 0.0
  %v304 = vmax.f32 %v240, 0.0
  %v305 = vmax.f32 %v241, 0.0
  %v306 = vmax.f32 %v242, 0.0
  %v307 = vmax.f32 %v243, 0.0
  %v308 = vmax.f32 %v244, 0.0
  %v309 = vmax.f32 %v245, 0.0
  %v310 = vmax.f32 %v246, 0.0
  %v311 = vmax.f32 %v247, 0.0
  %v312 = vmax.f32 %v248, 0.0
  %v313 = vmax.f32 %v249, 0.0
  %v314 = vmax.f32 %v250, 0.0
  %v315 = vmax.f32 %v251, 0.0
  %v316 = vmax.f32 %v252, 0.0
  %v317 = vmax.f32 %v253, 0.0
  %v318 = vmax.f32 %v254, 0.0
  %v319 = vmax.f32 %v255, 0.0
  %v320 = vmax.f32 %v256, 0.0
  %v321 = vmax.f32 %v257, 0.0
  %v322 = vmax.f32 %v258, 0.0
  %v323 = vmax.f32 %v259, 0.0
  %v324 = vmax.f32 %v260, 0.0
  %v325 = vmax.f32 %v261, 0.0
  %v326 = vmax.f32 %v262, 0.0
  %v327 = vmax.f32 %v263, 0.0
  %v328 = vmax.f32 %v264, 0.0
  %v329 = vmax.f32 %v265, 0.0
  %v330 = vmax.f32 %v266, 0.0
  %v331 = vmax.f32 %v267, 0.0
  %v332 = vmax.f32 %v268, 0.0
  %v333 = vmax.f32 %v269, 0.0
  %v334 = vmax.f32 %v270, 0.0
  %v335 = vmax.f32 %v271, 0.0
  %v336 = vmax.f32 %v272, 0.0
  %v337 = vmax.f32 %v273, 0.0
  %v338 = vmax.f32 %v274, 0.0
  %v339 = vmax.f32 %v275, 0.0
  %v340 = vmax.f32 %v276, 0.0
  %v341 = vmax.f32 %v277, 0.0
  %v342 = vmax.f32 %v278, 0.0
  %v343 = vmax.f32 %v279, 0.0
  %v344 = vmax.f32 %v280, 0.0
  %v345 = vmax.f32 %v281, 0.0
  %v346 = vmax.f32 %v282, 0.0
  %v347 = vmax.f32 %v283, 0.0
  %v348 = vmax.f32 %v284, 0.0
  %v349 = vmax.f32 %v285, 0.0
  %v350 = vmax.f32 %v286, 0.0
  %v351 = vmax.f32 %v287, 0.0
  %v352 = vmax.f32 %v288, 0.0
  %v353 = vmax.f32 %v289, 0.0
  %v354 = vmax.f32 %v290, 0.0
  %v355 = vmax.f32 %v291, 0.0
  %v356 = vpack.c.bf16 %v293, %v292
  %v357 = vpack.c.bf16 %v295, %v294
  %v358 = vpack.c.bf16 %v297, %v296
  %v359 = vpack.c.bf16 %v299, %v298
  %v360 = vpack.c.bf16 %v301, %v300
  %v361 = vpack.c.bf16 %v303, %v302
  %v362 = vpack.c.bf16 %v305, %v304
  %v363 = vpack.c.bf16 %v307, %v306
  %v364 = vpack.c.bf16 %v309, %v308
  %v365 = vpack.c.bf16 %v311, %v310
  %v366 = vpack.c.bf16 %v313, %v312
  %v367 = vpack.c.bf16 %v315, %v314
  %v368 = vpack.c.bf16 %v317, %v316
  %v369 = vpack.c.bf16 %v319, %v318
  %v370 = vpack.c.bf16 %v321, %v320
  %v371 = vpack.c.bf16 %v323, %v322
  %v372 = vpack.c.bf16 %v325, %v324
  %v373 = vpack.c.bf16 %v327, %v326
  %v374 = vpack.c.bf16 %v329, %v328
  %v375 = vpack.c.bf16 %v331, %v330
  %v376 = vpack.c.bf16 %v333, %v332
  %v377 = vpack.c.bf16 %v335, %v334
  %v378 = vpack.c.bf16 %v337, %v336
  %v379 = vpack.c.bf16 %v339, %v338
  %v380 = vpack.c.bf16 %v341, %v340
  %v381 = vpack.c.bf16 %v343, %v342
  %v382 = vpack.c.bf16 %v345, %v344
  %v383 = vpack.c.bf16 %v347, %v346
  %v384 = vpack.c.bf16 %v349, %v348
  %v385 = vpack.c.bf16 %v351, %v350
  %v386 = vpack.c.bf16 %v353, %v352
  %v387 = vpack.c.bf16 %v355, %v354
  %v388 = vld [vmem:[%s3] sm:$0xf]
  %v389 = vld [vmem:[%s3 + $0x4] sm:$0xf]
  %v390 = vld [vmem:[%s3 + $0x8] sm:$0xf]
  %v394 = vunpack.c.l.b16 %v388
  %v395 = vunpack.c.l.b16 %v389
  %v396 = vunpack.c.l.b16 %v390
  %v397 = vpack.c.b16 %v395, %v394
  %v398 = vpack.c.b16 %v396, %v396
  %vm400 = vcmask 195584
  %v402 = vsel %vm400, %v356, 0
  %v405 = vsel %vm400, %v357, 0
  %v408 = vsel %vm400, %v358, 0
  %v411 = vsel %vm400, %v359, 0
  %v414 = vsel %vm400, %v360, 0
  %v417 = vsel %vm400, %v361, 0
  %v420 = vsel %vm400, %v362, 0
  %v423 = vsel %vm400, %v363, 0
  %v426 = vsel %vm400, %v364, 0
  %v429 = vsel %vm400, %v365, 0
  %v432 = vsel %vm400, %v366, 0
  %v435 = vsel %vm400, %v367, 0
  %v438 = vsel %vm400, %v368, 0
  %v441 = vsel %vm400, %v369, 0
  %v444 = vsel %vm400, %v370, 0
  %v447 = vsel %vm400, %v371, 0
  %v450 = vsel %vm400, %v372, 0
  %v453 = vsel %vm400, %v373, 0
  %v456 = vsel %vm400, %v374, 0
  %v459 = vsel %vm400, %v375, 0
  %v462 = vsel %vm400, %v376, 0
  %v465 = vsel %vm400, %v377, 0
  %v468 = vsel %vm400, %v378, 0
  %v471 = vsel %vm400, %v379, 0
  %v474 = vsel %vm400, %v380, 0
  %v477 = vsel %vm400, %v381, 0
  %v480 = vsel %vm400, %v382, 0
  %v483 = vsel %vm400, %v383, 0
  %v486 = vsel %vm400, %v384, 0
  %v489 = vsel %vm400, %v385, 0
  %v492 = vsel %vm400, %v386, 0
  %v495 = vsel %vm400, %v387, 0
  %vm497 = vcmask 1043456
  %v499 = vsel %vm497, %v398, 0
  %501 = vmatpush.bf16.msra.mxu0 0
  %502 = vmatpush.bf16.msra.mxu0 0
  %503 = vmatpush.bf16.msra.mxu0 0
  %504 = vmatpush.bf16.msra.mxu0 0
  %505 = vmatpush.bf16.msra.mxu0 0
  %506 = vmatpush.bf16.msra.mxu0 0
  %507 = vmatpush.bf16.msra.mxu0 %v499
  %508 = vmatpush.bf16.msra.mxu0 %v397
  %509 = vmatmul.bf16.gmra.mxu0 %v402
  %v510 = vpop.f32.mrf.mxu0
  %v511 = vadd.f32 0.0, %v510
  %v512 = vpop.f32.mrf.mxu0
  %v513 = vadd.f32 0.0, %v512
  %514 = vmatmul.bf16.gmra.mxu0 %v405
  %v515 = vpop.f32.mrf.mxu0
  %v516 = vadd.f32 0.0, %v515
  %v517 = vpop.f32.mrf.mxu0
  %v518 = vadd.f32 0.0, %v517
  %519 = vmatmul.bf16.gmra.mxu0 %v408
  %v520 = vpop.f32.mrf.mxu0
  %v521 = vadd.f32 0.0, %v520
  %v522 = vpop.f32.mrf.mxu0
  %v523 = vadd.f32 0.0, %v522
  %524 = vmatmul.bf16.gmra.mxu0 %v411
  %v525 = vpop.f32.mrf.mxu0
  %v526 = vadd.f32 0.0, %v525
  %v527 = vpop.f32.mrf.mxu0
  %v528 = vadd.f32 0.0, %v527
  %529 = vmatmul.bf16.gmra.mxu0 %v414
  %v530 = vpop.f32.mrf.mxu0
  %v531 = vadd.f32 0.0, %v530
  %v532 = vpop.f32.mrf.mxu0
  %v533 = vadd.f32 0.0, %v532
  %534 = vmatmul.bf16.gmra.mxu0 %v417
  %v535 = vpop.f32.mrf.mxu0
  %v536 = vadd.f32 0.0, %v535
  %v537 = vpop.f32.mrf.mxu0
  %v538 = vadd.f32 0.0, %v537
  %539 = vmatmul.bf16.gmra.mxu0 %v420
  %v540 = vpop.f32.mrf.mxu0
  %v541 = vadd.f32 0.0, %v540
  %v542 = vpop.f32.mrf.mxu0
  %v543 = vadd.f32 0.0, %v542
  %544 = vmatmul.bf16.gmra.mxu0 %v423
  %v545 = vpop.f32.mrf.mxu0
  %v546 = vadd.f32 0.0, %v545
  %v547 = vpop.f32.mrf.mxu0
  %v548 = vadd.f32 0.0, %v547
  %549 = vmatmul.bf16.gmra.mxu0 %v426
  %v550 = vpop.f32.mrf.mxu0
  %v551 = vadd.f32 0.0, %v550
  %v552 = vpop.f32.mrf.mxu0
  %v553 = vadd.f32 0.0, %v552
  %554 = vmatmul.bf16.gmra.mxu0 %v429
  %v555 = vpop.f32.mrf.mxu0
  %v556 = vadd.f32 0.0, %v555
  %v557 = vpop.f32.mrf.mxu0
  %v558 = vadd.f32 0.0, %v557
  %559 = vmatmul.bf16.gmra.mxu0 %v432
  %v560 = vpop.f32.mrf.mxu0
  %v561 = vadd.f32 0.0, %v560
  %v562 = vpop.f32.mrf.mxu0
  %v563 = vadd.f32 0.0, %v562
  %564 = vmatmul.bf16.gmra.mxu0 %v435
  %v565 = vpop.f32.mrf.mxu0
  %v566 = vadd.f32 0.0, %v565
  %v567 = vpop.f32.mrf.mxu0
  %v568 = vadd.f32 0.0, %v567
  %569 = vmatmul.bf16.gmra.mxu0 %v438
  %v570 = vpop.f32.mrf.mxu0
  %v571 = vadd.f32 0.0, %v570
  %v572 = vpop.f32.mrf.mxu0
  %v573 = vadd.f32 0.0, %v572
  %574 = vmatmul.bf16.gmra.mxu0 %v441
  %v575 = vpop.f32.mrf.mxu0
  %v576 = vadd.f32 0.0, %v575
  %v577 = vpop.f32.mrf.mxu0
  %v578 = vadd.f32 0.0, %v577
  %579 = vmatmul.bf16.gmra.mxu0 %v444
  %v580 = vpop.f32.mrf.mxu0
  %v581 = vadd.f32 0.0, %v580
  %v582 = vpop.f32.mrf.mxu0
  %v583 = vadd.f32 0.0, %v582
  %584 = vmatmul.bf16.gmra.mxu0 %v447
  %v585 = vpop.f32.mrf.mxu0
  %v586 = vadd.f32 0.0, %v585
  %v587 = vpop.f32.mrf.mxu0
  %v588 = vadd.f32 0.0, %v587
  %589 = vmatmul.bf16.gmra.mxu0 %v450
  %v590 = vpop.f32.mrf.mxu0
  %v591 = vadd.f32 0.0, %v590
  %v592 = vpop.f32.mrf.mxu0
  %v593 = vadd.f32 0.0, %v592
  %594 = vmatmul.bf16.gmra.mxu0 %v453
  %v595 = vpop.f32.mrf.mxu0
  %v596 = vadd.f32 0.0, %v595
  %v597 = vpop.f32.mrf.mxu0
  %v598 = vadd.f32 0.0, %v597
  %599 = vmatmul.bf16.gmra.mxu0 %v456
  %v600 = vpop.f32.mrf.mxu0
  %v601 = vadd.f32 0.0, %v600
  %v602 = vpop.f32.mrf.mxu0
  %v603 = vadd.f32 0.0, %v602
  %604 = vmatmul.bf16.gmra.mxu0 %v459
  %v605 = vpop.f32.mrf.mxu0
  %v606 = vadd.f32 0.0, %v605
  %v607 = vpop.f32.mrf.mxu0
  %v608 = vadd.f32 0.0, %v607
  %609 = vmatmul.bf16.gmra.mxu0 %v462
  %v610 = vpop.f32.mrf.mxu0
  %v611 = vadd.f32 0.0, %v610
  %v612 = vpop.f32.mrf.mxu0
  %v613 = vadd.f32 0.0, %v612
  %614 = vmatmul.bf16.gmra.mxu0 %v465
  %v615 = vpop.f32.mrf.mxu0
  %v616 = vadd.f32 0.0, %v615
  %v617 = vpop.f32.mrf.mxu0
  %v618 = vadd.f32 0.0, %v617
  %619 = vmatmul.bf16.gmra.mxu0 %v468
  %v620 = vpop.f32.mrf.mxu0
  %v621 = vadd.f32 0.0, %v620
  %v622 = vpop.f32.mrf.mxu0
  %v623 = vadd.f32 0.0, %v622
  %624 = vmatmul.bf16.gmra.mxu0 %v471
  %v625 = vpop.f32.mrf.mxu0
  %v626 = vadd.f32 0.0, %v625
  %v627 = vpop.f32.mrf.mxu0
  %v628 = vadd.f32 0.0, %v627
  %629 = vmatmul.bf16.gmra.mxu0 %v474
  %v630 = vpop.f32.mrf.mxu0
  %v631 = vadd.f32 0.0, %v630
  %v632 = vpop.f32.mrf.mxu0
  %v633 = vadd.f32 0.0, %v632
  %634 = vmatmul.bf16.gmra.mxu0 %v477
  %v635 = vpop.f32.mrf.mxu0
  %v636 = vadd.f32 0.0, %v635
  %v637 = vpop.f32.mrf.mxu0
  %v638 = vadd.f32 0.0, %v637
  %639 = vmatmul.bf16.gmra.mxu0 %v480
  %v640 = vpop.f32.mrf.mxu0
  %v641 = vadd.f32 0.0, %v640
  %v642 = vpop.f32.mrf.mxu0
  %v643 = vadd.f32 0.0, %v642
  %644 = vmatmul.bf16.gmra.mxu0 %v483
  %v645 = vpop.f32.mrf.mxu0
  %v646 = vadd.f32 0.0, %v645
  %v647 = vpop.f32.mrf.mxu0
  %v648 = vadd.f32 0.0, %v647
  %649 = vmatmul.bf16.gmra.mxu0 %v486
  %v650 = vpop.f32.mrf.mxu0
  %v651 = vadd.f32 0.0, %v650
  %v652 = vpop.f32.mrf.mxu0
  %v653 = vadd.f32 0.0, %v652
  %654 = vmatmul.bf16.gmra.mxu0 %v489
  %v655 = vpop.f32.mrf.mxu0
  %v656 = vadd.f32 0.0, %v655
  %v657 = vpop.f32.mrf.mxu0
  %v658 = vadd.f32 0.0, %v657
  %659 = vmatmul.bf16.gmra.mxu0 %v492
  %v660 = vpop.f32.mrf.mxu0
  %v661 = vadd.f32 0.0, %v660
  %v662 = vpop.f32.mrf.mxu0
  %v663 = vadd.f32 0.0, %v662
  %664 = vmatmul.bf16.gmra.mxu0 %v495
  %v665 = vpop.f32.mrf.mxu0
  %v666 = vadd.f32 0.0, %v665
  %v667 = vpop.f32.mrf.mxu0
  %v668 = vadd.f32 0.0, %v667
  %669 = vdwg.mxu0
  %v670 = vpack.c.bf16 %v511, %v511
  %v671 = vpack.c.bf16 %v513, %v513
  %v672 = vpack.c.bf16 %v516, %v516
  %v673 = vpack.c.bf16 %v518, %v518
  %v674 = vpack.c.bf16 %v521, %v521
  %v675 = vpack.c.bf16 %v523, %v523
  %v676 = vpack.c.bf16 %v526, %v526
  %v677 = vpack.c.bf16 %v528, %v528
  %v678 = vpack.c.bf16 %v531, %v531
  %v679 = vpack.c.bf16 %v533, %v533
  %v680 = vpack.c.bf16 %v536, %v536
  %v681 = vpack.c.bf16 %v538, %v538
  %v682 = vpack.c.bf16 %v541, %v541
  %v683 = vpack.c.bf16 %v543, %v543
  %v684 = vpack.c.bf16 %v546, %v546
  %v685 = vpack.c.bf16 %v548, %v548
  %v686 = vpack.c.bf16 %v551, %v551
  %v687 = vpack.c.bf16 %v553, %v553
  %v688 = vpack.c.bf16 %v556, %v556
  %v689 = vpack.c.bf16 %v558, %v558
  %v690 = vpack.c.bf16 %v561, %v561
  %v691 = vpack.c.bf16 %v563, %v563
  %v692 = vpack.c.bf16 %v566, %v566
  %v693 = vpack.c.bf16 %v568, %v568
  %v694 = vpack.c.bf16 %v571, %v571
  %v695 = vpack.c.bf16 %v573, %v573
  %v696 = vpack.c.bf16 %v576, %v576
  %v697 = vpack.c.bf16 %v578, %v578
  %v698 = vpack.c.bf16 %v581, %v581
  %v699 = vpack.c.bf16 %v583, %v583
  %v700 = vpack.c.bf16 %v586, %v586
  %v701 = vpack.c.bf16 %v588, %v588
  %v702 = vpack.c.bf16 %v591, %v591
  %v703 = vpack.c.bf16 %v593, %v593
  %v704 = vpack.c.bf16 %v596, %v596
  %v705 = vpack.c.bf16 %v598, %v598
  %v706 = vpack.c.bf16 %v601, %v601
  %v707 = vpack.c.bf16 %v603, %v603
  %v708 = vpack.c.bf16 %v606, %v606
  %v709 = vpack.c.bf16 %v608, %v608
  %v710 = vpack.c.bf16 %v611, %v611
  %v711 = vpack.c.bf16 %v613, %v613
  %v712 = vpack.c.bf16 %v616, %v616
  %v713 = vpack.c.bf16 %v618, %v618
  %v714 = vpack.c.bf16 %v621, %v621
  %v715 = vpack.c.bf16 %v623, %v623
  %v716 = vpack.c.bf16 %v626, %v626
  %v717 = vpack.c.bf16 %v628, %v628
  %v718 = vpack.c.bf16 %v631, %v631
  %v719 = vpack.c.bf16 %v633, %v633
  %v720 = vpack.c.bf16 %v636, %v636
  %v721 = vpack.c.bf16 %v638, %v638
  %v722 = vpack.c.bf16 %v641, %v641
  %v723 = vpack.c.bf16 %v643, %v643
  %v724 = vpack.c.bf16 %v646, %v646
  %v725 = vpack.c.bf16 %v648, %v648
  %v726 = vpack.c.bf16 %v651, %v651
  %v727 = vpack.c.bf16 %v653, %v653
  %v728 = vpack.c.bf16 %v656, %v656
  %v729 = vpack.c.bf16 %v658, %v658
  %v730 = vpack.c.bf16 %v661, %v661
  %v731 = vpack.c.bf16 %v663, %v663
  %v732 = vpack.c.bf16 %v666, %v666
  %v733 = vpack.c.bf16 %v668, %v668
  %vm734 = vcmask 125952
  %735 = vst.msk [vmem:[%s4] sm:$0xf] %vm734, %v670
  %736 = vst.msk [vmem:[%s4 + $0x4] sm:$0xf] %vm734, %v671
  %737 = vst.msk [vmem:[%s4 + $0x8] sm:$0xf] %vm734, %v672
  %738 = vst.msk [vmem:[%s4 + $0xc] sm:$0xf] %vm734, %v673
  %739 = vst.msk [vmem:[%s4 + $0x10] sm:$0xf] %vm734, %v674
  %740 = vst.msk [vmem:[%s4 + $0x14] sm:$0xf] %vm734, %v675
  %741 = vst.msk [vmem:[%s4 + $0x18] sm:$0xf] %vm734, %v676
  %742 = vst.msk [vmem:[%s4 + $0x1c] sm:$0xf] %vm734, %v677
  %743 = vst.msk [vmem:[%s4 + $0x20] sm:$0xf] %vm734, %v678
  %744 = vst.msk [vmem:[%s4 + $0x24] sm:$0xf] %vm734, %v679
  %745 = vst.msk [vmem:[%s4 + $0x28] sm:$0xf] %vm734, %v680
  %746 = vst.msk [vmem:[%s4 + $0x2c] sm:$0xf] %vm734, %v681
  %747 = vst.msk [vmem:[%s4 + $0x30] sm:$0xf] %vm734, %v682
  %748 = vst.msk [vmem:[%s4 + $0x34] sm:$0xf] %vm734, %v683
  %749 = vst.msk [vmem:[%s4 + $0x38] sm:$0xf] %vm734, %v684
  %750 = vst.msk [vmem:[%s4 + $0x3c] sm:$0xf] %vm734, %v685
  %751 = vst.msk [vmem:[%s4 + $0x40] sm:$0xf] %vm734, %v686
  %752 = vst.msk [vmem:[%s4 + $0x44] sm:$0xf] %vm734, %v687
  %753 = vst.msk [vmem:[%s4 + $0x48] sm:$0xf] %vm734, %v688
  %754 = vst.msk [vmem:[%s4 + $0x4c] sm:$0xf] %vm734, %v689
  %755 = vst.msk [vmem:[%s4 + $0x50] sm:$0xf] %vm734, %v690
  %756 = vst.msk [vmem:[%s4 + $0x54] sm:$0xf] %vm734, %v691
  %757 = vst.msk [vmem:[%s4 + $0x58] sm:$0xf] %vm734, %v692
  %758 = vst.msk [vmem:[%s4 + $0x5c] sm:$0xf] %vm734, %v693
  %759 = vst.msk [vmem:[%s4 + $0x60] sm:$0xf] %vm734, %v694
  %760 = vst.msk [vmem:[%s4 + $0x64] sm:$0xf] %vm734, %v695
  %761 = vst.msk [vmem:[%s4 + $0x68] sm:$0xf] %vm734, %v696
  %762 = vst.msk [vmem:[%s4 + $0x6c] sm:$0xf] %vm734, %v697
  %763 = vst.msk [vmem:[%s4 + $0x70] sm:$0xf] %vm734, %v698
  %764 = vst.msk [vmem:[%s4 + $0x74] sm:$0xf] %vm734, %v699
  %765 = vst.msk [vmem:[%s4 + $0x78] sm:$0xf] %vm734, %v700
  %766 = vst.msk [vmem:[%s4 + $0x7c] sm:$0xf] %vm734, %v701
  %767 = vst.msk [vmem:[%s4 + $0x80] sm:$0xf] %vm734, %v702
  %768 = vst.msk [vmem:[%s4 + $0x84] sm:$0xf] %vm734, %v703
  %769 = vst.msk [vmem:[%s4 + $0x88] sm:$0xf] %vm734, %v704
  %770 = vst.msk [vmem:[%s4 + $0x8c] sm:$0xf] %vm734, %v705
  %771 = vst.msk [vmem:[%s4 + $0x90] sm:$0xf] %vm734, %v706
  %772 = vst.msk [vmem:[%s4 + $0x94] sm:$0xf] %vm734, %v707
  %773 = vst.msk [vmem:[%s4 + $0x98] sm:$0xf] %vm734, %v708
  %774 = vst.msk [vmem:[%s4 + $0x9c] sm:$0xf] %vm734, %v709
  %775 = vst.msk [vmem:[%s4 + $0xa0] sm:$0xf] %vm734, %v710
  %776 = vst.msk [vmem:[%s4 + $0xa4] sm:$0xf] %vm734, %v711
  %777 = vst.msk [vmem:[%s4 + $0xa8] sm:$0xf] %vm734, %v712
  %778 = vst.msk [vmem:[%s4 + $0xac] sm:$0xf] %vm734, %v713
  %779 = vst.msk [vmem:[%s4 + $0xb0] sm:$0xf] %vm734, %v714
  %780 = vst.msk [vmem:[%s4 + $0xb4] sm:$0xf] %vm734, %v715
  %781 = vst.msk [vmem:[%s4 + $0xb8] sm:$0xf] %vm734, %v716
  %782 = vst.msk [vmem:[%s4 + $0xbc] sm:$0xf] %vm734, %v717
  %783 = vst.msk [vmem:[%s4 + $0xc0] sm:$0xf] %vm734, %v718
  %784 = vst.msk [vmem:[%s4 + $0xc4] sm:$0xf] %vm734, %v719
  %785 = vst.msk [vmem:[%s4 + $0xc8] sm:$0xf] %vm734, %v720
  %786 = vst.msk [vmem:[%s4 + $0xcc] sm:$0xf] %vm734, %v721
  %787 = vst.msk [vmem:[%s4 + $0xd0] sm:$0xf] %vm734, %v722
  %788 = vst.msk [vmem:[%s4 + $0xd4] sm:$0xf] %vm734, %v723
  %789 = vst.msk [vmem:[%s4 + $0xd8] sm:$0xf] %vm734, %v724
  %790 = vst.msk [vmem:[%s4 + $0xdc] sm:$0xf] %vm734, %v725
  %791 = vst.msk [vmem:[%s4 + $0xe0] sm:$0xf] %vm734, %v726
  %792 = vst.msk [vmem:[%s4 + $0xe4] sm:$0xf] %vm734, %v727
  %793 = vst.msk [vmem:[%s4 + $0xe8] sm:$0xf] %vm734, %v728
  %794 = vst.msk [vmem:[%s4 + $0xec] sm:$0xf] %vm734, %v729
  %795 = vst.msk [vmem:[%s4 + $0xf0] sm:$0xf] %vm734, %v730
  %796 = vst.msk [vmem:[%s4 + $0xf4] sm:$0xf] %vm734, %v731
  %797 = vst.msk [vmem:[%s4 + $0xf8] sm:$0xf] %vm734, %v732
  %798 = vst.msk [vmem:[%s4 + $0xfc] sm:$0xf] %vm734, %v733
  %v799 = vld [vmem:[%s5] sm:$0x1]
  %vm800 = vcmask 130048
  %v801 = vsel %vm800, %v511, 0.0
  %v802 = vsel %vm800, %v513, 0.0
  %v803 = vadd.f32 %v801, %v802
  %v804 = vsel %vm800, %v516, 0.0
  %v805 = vadd.f32 %v803, %v804
  %v806 = vsel %vm800, %v518, 0.0
  %v807 = vadd.f32 %v805, %v806
  %v808 = vsel %vm800, %v521, 0.0
  %v809 = vadd.f32 %v807, %v808
  %v810 = vsel %vm800, %v523, 0.0
  %v811 = vadd.f32 %v809, %v810
  %v812 = vsel %vm800, %v526, 0.0
  %v813 = vadd.f32 %v811, %v812
  %v814 = vsel %vm800, %v528, 0.0
  %v815 = vadd.f32 %v813, %v814
  %v816 = vsel %vm800, %v531, 0.0
  %v817 = vadd.f32 %v815, %v816
  %v818 = vsel %vm800, %v533, 0.0
  %v819 = vadd.f32 %v817, %v818
  %v820 = vsel %vm800, %v536, 0.0
  %v821 = vadd.f32 %v819, %v820
  %v822 = vsel %vm800, %v538, 0.0
  %v823 = vadd.f32 %v821, %v822
  %v824 = vsel %vm800, %v541, 0.0
  %v825 = vadd.f32 %v823, %v824
  %v826 = vsel %vm800, %v543, 0.0
  %v827 = vadd.f32 %v825, %v826
  %v828 = vsel %vm800, %v546, 0.0
  %v829 = vadd.f32 %v827, %v828
  %v830 = vsel %vm800, %v548, 0.0
  %v831 = vadd.f32 %v829, %v830
  %v832 = vsel %vm800, %v551, 0.0
  %v833 = vadd.f32 %v831, %v832
  %v834 = vsel %vm800, %v553, 0.0
  %v835 = vadd.f32 %v833, %v834
  %v836 = vsel %vm800, %v556, 0.0
  %v837 = vadd.f32 %v835, %v836
  %v838 = vsel %vm800, %v558, 0.0
  %v839 = vadd.f32 %v837, %v838
  %v840 = vsel %vm800, %v561, 0.0
  %v841 = vadd.f32 %v839, %v840
  %v842 = vsel %vm800, %v563, 0.0
  %v843 = vadd.f32 %v841, %v842
  %v844 = vsel %vm800, %v566, 0.0
  %v845 = vadd.f32 %v843, %v844
  %v846 = vsel %vm800, %v568, 0.0
  %v847 = vadd.f32 %v845, %v846
  %v848 = vsel %vm800, %v571, 0.0
  %v849 = vadd.f32 %v847, %v848
  %v850 = vsel %vm800, %v573, 0.0
  %v851 = vadd.f32 %v849, %v850
  %v852 = vsel %vm800, %v576, 0.0
  %v853 = vadd.f32 %v851, %v852
  %v854 = vsel %vm800, %v578, 0.0
  %v855 = vadd.f32 %v853, %v854
  %v856 = vsel %vm800, %v581, 0.0
  %v857 = vadd.f32 %v855, %v856
  %v858 = vsel %vm800, %v583, 0.0
  %v859 = vadd.f32 %v857, %v858
  %v860 = vsel %vm800, %v586, 0.0
  %v861 = vadd.f32 %v859, %v860
  %v862 = vsel %vm800, %v588, 0.0
  %v863 = vadd.f32 %v861, %v862
  %v864 = vsel %vm800, %v591, 0.0
  %v865 = vadd.f32 %v863, %v864
  %v866 = vsel %vm800, %v593, 0.0
  %v867 = vadd.f32 %v865, %v866
  %v868 = vsel %vm800, %v596, 0.0
  %v869 = vadd.f32 %v867, %v868
  %v870 = vsel %vm800, %v598, 0.0
  %v871 = vadd.f32 %v869, %v870
  %v872 = vsel %vm800, %v601, 0.0
  %v873 = vadd.f32 %v871, %v872
  %v874 = vsel %vm800, %v603, 0.0
  %v875 = vadd.f32 %v873, %v874
  %v876 = vsel %vm800, %v606, 0.0
  %v877 = vadd.f32 %v875, %v876
  %v878 = vsel %vm800, %v608, 0.0
  %v879 = vadd.f32 %v877, %v878
  %v880 = vsel %vm800, %v611, 0.0
  %v881 = vadd.f32 %v879, %v880
  %v882 = vsel %vm800, %v613, 0.0
  %v883 = vadd.f32 %v881, %v882
  %v884 = vsel %vm800, %v616, 0.0
  %v885 = vadd.f32 %v883, %v884
  %v886 = vsel %vm800, %v618, 0.0
  %v887 = vadd.f32 %v885, %v886
  %v888 = vsel %vm800, %v621, 0.0
  %v889 = vadd.f32 %v887, %v888
  %v890 = vsel %vm800, %v623, 0.0
  %v891 = vadd.f32 %v889, %v890
  %v892 = vsel %vm800, %v626, 0.0
  %v893 = vadd.f32 %v891, %v892
  %v894 = vsel %vm800, %v628, 0.0
  %v895 = vadd.f32 %v893, %v894
  %v896 = vsel %vm800, %v631, 0.0
  %v897 = vadd.f32 %v895, %v896
  %v898 = vsel %vm800, %v633, 0.0
  %v899 = vadd.f32 %v897, %v898
  %v900 = vsel %vm800, %v636, 0.0
  %v901 = vadd.f32 %v899, %v900
  %v902 = vsel %vm800, %v638, 0.0
  %v903 = vadd.f32 %v901, %v902
  %v904 = vsel %vm800, %v641, 0.0
  %v905 = vadd.f32 %v903, %v904
  %v906 = vsel %vm800, %v643, 0.0
  %v907 = vadd.f32 %v905, %v906
  %v908 = vsel %vm800, %v646, 0.0
  %v909 = vadd.f32 %v907, %v908
  %v910 = vsel %vm800, %v648, 0.0
  %v911 = vadd.f32 %v909, %v910
  %v912 = vsel %vm800, %v651, 0.0
  %v913 = vadd.f32 %v911, %v912
  %v914 = vsel %vm800, %v653, 0.0
  %v915 = vadd.f32 %v913, %v914
  %v916 = vsel %vm800, %v656, 0.0
  %v917 = vadd.f32 %v915, %v916
  %v918 = vsel %vm800, %v658, 0.0
  %v919 = vadd.f32 %v917, %v918
  %v920 = vsel %vm800, %v661, 0.0
  %v921 = vadd.f32 %v919, %v920
  %v922 = vsel %vm800, %v663, 0.0
  %v923 = vadd.f32 %v921, %v922
  %v924 = vsel %vm800, %v666, 0.0
  %v925 = vadd.f32 %v923, %v924
  %v926 = vsel %vm800, %v668, 0.0
  %v927 = vadd.f32 %v925, %v926
  %v928 = vrot.slane %v927, 4
  %v929 = vadd.f32 %v927, %v928
  %v930 = vrot.slane %v929, 2
  %v931 = vadd.f32 %v929, %v930
  %v932 = vrot.slane %v931, 1
  %v933 = vadd.f32 %v931, %v932
  %v934 = vadd.f32 %v799, %v933
  %vm935 = vcmask 122880
  %936 = vst.msk [vmem:[%s5] sm:$0x1] %vm935, %v934
  %v937 = vld [vmem:[%s6] sm:$0x1]
  %v938 = vmul.f32 %v511, %v511
  %v939 = vmul.f32 %v513, %v513
  %v940 = vmul.f32 %v516, %v516
  %v941 = vmul.f32 %v518, %v518
  %v942 = vmul.f32 %v521, %v521
  %v943 = vmul.f32 %v523, %v523
  %v944 = vmul.f32 %v526, %v526
  %v945 = vmul.f32 %v528, %v528
  %v946 = vmul.f32 %v531, %v531
  %v947 = vmul.f32 %v533, %v533
  %v948 = vmul.f32 %v536, %v536
  %v949 = vmul.f32 %v538, %v538
  %v950 = vmul.f32 %v541, %v541
  %v951 = vmul.f32 %v543, %v543
  %v952 = vmul.f32 %v546, %v546
  %v953 = vmul.f32 %v548, %v548
  %v954 = vmul.f32 %v551, %v551
  %v955 = vmul.f32 %v553, %v553
  %v956 = vmul.f32 %v556, %v556
  %v957 = vmul.f32 %v558, %v558
  %v958 = vmul.f32 %v561, %v561
  %v959 = vmul.f32 %v563, %v563
  %v960 = vmul.f32 %v566, %v566
  %v961 = vmul.f32 %v568, %v568
  %v962 = vmul.f32 %v571, %v571
  %v963 = vmul.f32 %v573, %v573
  %v964 = vmul.f32 %v576, %v576
  %v965 = vmul.f32 %v578, %v578
  %v966 = vmul.f32 %v581, %v581
  %v967 = vmul.f32 %v583, %v583
  %v968 = vmul.f32 %v586, %v586
  %v969 = vmul.f32 %v588, %v588
  %v970 = vmul.f32 %v591, %v591
  %v971 = vmul.f32 %v593, %v593
  %v972 = vmul.f32 %v596, %v596
  %v973 = vmul.f32 %v598, %v598
  %v974 = vmul.f32 %v601, %v601
  %v975 = vmul.f32 %v603, %v603
  %v976 = vmul.f32 %v606, %v606
  %v977 = vmul.f32 %v608, %v608
  %v978 = vmul.f32 %v611, %v611
  %v979 = vmul.f32 %v613, %v613
  %v980 = vmul.f32 %v616, %v616
  %v981 = vmul.f32 %v618, %v618
  %v982 = vmul.f32 %v621, %v621
  %v983 = vmul.f32 %v623, %v623
  %v984 = vmul.f32 %v626, %v626
  %v985 = vmul.f32 %v628, %v628
  %v986 = vmul.f32 %v631, %v631
  %v987 = vmul.f32 %v633, %v633
  %v988 = vmul.f32 %v636, %v636
  %v989 = vmul.f32 %v638, %v638
  %v990 = vmul.f32 %v641, %v641
  %v991 = vmul.f32 %v643, %v643
  %v992 = vmul.f32 %v646, %v646
  %v993 = vmul.f32 %v648, %v648
  %v994 = vmul.f32 %v651, %v651
  %v995 = vmul.f32 %v653, %v653
  %v996 = vmul.f32 %v656, %v656
  %v997 = vmul.f32 %v658, %v658
  %v998 = vmul.f32 %v661, %v661
  %v999 = vmul.f32 %v663, %v663
  %v1000 = vmul.f32 %v666, %v666
  %v1001 = vmul.f32 %v668, %v668
  %v1002 = vsel %vm800, %v938, 0.0
  %v1003 = vsel %vm800, %v939, 0.0
  %v1004 = vadd.f32 %v1002, %v1003
  %v1005 = vsel %vm800, %v940, 0.0
  %v1006 = vadd.f32 %v1004, %v1005
  %v1007 = vsel %vm800, %v941, 0.0
  %v1008 = vadd.f32 %v1006, %v1007
  %v1009 = vsel %vm800, %v942, 0.0
  %v1010 = vadd.f32 %v1008, %v1009
  %v1011 = vsel %vm800, %v943, 0.0
  %v1012 = vadd.f32 %v1010, %v1011
  %v1013 = vsel %vm800, %v944, 0.0
  %v1014 = vadd.f32 %v1012, %v1013
  %v1015 = vsel %vm800, %v945, 0.0
  %v1016 = vadd.f32 %v1014, %v1015
  %v1017 = vsel %vm800, %v946, 0.0
  %v1018 = vadd.f32 %v1016, %v1017
  %v1019 = vsel %vm800, %v947, 0.0
  %v1020 = vadd.f32 %v1018, %v1019
  %v1021 = vsel %vm800, %v948, 0.0
  %v1022 = vadd.f32 %v1020, %v1021
  %v1023 = vsel %vm800, %v949, 0.0
  %v1024 = vadd.f32 %v1022, %v1023
  %v1025 = vsel %vm800, %v950, 0.0
  %v1026 = vadd.f32 %v1024, %v1025
  %v1027 = vsel %vm800, %v951, 0.0
  %v1028 = vadd.f32 %v1026, %v1027
  %v1029 = vsel %vm800, %v952, 0.0
  %v1030 = vadd.f32 %v1028, %v1029
  %v1031 = vsel %vm800, %v953, 0.0
  %v1032 = vadd.f32 %v1030, %v1031
  %v1033 = vsel %vm800, %v954, 0.0
  %v1034 = vadd.f32 %v1032, %v1033
  %v1035 = vsel %vm800, %v955, 0.0
  %v1036 = vadd.f32 %v1034, %v1035
  %v1037 = vsel %vm800, %v956, 0.0
  %v1038 = vadd.f32 %v1036, %v1037
  %v1039 = vsel %vm800, %v957, 0.0
  %v1040 = vadd.f32 %v1038, %v1039
  %v1041 = vsel %vm800, %v958, 0.0
  %v1042 = vadd.f32 %v1040, %v1041
  %v1043 = vsel %vm800, %v959, 0.0
  %v1044 = vadd.f32 %v1042, %v1043
  %v1045 = vsel %vm800, %v960, 0.0
  %v1046 = vadd.f32 %v1044, %v1045
  %v1047 = vsel %vm800, %v961, 0.0
  %v1048 = vadd.f32 %v1046, %v1047
  %v1049 = vsel %vm800, %v962, 0.0
  %v1050 = vadd.f32 %v1048, %v1049
  %v1051 = vsel %vm800, %v963, 0.0
  %v1052 = vadd.f32 %v1050, %v1051
  %v1053 = vsel %vm800, %v964, 0.0
  %v1054 = vadd.f32 %v1052, %v1053
  %v1055 = vsel %vm800, %v965, 0.0
  %v1056 = vadd.f32 %v1054, %v1055
  %v1057 = vsel %vm800, %v966, 0.0
  %v1058 = vadd.f32 %v1056, %v1057
  %v1059 = vsel %vm800, %v967, 0.0
  %v1060 = vadd.f32 %v1058, %v1059
  %v1061 = vsel %vm800, %v968, 0.0
  %v1062 = vadd.f32 %v1060, %v1061
  %v1063 = vsel %vm800, %v969, 0.0
  %v1064 = vadd.f32 %v1062, %v1063
  %v1065 = vsel %vm800, %v970, 0.0
  %v1066 = vadd.f32 %v1064, %v1065
  %v1067 = vsel %vm800, %v971, 0.0
  %v1068 = vadd.f32 %v1066, %v1067
  %v1069 = vsel %vm800, %v972, 0.0
  %v1070 = vadd.f32 %v1068, %v1069
  %v1071 = vsel %vm800, %v973, 0.0
  %v1072 = vadd.f32 %v1070, %v1071
  %v1073 = vsel %vm800, %v974, 0.0
  %v1074 = vadd.f32 %v1072, %v1073
  %v1075 = vsel %vm800, %v975, 0.0
  %v1076 = vadd.f32 %v1074, %v1075
  %v1077 = vsel %vm800, %v976, 0.0
  %v1078 = vadd.f32 %v1076, %v1077
  %v1079 = vsel %vm800, %v977, 0.0
  %v1080 = vadd.f32 %v1078, %v1079
  %v1081 = vsel %vm800, %v978, 0.0
  %v1082 = vadd.f32 %v1080, %v1081
  %v1083 = vsel %vm800, %v979, 0.0
  %v1084 = vadd.f32 %v1082, %v1083
  %v1085 = vsel %vm800, %v980, 0.0
  %v1086 = vadd.f32 %v1084, %v1085
  %v1087 = vsel %vm800, %v981, 0.0
  %v1088 = vadd.f32 %v1086, %v1087
  %v1089 = vsel %vm800, %v982, 0.0
  %v1090 = vadd.f32 %v1088, %v1089
  %v1091 = vsel %vm800, %v983, 0.0
  %v1092 = vadd.f32 %v1090, %v1091
  %v1093 = vsel %vm800, %v984, 0.0
  %v1094 = vadd.f32 %v1092, %v1093
  %v1095 = vsel %vm800, %v985, 0.0
  %v1096 = vadd.f32 %v1094, %v1095
  %v1097 = vsel %vm800, %v986, 0.0
  %v1098 = vadd.f32 %v1096, %v1097
  %v1099 = vsel %vm800, %v987, 0.0
  %v1100 = vadd.f32 %v1098, %v1099
  %v1101 = vsel %vm800, %v988, 0.0
  %v1102 = vadd.f32 %v1100, %v1101
  %v1103 = vsel %vm800, %v989, 0.0
  %v1104 = vadd.f32 %v1102, %v1103
  %v1105 = vsel %vm800, %v990, 0.0
  %v1106 = vadd.f32 %v1104, %v1105
  %v1107 = vsel %vm800, %v991, 0.0
  %v1108 = vadd.f32 %v1106, %v1107
  %v1109 = vsel %vm800, %v992, 0.0
  %v1110 = vadd.f32 %v1108, %v1109
  %v1111 = vsel %vm800, %v993, 0.0
  %v1112 = vadd.f32 %v1110, %v1111
  %v1113 = vsel %vm800, %v994, 0.0
  %v1114 = vadd.f32 %v1112, %v1113
  %v1115 = vsel %vm800, %v995, 0.0
  %v1116 = vadd.f32 %v1114, %v1115
  %v1117 = vsel %vm800, %v996, 0.0
  %v1118 = vadd.f32 %v1116, %v1117
  %v1119 = vsel %vm800, %v997, 0.0
  %v1120 = vadd.f32 %v1118, %v1119
  %v1121 = vsel %vm800, %v998, 0.0
  %v1122 = vadd.f32 %v1120, %v1121
  %v1123 = vsel %vm800, %v999, 0.0
  %v1124 = vadd.f32 %v1122, %v1123
  %v1125 = vsel %vm800, %v1000, 0.0
  %v1126 = vadd.f32 %v1124, %v1125
  %v1127 = vsel %vm800, %v1001, 0.0
  %v1128 = vadd.f32 %v1126, %v1127
  %v1129 = vrot.slane %v1128, 4
  %v1130 = vadd.f32 %v1128, %v1129
  %v1131 = vrot.slane %v1130, 2
  %v1132 = vadd.f32 %v1130, %v1131
  %v1133 = vrot.slane %v1132, 1
  %v1134 = vadd.f32 %v1132, %v1133
  %v1135 = vadd.f32 %v937, %v1134
  %1136 = vst.msk [vmem:[%s6] sm:$0x1] %vm935, %v1135
  // Predicated region
  $region22: #{_lambda_.4} parent=0 // pred_check
    _
  $region23: #{_lambda_.4} parent=0 // pred_check_branch
    %1138 = sbr.rel (0) target = $region25
  $region24: #{_lambda_.4} parent=0 // pred_region
    _
  $region25: #{_lambda_.4} parent=0 // pred_fallthru
    _
  // Predicated region
  $region26: #{_lambda_.4} parent=0 // pred_check
    _
  $region27: #{_lambda_.4} parent=0 // pred_check_branch
    %1140 = sbr.rel (0) target = $region29
  $region28: #{_lambda_.4} parent=0 // pred_region
    _
  $region29: #{_lambda_.4} parent=0 // pred_fallthru
    _
  // Predicated region
  $region30: #{_lambda_.4} parent=0 // pred_check
    _
  $region31: #{_lambda_.4} parent=0 // pred_check_branch
    %1142 = sbr.rel (0) target = $region33
  $region32: #{_lambda_.4} parent=0 // pred_region
    _
  $region33: #{_lambda_.4} parent=0 // pred_fallthru
    _
  // Predicated region
  $region34: #{_lambda_.4} parent=0 // pred_check
    _
  $region35: #{_lambda_.4} parent=0 // pred_check_branch
    %1144 = sbr.rel (0) target = $region37
  $region36: #{_lambda_.4} parent=0 // pred_region
    _
  $region37: #{_lambda_.4} parent=0 // pred_fallthru
    _
  // Predicated region
  $region38: #{_lambda_.4} parent=0 // pred_check
    _
  $region39: #{_lambda_.4} parent=0 // pred_check_branch
    %1146 = sbr.rel (0) target = $region41
  $region40: #{_lambda_.4} parent=0 // pred_region
    _
  $region41: #{_lambda_.4} parent=0 // pred_fallthru
    _
  // Predicated region
  $region42: #{_lambda_.4} parent=0 // pred_check
    _
  $region43: #{_lambda_.4} parent=0 // pred_check_branch
    %1148 = sbr.rel (0) target = $region45
  $region44: #{_lambda_.4} parent=0 // pred_region
    _
  $region45: #{_lambda_.4} parent=0 // pred_fallthru
    _

// kernel: _lambda_.5
$region0: #{_lambda_.5}
  #allocation0 [shape = 'u32[]', space=smem, size = 0x4, offset = 0x4, fixed_abs, tag = 'smem constant byte address 0x4 - core index']
  #allocation1 [shape = 'u32[72,128]{1,0:T(1,128)}', space=vmem, size = 0x9000, scoped, tag = 'internal scratch']
  #allocation2 [shape = 'f32[304,16]{1,0:T(8,128)}', space=vmem, size = 0x26000, scoped, tag = 'scratch operand']
  %s0 = inlined_call_operand.vmem [shape: bf16[2,256,16], index: 0, kind: input, shape index: {}]
  %s1 = inlined_call_operand.vmem [shape: f32[1,16], index: 1, kind: input, shape index: {}]
  %s2 = inlined_call_operand.vmem [shape: f32[1,16], index: 2, kind: input, shape index: {}]
  %s3 = inlined_call_operand.vmem [shape: bf16[9,16,8], index: 3, kind: input, shape index: {}]
  %s4 = inlined_call_operand.vmem [shape: f32[256,1], index: 4, kind: input, shape index: {}]
  %s5 = inlined_call_operand.vmem [shape: f32[256,1], index: 5, kind: input, shape index: {}]
  %s6 = inlined_call_operand.vmem [shape: f32[2,256,8], index: 6, kind: output, shape index: {}]
  %s7 = sld [smem:[#allocation0]]
  $region57: #{_lambda_.5} parent=0
    _
  %s9 = ssub.s32 1, %s7
  %s10 = scalar_select 0, %s9, %s7
  loop: start=0, step=1, limit=4
  $region2: #{_lambda_.5} parent=0 // loop_pre_header
    _
  $region3: #{_lambda_.5} parent=0 // loop_header
    %s12 = sphi 0, %s16
    %p13 = scmp.ge.s32.totalorder %s12, 4
    %s22 = sphi 0, %s24
    %s25 = sphi 0, %s22
    %s26 = sphi 0, %s25
    %s42 = sphi 0, %s26
    %s46 = sphi 0, %s46
    %s48 = sphi 0, %s46
    %s49 = sphi 0, %s48
    %s63 = sphi 0, %s49
    %s67 = sphi 0, %s67
    %s69 = sphi 0, %s67
    %s70 = sphi 0, %s69
    %s84 = sphi 0, %s70
    %s88 = sphi 0, %s88
    %s90 = sphi 0, %s88
    %s91 = sphi 0, %s90
    %s105 = sphi 0, %s91
    %s109 = sphi 0, %s109
    %s111 = sphi 0, %s109
    %s112 = sphi 0, %s111
    %s126 = sphi 0, %s112
    %s130 = sphi 0, %s130
    %s132 = sphi 0, %s130
    %s133 = sphi 0, %s132
    %s147 = sphi 0, %s133
    %s153 = sphi 0, %s155
    %s156 = sphi 0, %s153
    %s157 = sphi 0, %s156
    %s173 = sphi 0, %s157
  $region4: #{_lambda_.5} parent=0 // loop_header_branch
    %15 = sbr.rel (%p13) target = $region8
  $region5: #{_lambda_.5} parent=0 // loop_body
    %s17 = ssub.s32 %s12, 1
    %s18 = ssub.s32 %s12, 2
    %s19 = sadd.s32 %s12, 1
    %s20 = ssub.s32 %s12, %s19
    %p21 = scmp.eq.s32.totalorder %s20, 0
    %s23 = sadd.s32 %s22, 1
    %s24 = scalar_select %p21, %s22, %s23
    %p27 = pneg %p21
    %p28 = scmp.eq.s32.totalorder %s12, 1
    %p29 = por %p27, %p28
    %p30 = scmp.ne.s32.totalorder %s22, %s25
    %p31 = scmp.eq.s32.totalorder %s12, 0
    %p32 = por %p30, %p31
    %p33 = scmp.ne.s32.totalorder %s22, %s25
    %p34 = scmp.eq.s32.totalorder %s17, 1
    %p35 = por %p33, %p34
    %p36 = scmp.ne.s32.totalorder %s25, %s26
    %p37 = scmp.eq.s32.totalorder %s17, 0
    %p38 = por %p36, %p37
    %p39 = scmp.ne.s32.totalorder %s25, %s26
    %p40 = scmp.eq.s32.totalorder %s18, 1
    %p41 = por %p39, %p40
    %p43 = scmp.ne.s32.totalorder %s26, %s42
    %p44 = scmp.eq.s32.totalorder %s18, 0
    %p45 = por %p43, %p44
    %s47 = sadd.s32 %s46, 1
    %p50 = scmp.eq.s32.totalorder %s12, 1
    %p51 = scmp.ne.s32.totalorder %s46, %s48
    %p52 = scmp.eq.s32.totalorder %s12, 0
    %p53 = por %p51, %p52
    %p54 = scmp.ne.s32.totalorder %s46, %s48
    %p55 = scmp.eq.s32.totalorder %s17, 1
    %p56 = por %p54, %p55
    %p57 = scmp.ne.s32.totalorder %s48, %s49
    %p58 = scmp.eq.s32.totalorder %s17, 0
    %p59 = por %p57, %p58
    %p60 = scmp.ne.s32.totalorder %s48, %s49
    %p61 = scmp.eq.s32.totalorder %s18, 1
    %p62 = por %p60, %p61
    %p64 = scmp.ne.s32.totalorder %s49, %s63
    %p65 = scmp.eq.s32.totalorder %s18, 0
    %p66 = por %p64, %p65
    %s68 = sadd.s32 %s67, 1
    %p71 = scmp.eq.s32.totalorder %s12, 1
    %p72 = scmp.ne.s32.totalorder %s67, %s69
    %p73 = scmp.eq.s32.totalorder %s12, 0
    %p74 = por %p72, %p73
    %p75 = scmp.ne.s32.totalorder %s67, %s69
    %p76 = scmp.eq.s32.totalorder %s17, 1
    %p77 = por %p75, %p76
    %p78 = scmp.ne.s32.totalorder %s69, %s70
    %p79 = scmp.eq.s32.totalorder %s17, 0
    %p80 = por %p78, %p79
    %p81 = scmp.ne.s32.totalorder %s69, %s70
    %p82 = scmp.eq.s32.totalorder %s18, 1
    %p83 = por %p81, %p82
    %p85 = scmp.ne.s32.totalorder %s70, %s84
    %p86 = scmp.eq.s32.totalorder %s18, 0
    %p87 = por %p85, %p86
    %s89 = sadd.s32 %s88, 1
    %p92 = scmp.eq.s32.totalorder %s12, 1
    %p93 = scmp.ne.s32.totalorder %s88, %s90
    %p94 = scmp.eq.s32.totalorder %s12, 0
    %p95 = por %p93, %p94
    %p96 = scmp.ne.s32.totalorder %s88, %s90
    %p97 = scmp.eq.s32.totalorder %s17, 1
    %p98 = por %p96, %p97
    %p99 = scmp.ne.s32.totalorder %s90, %s91
    %p100 = scmp.eq.s32.totalorder %s17, 0
    %p101 = por %p99, %p100
    %p102 = scmp.ne.s32.totalorder %s90, %s91
    %p103 = scmp.eq.s32.totalorder %s18, 1
    %p104 = por %p102, %p103
    %p106 = scmp.ne.s32.totalorder %s91, %s105
    %p107 = scmp.eq.s32.totalorder %s18, 0
    %p108 = por %p106, %p107
    %s110 = sadd.s32 %s109, 1
    %p113 = scmp.eq.s32.totalorder %s12, 1
    %p114 = scmp.ne.s32.totalorder %s109, %s111
    %p115 = scmp.eq.s32.totalorder %s12, 0
    %p116 = por %p114, %p115
    %p117 = scmp.ne.s32.totalorder %s109, %s111
    %p118 = scmp.eq.s32.totalorder %s17, 1
    %p119 = por %p117, %p118
    %p120 = scmp.ne.s32.totalorder %s111, %s112
    %p121 = scmp.eq.s32.totalorder %s17, 0
    %p122 = por %p120, %p121
    %p123 = scmp.ne.s32.totalorder %s111, %s112
    %p124 = scmp.eq.s32.totalorder %s18, 1
    %p125 = por %p123, %p124
    %p127 = scmp.ne.s32.totalorder %s112, %s126
    %p128 = scmp.eq.s32.totalorder %s18, 0
    %p129 = por %p127, %p128
    %s131 = sadd.s32 %s130, 1
    %p134 = scmp.eq.s32.totalorder %s12, 1
    %p135 = scmp.ne.s32.totalorder %s130, %s132
    %p136 = scmp.eq.s32.totalorder %s12, 0
    %p137 = por %p135, %p136
    %p138 = scmp.ne.s32.totalorder %s130, %s132
    %p139 = scmp.eq.s32.totalorder %s17, 1
    %p140 = por %p138, %p139
    %p141 = scmp.ne.s32.totalorder %s132, %s133
    %p142 = scmp.eq.s32.totalorder %s17, 0
    %p143 = por %p141, %p142
    %p144 = scmp.ne.s32.totalorder %s132, %s133
    %p145 = scmp.eq.s32.totalorder %s18, 1
    %p146 = por %p144, %p145
    %p148 = scmp.ne.s32.totalorder %s133, %s147
    %p149 = scmp.eq.s32.totalorder %s18, 0
    %p150 = por %p148, %p149
    %s151 = ssub.s32 %s12, %s19
    %p152 = scmp.eq.s32.totalorder %s151, 0
    %s154 = sadd.s32 %s153, 1
    %s155 = scalar_select %p152, %s153, %s154
    %p158 = pneg %p152
    %p159 = scmp.eq.s32.totalorder %s12, 1
    %p160 = por %p158, %p159
    %p161 = scmp.ne.s32.totalorder %s153, %s156
    %p162 = scmp.eq.s32.totalorder %s12, 0
    %p163 = por %p161, %p162
    %p164 = scmp.ne.s32.totalorder %s153, %s156
    %p165 = scmp.eq.s32.totalorder %s17, 1
    %p166 = por %p164, %p165
    %p167 = scmp.ne.s32.totalorder %s156, %s157
    %p168 = scmp.eq.s32.totalorder %s17, 0
    %p169 = por %p167, %p168
    %p170 = scmp.ne.s32.totalorder %s156, %s157
    %p171 = scmp.eq.s32.totalorder %s18, 1
    %p172 = por %p170, %p171
    %p174 = scmp.ne.s32.totalorder %s157, %s173
    %p175 = scmp.eq.s32.totalorder %s18, 0
    %p176 = por %p174, %p175
    %p177 = scmp.le.s32.totalorder 1, %s12
    %p178 = scmp.lt.s32.totalorder %s12, 3
    %p179 = pnand %p177, %p178
    %p180 = pneg %p179
    // Predicated region
    $region9: #{_lambda_.5} parent=5 // pred_check
      _
    $region10: #{_lambda_.5} parent=5 // pred_check_branch
      %182 = sbr.rel (%p179) target = $region12
    $region11: #{_lambda_.5} parent=5 // pred_region
      %s183 = ssub.s32 %s12, 1
      // Predicated region
      $region13: #{_lambda_.5} parent=11 // pred_check
        %p184 = pneg %p59
      $region14: #{_lambda_.5} parent=11 // pred_check_branch
        %186 = sbr.rel (%p184) target = $region16
      $region15: #{_lambda_.5} parent=11 // pred_region
        _
      $region16: #{_lambda_.5} parent=11 // pred_fallthru
        _
      // Predicated region
      $region17: #{_lambda_.5} parent=11 // pred_check
        %p187 = pneg %p80
      $region18: #{_lambda_.5} parent=11 // pred_check_branch
        %189 = sbr.rel (%p187) target = $region20
      $region19: #{_lambda_.5} parent=11 // pred_region
        _
      $region20: #{_lambda_.5} parent=11 // pred_fallthru
        _
      // Predicated region
      $region21: #{_lambda_.5} parent=11 // pred_check
        %p190 = pneg %p101
      $region22: #{_lambda_.5} parent=11 // pred_check_branch
        %192 = sbr.rel (%p190) target = $region24
      $region23: #{_lambda_.5} parent=11 // pred_region
        _
      $region24: #{_lambda_.5} parent=11 // pred_fallthru
        _
      // Predicated region
      $region25: #{_lambda_.5} parent=11 // pred_check
        %p193 = pneg %p122
      $region26: #{_lambda_.5} parent=11 // pred_check_branch
        %195 = sbr.rel (%p193) target = $region28
      $region27: #{_lambda_.5} parent=11 // pred_region
        _
      $region28: #{_lambda_.5} parent=11 // pred_fallthru
        _
      // Predicated region
      $region29: #{_lambda_.5} parent=11 // pred_check
        %p196 = pneg %p143
      $region30: #{_lambda_.5} parent=11 // pred_check_branch
        %198 = sbr.rel (%p196) target = $region32
      $region31: #{_lambda_.5} parent=11 // pred_region
        _
      $region32: #{_lambda_.5} parent=11 // pred_fallthru
        _
    $region12: #{_lambda_.5} parent=5 // pred_fallthru
      _
    %p199 = scmp.lt.s32.totalorder %s12, 2
    // Predicated region
    $region33: #{_lambda_.5} parent=5 // pred_check
      %p200 = pneg %p199
    $region34: #{_lambda_.5} parent=5 // pred_check_branch
      %202 = sbr.rel (%p200) target = $region36
    $region35: #{_lambda_.5} parent=5 // pred_region
      // Predicated region
      $region37: #{_lambda_.5} parent=35 // pred_check
        %p203 = pneg %p32
      $region38: #{_lambda_.5} parent=35 // pred_check_branch
        %205 = sbr.rel (%p203) target = $region40
      $region39: #{_lambda_.5} parent=35 // pred_region
        %p206 = scmp.lt.s32.totalorder %s12, 1
        %s207 = scalar_select %p206, %s12, 1
        %s208 = smul.addr %s207, 32
        %s209 = smul.addr %s208, 4
        %s210 = scalar_lea.vmem %s0, %s209
      $region40: #{_lambda_.5} parent=35 // pred_fallthru
        _
    $region36: #{_lambda_.5} parent=5 // pred_fallthru
      _
    %p211 = scmp.le.s32.totalorder 1, %s12
    %p212 = scmp.lt.s32.totalorder %s12, 3
    %p213 = pnand %p211, %p212
    %p214 = pneg %p213
    // Predicated region
    $region41: #{_lambda_.5} parent=5 // pred_check
      _
    $region42: #{_lambda_.5} parent=5 // pred_check_branch
      %216 = sbr.rel (%p213) target = $region44
    $region43: #{_lambda_.5} parent=5 // pred_region
      %s217 = ssub.s32 %s12, 1
      %p218 = scmp.lt.s32.totalorder %s17, 1
      %s219 = scalar_select %p218, %s17, 1
      %s220 = smul.addr %s219, 32
      %s221 = smul.addr %s220, 4
      %s222 = scalar_lea.vmem %s0, %s221
      %p223 = pneg %p38
      %p224 = pneg %p35
      %p225 = pneg %p59
      %p226 = pneg %p56
      %p227 = pneg %p80
      %p228 = pneg %p77
      %p229 = pneg %p101
      %p230 = pneg %p98
      %p231 = pneg %p122
      %p232 = pneg %p119
      %p233 = pneg %p143
      %p234 = pneg %p140
      %p235 = pneg %p169
      %p236 = pneg %p166
      %p237 = scmp.lt.s32.totalorder %s17, 1
      %s238 = scalar_select %p237, %s17, 1
      %s239 = smul.addr %s238, 32
      %s240 = smul.addr %s239, 8
      %s241 = scalar_lea.vmem %s6, %s240
      %p242 = scmp.lt.s32.totalorder %s17, 1
      %s243 = scalar_select %p242, %s17, 1
      %s244 = smul.addr %s243, 32
      %s245 = smul.addr %s244, 4
      %s246 = scalar_lea.vmem %s0, %s245
      %p247 = scmp.lt.s32.totalorder %s17, 1
      %s248 = scalar_select %p247, %s17, 1
      %s249 = smul.addr %s248, 32
      %s250 = smul.addr %s249, 8
      %s251 = scalar_lea.vmem %s6, %s250
      %v253 = vld [vmem:[%s246] sm:$0xf]
      %v254 = vld [vmem:[%s246 + $0x4] sm:$0xf]
      %v255 = vld [vmem:[%s246 + $0x8] sm:$0xf]
      %v256 = vld [vmem:[%s246 + $0xc] sm:$0xf]
      %v257 = vld [vmem:[%s246 + $0x10] sm:$0xf]
      %v258 = vld [vmem:[%s246 + $0x14] sm:$0xf]
      %v259 = vld [vmem:[%s246 + $0x18] sm:$0xf]
      %v260 = vld [vmem:[%s246 + $0x1c] sm:$0xf]
      %v261 = vld [vmem:[%s246 + $0x20] sm:$0xf]
      %v262 = vld [vmem:[%s246 + $0x24] sm:$0xf]
      %v263 = vld [vmem:[%s246 + $0x28] sm:$0xf]
      %v264 = vld [vmem:[%s246 + $0x2c] sm:$0xf]
      %v265 = vld [vmem:[%s246 + $0x30] sm:$0xf]
      %v266 = vld [vmem:[%s246 + $0x34] sm:$0xf]
      %v267 = vld [vmem:[%s246 + $0x38] sm:$0xf]
      %v268 = vld [vmem:[%s246 + $0x3c] sm:$0xf]
      %v269 = vld [vmem:[%s246 + $0x40] sm:$0xf]
      %v270 = vld [vmem:[%s246 + $0x44] sm:$0xf]
      %v271 = vld [vmem:[%s246 + $0x48] sm:$0xf]
      %v272 = vld [vmem:[%s246 + $0x4c] sm:$0xf]
      %v273 = vld [vmem:[%s246 + $0x50] sm:$0xf]
      %v274 = vld [vmem:[%s246 + $0x54] sm:$0xf]
      %v275 = vld [vmem:[%s246 + $0x58] sm:$0xf]
      %v276 = vld [vmem:[%s246 + $0x5c] sm:$0xf]
      %v277 = vld [vmem:[%s246 + $0x60] sm:$0xf]
      %v278 = vld [vmem:[%s246 + $0x64] sm:$0xf]
      %v279 = vld [vmem:[%s246 + $0x68] sm:$0xf]
      %v280 = vld [vmem:[%s246 + $0x6c] sm:$0xf]
      %v281 = vld [vmem:[%s246 + $0x70] sm:$0xf]
      %v282 = vld [vmem:[%s246 + $0x74] sm:$0xf]
      %v283 = vld [vmem:[%s246 + $0x78] sm:$0xf]
      %v284 = vld [vmem:[%s246 + $0x7c] sm:$0xf]
      %v285 = vunpack.c.l.bf16 %v253
      %v286 = vunpack.c.l.bf16 %v254
      %v287 = vunpack.c.l.bf16 %v255
      %v288 = vunpack.c.l.bf16 %v256
      %v289 = vunpack.c.l.bf16 %v257
      %v290 = vunpack.c.l.bf16 %v258
      %v291 = vunpack.c.l.bf16 %v259
      %v292 = vunpack.c.l.bf16 %v260
      %v293 = vunpack.c.l.bf16 %v261
      %v294 = vunpack.c.l.bf16 %v262
      %v295 = vunpack.c.l.bf16 %v263
      %v296 = vunpack.c.l.bf16 %v264
      %v297 = vunpack.c.l.bf16 %v265
      %v298 = vunpack.c.l.bf16 %v266
      %v299 = vunpack.c.l.bf16 %v267
      %v300 = vunpack.c.l.bf16 %v268
      %v301 = vunpack.c.l.bf16 %v269
      %v302 = vunpack.c.l.bf16 %v270
      %v303 = vunpack.c.l.bf16 %v271
      %v304 = vunpack.c.l.bf16 %v272
      %v305 = vunpack.c.l.bf16 %v273
      %v306 = vunpack.c.l.bf16 %v274
      %v307 = vunpack.c.l.bf16 %v275
      %v308 = vunpack.c.l.bf16 %v276
      %v309 = vunpack.c.l.bf16 %v277
      %v310 = vunpack.c.l.bf16 %v278
      %v311 = vunpack.c.l.bf16 %v279
      %v312 = vunpack.c.l.bf16 %v280
      %v313 = vunpack.c.l.bf16 %v281
      %v314 = vunpack.c.l.bf16 %v282
      %v315 = vunpack.c.l.bf16 %v283
      %v316 = vunpack.c.l.bf16 %v284
      %v317 = vld [vmem:[%s1] sm:$0x1]
      %v319 = vperm.slane %v317, 0
      %v321 = vmul.f32 %v285, %v319
      %v322 = vmul.f32 %v286, %v319
      %v323 = vmul.f32 %v287, %v319
      %v324 = vmul.f32 %v288, %v319
      %v325 = vmul.f32 %v289, %v319
      %v326 = vmul.f32 %v290, %v319
      %v327 = vmul.f32 %v291, %v319
      %v328 = vmul.f32 %v292, %v319
      %v329 = vmul.f32 %v293, %v319
      %v330 = vmul.f32 %v294, %v319
      %v331 = vmul.f32 %v295, %v319
      %v332 = vmul.f32 %v296, %v319
      %v333 = vmul.f32 %v297, %v319
      %v334 = vmul.f32 %v298, %v319
      %v335 = vmul.f32 %v299, %v319
      %v336 = vmul.f32 %v300, %v319
      %v337 = vmul.f32 %v301, %v319
      %v338 = vmul.f32 %v302, %v319
      %v339 = vmul.f32 %v303, %v319
      %v340 = vmul.f32 %v304, %v319
      %v341 = vmul.f32 %v305, %v319
      %v342 = vmul.f32 %v306, %v319
      %v343 = vmul.f32 %v307, %v319
      %v344 = vmul.f32 %v308, %v319
      %v345 = vmul.f32 %v309, %v319
      %v346 = vmul.f32 %v310, %v319
      %v347 = vmul.f32 %v311, %v319
      %v348 = vmul.f32 %v312, %v319
      %v349 = vmul.f32 %v313, %v319
      %v350 = vmul.f32 %v314, %v319
      %v351 = vmul.f32 %v315, %v319
      %v352 = vmul.f32 %v316, %v319
      %v353 = vld [vmem:[%s2] sm:$0x1]
      %v355 = vperm.slane %v353, 0
      %v357 = vadd.f32 %v321, %v355
      %v358 = vadd.f32 %v322, %v355
      %v359 = vadd.f32 %v323, %v355
      %v360 = vadd.f32 %v324, %v355
      %v361 = vadd.f32 %v325, %v355
      %v362 = vadd.f32 %v326, %v355
      %v363 = vadd.f32 %v327, %v355
      %v364 = vadd.f32 %v328, %v355
      %v365 = vadd.f32 %v329, %v355
      %v366 = vadd.f32 %v330, %v355
      %v367 = vadd.f32 %v331, %v355
      %v368 = vadd.f32 %v332, %v355
      %v369 = vadd.f32 %v333, %v355
      %v370 = vadd.f32 %v334, %v355
      %v371 = vadd.f32 %v335, %v355
      %v372 = vadd.f32 %v336, %v355
      %v373 = vadd.f32 %v337, %v355
      %v374 = vadd.f32 %v338, %v355
      %v375 = vadd.f32 %v339, %v355
      %v376 = vadd.f32 %v340, %v355
      %v377 = vadd.f32 %v341, %v355
      %v378 = vadd.f32 %v342, %v355
      %v379 = vadd.f32 %v343, %v355
      %v380 = vadd.f32 %v344, %v355
      %v381 = vadd.f32 %v345, %v355
      %v382 = vadd.f32 %v346, %v355
      %v383 = vadd.f32 %v347, %v355
      %v384 = vadd.f32 %v348, %v355
      %v385 = vadd.f32 %v349, %v355
      %v386 = vadd.f32 %v350, %v355
      %v387 = vadd.f32 %v351, %v355
      %v388 = vadd.f32 %v352, %v355
      %v389 = vmax.f32 %v357, 0.0
      %v390 = vmax.f32 %v358, 0.0
      %v391 = vmax.f32 %v359, 0.0
      %v392 = vmax.f32 %v360, 0.0
      %v393 = vmax.f32 %v361, 0.0
      %v394 = vmax.f32 %v362, 0.0
      %v395 = vmax.f32 %v363, 0.0
      %v396 = vmax.f32 %v364, 0.0
      %v397 = vmax.f32 %v365, 0.0
      %v398 = vmax.f32 %v366, 0.0
      %v399 = vmax.f32 %v367, 0.0
      %v400 = vmax.f32 %v368, 0.0
      %v401 = vmax.f32 %v369, 0.0
      %v402 = vmax.f32 %v370, 0.0
      %v403 = vmax.f32 %v371, 0.0
      %v404 = vmax.f32 %v372, 0.0
      %v405 = vmax.f32 %v373, 0.0
      %v406 = vmax.f32 %v374, 0.0
      %v407 = vmax.f32 %v375, 0.0
      %v408 = vmax.f32 %v376, 0.0
      %v409 = vmax.f32 %v377, 0.0
      %v410 = vmax.f32 %v378, 0.0
      %v411 = vmax.f32 %v379, 0.0
      %v412 = vmax.f32 %v380, 0.0
      %v413 = vmax.f32 %v381, 0.0
      %v414 = vmax.f32 %v382, 0.0
      %v415 = vmax.f32 %v383, 0.0
      %v416 = vmax.f32 %v384, 0.0
      %v417 = vmax.f32 %v385, 0.0
      %v418 = vmax.f32 %v386, 0.0
      %v419 = vmax.f32 %v387, 0.0
      %v420 = vmax.f32 %v388, 0.0
      %vm421 = vcmask 130048
      %422 = vst.msk [vmem:[#allocation2] sm:$0xff] %vm421, 0.0
      %423 = vst.msk [vmem:[#allocation2 + $0x8] sm:$0xff] %vm421, 0.0
      %424 = vst.msk [vmem:[#allocation2 + $0x10] sm:$0xff] %vm421, 0.0
      %425 = vst.msk [vmem:[#allocation2 + $0x118] sm:$0xff] %vm421, 0.0
      %426 = vst.msk [vmem:[#allocation2 + $0x120] sm:$0xff] %vm421, 0.0
      %427 = vst.msk [vmem:[#allocation2 + $0x128] sm:$0xff] %vm421, 0.0
      %428 = vst.msk [vmem:[#allocation2 + $0x18] sm:$0xff] %vm421, %v389
      %429 = vst.msk [vmem:[#allocation2 + $0x20] sm:$0xff] %vm421, %v390
      %430 = vst.msk [vmem:[#allocation2 + $0x28] sm:$0xff] %vm421, %v391
      %431 = vst.msk [vmem:[#allocation2 + $0x30] sm:$0xff] %vm421, %v392
      %432 = vst.msk [vmem:[#allocation2 + $0x38] sm:$0xff] %vm421, %v393
      %433 = vst.msk [vmem:[#allocation2 + $0x40] sm:$0xff] %vm421, %v394
      %434 = vst.msk [vmem:[#allocation2 + $0x48] sm:$0xff] %vm421, %v395
      %435 = vst.msk [vmem:[#allocation2 + $0x50] sm:$0xff] %vm421, %v396
      %436 = vst.msk [vmem:[#allocation2 + $0x58] sm:$0xff] %vm421, %v397
      %437 = vst.msk [vmem:[#allocation2 + $0x60] sm:$0xff] %vm421, %v398
      %438 = vst.msk [vmem:[#allocation2 + $0x68] sm:$0xff] %vm421, %v399
      %439 = vst.msk [vmem:[#allocation2 + $0x70] sm:$0xff] %vm421, %v400
      %440 = vst.msk [vmem:[#allocation2 + $0x78] sm:$0xff] %vm421, %v401
      %441 = vst.msk [vmem:[#allocation2 + $0x80] sm:$0xff] %vm421, %v402
      %442 = vst.msk [vmem:[#allocation2 + $0x88] sm:$0xff] %vm421, %v403
      %443 = vst.msk [vmem:[#allocation2 + $0x90] sm:$0xff] %vm421, %v404
      %444 = vst.msk [vmem:[#allocation2 + $0x98] sm:$0xff] %vm421, %v405
      %445 = vst.msk [vmem:[#allocation2 + $0xa0] sm:$0xff] %vm421, %v406
      %446 = vst.msk [vmem:[#allocation2 + $0xa8] sm:$0xff] %vm421, %v407
      %447 = vst.msk [vmem:[#allocation2 + $0xb0] sm:$0xff] %vm421, %v408
      %448 = vst.msk [vmem:[#allocation2 + $0xb8] sm:$0xff] %vm421, %v409
      %449 = vst.msk [vmem:[#allocation2 + $0xc0] sm:$0xff] %vm421, %v410
      %450 = vst.msk [vmem:[#allocation2 + $0xc8] sm:$0xff] %vm421, %v411
      %451 = vst.msk [vmem:[#allocation2 + $0xd0] sm:$0xff] %vm421, %v412
      %452 = vst.msk [vmem:[#allocation2 + $0xd8] sm:$0xff] %vm421, %v413
      %453 = vst.msk [vmem:[#allocation2 + $0xe0] sm:$0xff] %vm421, %v414
      %454 = vst.msk [vmem:[#allocation2 + $0xe8] sm:$0xff] %vm421, %v415
      %455 = vst.msk [vmem:[#allocation2 + $0xf0] sm:$0xff] %vm421, %v416
      %456 = vst.msk [vmem:[#allocation2 + $0xf8] sm:$0xff] %vm421, %v417
      %457 = vst.msk [vmem:[#allocation2 + $0x100] sm:$0xff] %vm421, %v418
      %458 = vst.msk [vmem:[#allocation2 + $0x108] sm:$0xff] %vm421, %v419
      %459 = vst.msk [vmem:[#allocation2 + $0x110] sm:$0xff] %vm421, %v420
      %v460 = vld [vmem:[%s4] sm:$0xff]
      %v461 = vld [vmem:[%s4 + $0x8] sm:$0xff]
      %v462 = vld [vmem:[%s4 + $0x10] sm:$0xff]
      %v463 = vld [vmem:[%s4 + $0x18] sm:$0xff]
      %v464 = vld [vmem:[%s4 + $0x20] sm:$0xff]
      %v465 = vld [vmem:[%s4 + $0x28] sm:$0xff]
      %v466 = vld [vmem:[%s4 + $0x30] sm:$0xff]
      %v467 = vld [vmem:[%s4 + $0x38] sm:$0xff]
      %v468 = vld [vmem:[%s4 + $0x40] sm:$0xff]
      %v469 = vld [vmem:[%s4 + $0x48] sm:$0xff]
      %v470 = vld [vmem:[%s4 + $0x50] sm:$0xff]
      %v471 = vld [vmem:[%s4 + $0x58] sm:$0xff]
      %v472 = vld [vmem:[%s4 + $0x60] sm:$0xff]
      %v473 = vld [vmem:[%s4 + $0x68] sm:$0xff]
      %v474 = vld [vmem:[%s4 + $0x70] sm:$0xff]
      %v475 = vld [vmem:[%s4 + $0x78] sm:$0xff]
      %v476 = vld [vmem:[%s4 + $0x80] sm:$0xff]
      %v477 = vld [vmem:[%s4 + $0x88] sm:$0xff]
      %v478 = vld [vmem:[%s4 + $0x90] sm:$0xff]
      %v479 = vld [vmem:[%s4 + $0x98] sm:$0xff]
      %v480 = vld [vmem:[%s4 + $0xa0] sm:$0xff]
      %v481 = vld [vmem:[%s4 + $0xa8] sm:$0xff]
      %v482 = vld [vmem:[%s4 + $0xb0] sm:$0xff]
      %v483 = vld [vmem:[%s4 + $0xb8] sm:$0xff]
      %v484 = vld [vmem:[%s4 + $0xc0] sm:$0xff]
      %v485 = vld [vmem:[%s4 + $0xc8] sm:$0xff]
      %v486 = vld [vmem:[%s4 + $0xd0] sm:$0xff]
      %v487 = vld [vmem:[%s4 + $0xd8] sm:$0xff]
      %v488 = vld [vmem:[%s4 + $0xe0] sm:$0xff]
      %v489 = vld [vmem:[%s4 + $0xe8] sm:$0xff]
      %v490 = vld [vmem:[%s4 + $0xf0] sm:$0xff]
      %v491 = vld [vmem:[%s4 + $0xf8] sm:$0xff]
      %v492 = vld [vmem:[%s5] sm:$0xff]
      %v493 = vld [vmem:[%s5 + $0x8] sm:$0xff]
      %v494 = vld [vmem:[%s5 + $0x10] sm:$0xff]
      %v495 = vld [vmem:[%s5 + $0x18] sm:$0xff]
      %v496 = vld [vmem:[%s5 + $0x20] sm:$0xff]
      %v497 = vld [vmem:[%s5 + $0x28] sm:$0xff]
      %v498 = vld [vmem:[%s5 + $0x30] sm:$0xff]
      %v499 = vld [vmem:[%s5 + $0x38] sm:$0xff]
      %v500 = vld [vmem:[%s5 + $0x40] sm:$0xff]
      %v501 = vld [vmem:[%s5 + $0x48] sm:$0xff]
      %v502 = vld [vmem:[%s5 + $0x50] sm:$0xff]
      %v503 = vld [vmem:[%s5 + $0x58] sm:$0xff]
      %v504 = vld [vmem:[%s5 + $0x60] sm:$0xff]
      %v505 = vld [vmem:[%s5 + $0x68] sm:$0xff]
      %v506 = vld [vmem:[%s5 + $0x70] sm:$0xff]
      %v507 = vld [vmem:[%s5 + $0x78] sm:$0xff]
      %v508 = vld [vmem:[%s5 + $0x80] sm:$0xff]
      %v509 = vld [vmem:[%s5 + $0x88] sm:$0xff]
      %v510 = vld [vmem:[%s5 + $0x90] sm:$0xff]
      %v511 = vld [vmem:[%s5 + $0x98] sm:$0xff]
      %v512 = vld [vmem:[%s5 + $0xa0] sm:$0xff]
      %v513 = vld [vmem:[%s5 + $0xa8] sm:$0xff]
      %v514 = vld [vmem:[%s5 + $0xb0] sm:$0xff]
      %v515 = vld [vmem:[%s5 + $0xb8] sm:$0xff]
      %v516 = vld [vmem:[%s5 + $0xc0] sm:$0xff]
      %v517 = vld [vmem:[%s5 + $0xc8] sm:$0xff]
      %v518 = vld [vmem:[%s5 + $0xd0] sm:$0xff]
      %v519 = vld [vmem:[%s5 + $0xd8] sm:$0xff]
      %v520 = vld [vmem:[%s5 + $0xe0] sm:$0xff]
      %v521 = vld [vmem:[%s5 + $0xe8] sm:$0xff]
      %v522 = vld [vmem:[%s5 + $0xf0] sm:$0xff]
      %v523 = vld [vmem:[%s5 + $0xf8] sm:$0xff]
      %v524 = vld [vmem:[#allocation2 + $0x7] sm:$0xff]
      %v525 = vld [vmem:[#allocation2 + $0xf] sm:$0xff]
      %v526 = vld [vmem:[#allocation2 + $0x17] sm:$0xff]
      %v527 = vld [vmem:[#allocation2 + $0x1f] sm:$0xff]
      %v528 = vld [vmem:[#allocation2 + $0x27] sm:$0xff]
      %v529 = vld [vmem:[#allocation2 + $0x2f] sm:$0xff]
      %v530 = vld [vmem:[#allocation2 + $0x37] sm:$0xff]
      %v531 = vld [vmem:[#allocation2 + $0x3f] sm:$0xff]
      %v532 = vld [vmem:[#allocation2 + $0x47] sm:$0xff]
      %v533 = vld [vmem:[#allocation2 + $0x4f] sm:$0xff]
      %v534 = vld [vmem:[#allocation2 + $0x57] sm:$0xff]
      %v535 = vld [vmem:[#allocation2 + $0x5f] sm:$0xff]
      %v536 = vld [vmem:[#allocation2 + $0x67] sm:$0xff]
      %v537 = vld [vmem:[#allocation2 + $0x6f] sm:$0xff]
      %v538 = vld [vmem:[#allocation2 + $0x77] sm:$0xff]
      %v539 = vld [vmem:[#allocation2 + $0x7f] sm:$0xff]
      %v540 = vld [vmem:[#allocation2 + $0x87] sm:$0xff]
      %v541 = vld [vmem:[#allocation2 + $0x8f] sm:$0xff]
      %v542 = vld [vmem:[#allocation2 + $0x97] sm:$0xff]
      %v543 = vld [vmem:[#allocation2 + $0x9f] sm:$0xff]
      %v544 = vld [vmem:[#allocation2 + $0xa7] sm:$0xff]
      %v545 = vld [vmem:[#allocation2 + $0xaf] sm:$0xff]
      %v546 = vld [vmem:[#allocation2 + $0xb7] sm:$0xff]
      %v547 = vld [vmem:[#allocation2 + $0xbf] sm:$0xff]
      %v548 = vld [vmem:[#allocation2 + $0xc7] sm:$0xff]
      %v549 = vld [vmem:[#allocation2 + $0xcf] sm:$0xff]
      %v550 = vld [vmem:[#allocation2 + $0xd7] sm:$0xff]
      %v551 = vld [vmem:[#allocation2 + $0xdf] sm:$0xff]
      %v552 = vld [vmem:[#allocation2 + $0xe7] sm:$0xff]
      %v553 = vld [vmem:[#allocation2 + $0xef] sm:$0xff]
      %v554 = vld [vmem:[#allocation2 + $0xf7] sm:$0xff]
      %v555 = vld [vmem:[#allocation2 + $0xff] sm:$0xff]
      %v556 = vpack.c.bf16 %v525, %v524
      %v557 = vpack.c.bf16 %v527, %v526
      %v558 = vpack.c.bf16 %v529, %v528
      %v559 = vpack.c.bf16 %v531, %v530
      %v560 = vpack.c.bf16 %v533, %v532
      %v561 = vpack.c.bf16 %v535, %v534
      %v562 = vpack.c.bf16 %v537, %v536
      %v563 = vpack.c.bf16 %v539, %v538
      %v564 = vpack.c.bf16 %v541, %v540
      %v565 = vpack.c.bf16 %v543, %v542
      %v566 = vpack.c.bf16 %v545, %v544
      %v567 = vpack.c.bf16 %v547, %v546
      %v568 = vpack.c.bf16 %v549, %v548
      %v569 = vpack.c.bf16 %v551, %v550
      %v570 = vpack.c.bf16 %v553, %v552
      %v571 = vpack.c.bf16 %v555, %v554
      %v572 = vld [vmem:[%s3] sm:$0xf]
      %v573 = vld [vmem:[%s3 + $0x4] sm:$0xf]
      %v574 = vld [vmem:[#allocation2 + $0x107] sm:$0xff]
      %v575 = vld [vmem:[#allocation2 + $0x10f] sm:$0xff]
      %v576 = vpack.c.bf16 %v575, %v574
      %s577 = scalar_lea.vmem %s3, 24
      %v578 = vld [vmem:[%s577] sm:$0xf]
      %v579 = vld [vmem:[%s577 + $0x4] sm:$0xf]
      %v582 = vunpack.c.l.b16 %v578
      %v583 = vunpack.c.l.b16 %v579
      %v584 = vpack.c.b16 %v583, %v582
      %v587 = vsel %vm421, %v557, 0
      %v590 = vsel %vm421, %v558, 0
      %v593 = vsel %vm421, %v559, 0
      %v596 = vsel %vm421, %v560, 0
      %v599 = vsel %vm421, %v561, 0
      %v602 = vsel %vm421, %v562, 0
      %v605 = vsel %vm421, %v563, 0
      %v608 = vsel %vm421, %v564, 0
      %v611 = vsel %vm421, %v565, 0
      %v614 = vsel %vm421, %v566, 0
      %v617 = vsel %vm421, %v567, 0
      %v620 = vsel %vm421, %v568, 0
      %v623 = vsel %vm421, %v569, 0
      %v626 = vsel %vm421, %v570, 0
      %v629 = vsel %vm421, %v571, 0
      %v632 = vsel %vm421, %v576, 0
      %634 = vmatpush.bf16.msra.mxu0 0
      %635 = vmatpush.bf16.msra.mxu0 0
      %636 = vmatpush.bf16.msra.mxu0 0
      %637 = vmatpush.bf16.msra.mxu0 0
      %638 = vmatpush.bf16.msra.mxu0 0
      %639 = vmatpush.bf16.msra.mxu0 0
      %640 = vmatpush.bf16.msra.mxu0 0
      %641 = vmatpush.bf16.msra.mxu0 %v584
      %642 = vmatmul.bf16.gmra.mxu0 %v587
      %v643 = vpop.f32.mrf.mxu0
      %v644 = vadd.f32 0.0, %v643
      %v645 = vpop.f32.mrf.mxu0
      %v646 = vadd.f32 0.0, %v645
      %647 = vmatmul.bf16.gmra.mxu0 %v590
      %v648 = vpop.f32.mrf.mxu0
      %v649 = vadd.f32 0.0, %v648
      %v650 = vpop.f32.mrf.mxu0
      %v651 = vadd.f32 0.0, %v650
      %652 = vmatmul.bf16.gmra.mxu0 %v593
      %v653 = vpop.f32.mrf.mxu0
      %v654 = vadd.f32 0.0, %v653
      %v655 = vpop.f32.mrf.mxu0
      %v656 = vadd.f32 0.0, %v655
      %657 = vmatmul.bf16.gmra.mxu0 %v596
      %v658 = vpop.f32.mrf.mxu0
      %v659 = vadd.f32 0.0, %v658
      %v660 = vpop.f32.mrf.mxu0
      %v661 = vadd.f32 0.0, %v660
      %662 = vmatmul.bf16.gmra.mxu0 %v599
      %v663 = vpop.f32.mrf.mxu0
      %v664 = vadd.f32 0.0, %v663
      %v665 = vpop.f32.mrf.mxu0
      %v666 = vadd.f32 0.0, %v665
      %667 = vmatmul.bf16.gmra.mxu0 %v602
      %v668 = vpop.f32.mrf.mxu0
      %v669 = vadd.f32 0.0, %v668
      %v670 = vpop.f32.mrf.mxu0
      %v671 = vadd.f32 0.0, %v670
      %672 = vmatmul.bf16.gmra.mxu0 %v605
      %v673 = vpop.f32.mrf.mxu0
      %v674 = vadd.f32 0.0, %v673
      %v675 = vpop.f32.mrf.mxu0
      %v676 = vadd.f32 0.0, %v675
      %677 = vmatmul.bf16.gmra.mxu0 %v608
      %v678 = vpop.f32.mrf.mxu0
      %v679 = vadd.f32 0.0, %v678
      %v680 = vpop.f32.mrf.mxu0
      %v681 = vadd.f32 0.0, %v680
      %682 = vmatmul.bf16.gmra.mxu0 %v611
      %v683 = vpop.f32.mrf.mxu0
      %v684 = vadd.f32 0.0, %v683
      %v685 = vpop.f32.mrf.mxu0
      %v686 = vadd.f32 0.0, %v685
      %687 = vmatmul.bf16.gmra.mxu0 %v614
      %v688 = vpop.f32.mrf.mxu0
      %v689 = vadd.f32 0.0, %v688
      %v690 = vpop.f32.mrf.mxu0
      %v691 = vadd.f32 0.0, %v690
      %692 = vmatmul.bf16.gmra.mxu0 %v617
      %v693 = vpop.f32.mrf.mxu0
      %v694 = vadd.f32 0.0, %v693
      %v695 = vpop.f32.mrf.mxu0
      %v696 = vadd.f32 0.0, %v695
      %697 = vmatmul.bf16.gmra.mxu0 %v620
      %v698 = vpop.f32.mrf.mxu0
      %v699 = vadd.f32 0.0, %v698
      %v700 = vpop.f32.mrf.mxu0
      %v701 = vadd.f32 0.0, %v700
      %702 = vmatmul.bf16.gmra.mxu0 %v623
      %v703 = vpop.f32.mrf.mxu0
      %v704 = vadd.f32 0.0, %v703
      %v705 = vpop.f32.mrf.mxu0
      %v706 = vadd.f32 0.0, %v705
      %707 = vmatmul.bf16.gmra.mxu0 %v626
      %v708 = vpop.f32.mrf.mxu0
      %v709 = vadd.f32 0.0, %v708
      %v710 = vpop.f32.mrf.mxu0
      %v711 = vadd.f32 0.0, %v710
      %712 = vmatmul.bf16.gmra.mxu0 %v629
      %v713 = vpop.f32.mrf.mxu0
      %v714 = vadd.f32 0.0, %v713
      %v715 = vpop.f32.mrf.mxu0
      %v716 = vadd.f32 0.0, %v715
      %717 = vmatmul.bf16.gmra.mxu0 %v632
      %v718 = vpop.f32.mrf.mxu0
      %v719 = vadd.f32 0.0, %v718
      %v720 = vpop.f32.mrf.mxu0
      %v721 = vadd.f32 0.0, %v720
      %722 = vdwg.mxu0
      %v725 = vunpack.c.l.b16 %v572
      %v726 = vunpack.c.l.b16 %v573
      %v727 = vpack.c.b16 %v726, %v725
      %v730 = vsel %vm421, %v556, 0
      %732 = vmatpush.bf16.msra.mxu0 0
      %733 = vmatpush.bf16.msra.mxu0 0
      %734 = vmatpush.bf16.msra.mxu0 0
      %735 = vmatpush.bf16.msra.mxu0 0
      %736 = vmatpush.bf16.msra.mxu0 0
      %737 = vmatpush.bf16.msra.mxu0 0
      %738 = vmatpush.bf16.msra.mxu0 0
      %739 = vmatpush.bf16.msra.mxu0 %v727
      %740 = vmatmul.bf16.gmra.mxu0 %v730
      %v741 = vpop.f32.mrf.mxu0
      %v742 = vadd.f32 %v644, %v741
      %v743 = vpop.f32.mrf.mxu0
      %v744 = vadd.f32 %v646, %v743
      %745 = vmatmul.bf16.gmra.mxu0 %v587
      %v746 = vpop.f32.mrf.mxu0
      %v747 = vadd.f32 %v649, %v746
      %v748 = vpop.f32.mrf.mxu0
      %v749 = vadd.f32 %v651, %v748
      %750 = vmatmul.bf16.gmra.mxu0 %v590
      %v751 = vpop.f32.mrf.mxu0
      %v752 = vadd.f32 %v654, %v751
      %v753 = vpop.f32.mrf.mxu0
      %v754 = vadd.f32 %v656, %v753
      %755 = vmatmul.bf16.gmra.mxu0 %v593
      %v756 = vpop.f32.mrf.mxu0
      %v757 = vadd.f32 %v659, %v756
      %v758 = vpop.f32.mrf.mxu0
      %v759 = vadd.f32 %v661, %v758
      %760 = vmatmul.bf16.gmra.mxu0 %v596
      %v761 = vpop.f32.mrf.mxu0
      %v762 = vadd.f32 %v664, %v761
      %v763 = vpop.f32.mrf.mxu0
      %v764 = vadd.f32 %v666, %v763
      %765 = vmatmul.bf16.gmra.mxu0 %v599
      %v766 = vpop.f32.mrf.mxu0
      %v767 = vadd.f32 %v669, %v766
      %v768 = vpop.f32.mrf.mxu0
      %v769 = vadd.f32 %v671, %v768
      %770 = vmatmul.bf16.gmra.mxu0 %v602
      %v771 = vpop.f32.mrf.mxu0
      %v772 = vadd.f32 %v674, %v771
      %v773 = vpop.f32.mrf.mxu0
      %v774 = vadd.f32 %v676, %v773
      %775 = vmatmul.bf16.gmra.mxu0 %v605
      %v776 = vpop.f32.mrf.mxu0
      %v777 = vadd.f32 %v679, %v776
      %v778 = vpop.f32.mrf.mxu0
      %v779 = vadd.f32 %v681, %v778
      %780 = vmatmul.bf16.gmra.mxu0 %v608
      %v781 = vpop.f32.mrf.mxu0
      %v782 = vadd.f32 %v684, %v781
      %v783 = vpop.f32.mrf.mxu0
      %v784 = vadd.f32 %v686, %v783
      %785 = vmatmul.bf16.gmra.mxu0 %v611
      %v786 = vpop.f32.mrf.mxu0
      %v787 = vadd.f32 %v689, %v786
      %v788 = vpop.f32.mrf.mxu0
      %v789 = vadd.f32 %v691, %v788
      %790 = vmatmul.bf16.gmra.mxu0 %v614
      %v791 = vpop.f32.mrf.mxu0
      %v792 = vadd.f32 %v694, %v791
      %v793 = vpop.f32.mrf.mxu0
      %v794 = vadd.f32 %v696, %v793
      %795 = vmatmul.bf16.gmra.mxu0 %v617
      %v796 = vpop.f32.mrf.mxu0
      %v797 = vadd.f32 %v699, %v796
      %v798 = vpop.f32.mrf.mxu0
      %v799 = vadd.f32 %v701, %v798
      %800 = vmatmul.bf16.gmra.mxu0 %v620
      %v801 = vpop.f32.mrf.mxu0
      %v802 = vadd.f32 %v704, %v801
      %v803 = vpop.f32.mrf.mxu0
      %v804 = vadd.f32 %v706, %v803
      %805 = vmatmul.bf16.gmra.mxu0 %v623
      %v806 = vpop.f32.mrf.mxu0
      %v807 = vadd.f32 %v709, %v806
      %v808 = vpop.f32.mrf.mxu0
      %v809 = vadd.f32 %v711, %v808
      %810 = vmatmul.bf16.gmra.mxu0 %v626
      %v811 = vpop.f32.mrf.mxu0
      %v812 = vadd.f32 %v714, %v811
      %v813 = vpop.f32.mrf.mxu0
      %v814 = vadd.f32 %v716, %v813
      %815 = vmatmul.bf16.gmra.mxu0 %v629
      %v816 = vpop.f32.mrf.mxu0
      %v817 = vadd.f32 %v719, %v816
      %v818 = vpop.f32.mrf.mxu0
      %v819 = vadd.f32 %v721, %v818
      %820 = vdwg.mxu0
      %v821 = vld [vmem:[#allocation2 + $0x27] sm:$0xff]
      %v822 = vld [vmem:[#allocation2 + $0x2f] sm:$0xff]
      %v823 = vld [vmem:[#allocation2 + $0x37] sm:$0xff]
      %v824 = vld [vmem:[#allocation2 + $0x3f] sm:$0xff]
      %v825 = vld [vmem:[#allocation2 + $0x47] sm:$0xff]
      %v826 = vld [vmem:[#allocation2 + $0x4f] sm:$0xff]
      %v827 = vld [vmem:[#allocation2 + $0x57] sm:$0xff]
      %v828 = vld [vmem:[#allocation2 + $0x5f] sm:$0xff]
      %v829 = vld [vmem:[#allocation2 + $0x67] sm:$0xff]
      %v830 = vld [vmem:[#allocation2 + $0x6f] sm:$0xff]
      %v831 = vld [vmem:[#allocation2 + $0x77] sm:$0xff]
      %v832 = vld [vmem:[#allocation2 + $0x7f] sm:$0xff]
      %v833 = vld [vmem:[#allocation2 + $0x87] sm:$0xff]
      %v834 = vld [vmem:[#allocation2 + $0x8f] sm:$0xff]
      %v835 = vld [vmem:[#allocation2 + $0x97] sm:$0xff]
      %v836 = vld [vmem:[#allocation2 + $0x9f] sm:$0xff]
      %v837 = vld [vmem:[#allocation2 + $0xa7] sm:$0xff]
      %v838 = vld [vmem:[#allocation2 + $0xaf] sm:$0xff]
      %v839 = vld [vmem:[#allocation2 + $0xb7] sm:$0xff]
      %v840 = vld [vmem:[#allocation2 + $0xbf] sm:$0xff]
      %v841 = vld [vmem:[#allocation2 + $0xc7] sm:$0xff]
      %v842 = vld [vmem:[#allocation2 + $0xcf] sm:$0xff]
      %v843 = vld [vmem:[#allocation2 + $0xd7] sm:$0xff]
      %v844 = vld [vmem:[#allocation2 + $0xdf] sm:$0xff]
      %v845 = vld [vmem:[#allocation2 + $0xe7] sm:$0xff]
      %v846 = vld [vmem:[#allocation2 + $0xef] sm:$0xff]
      %v847 = vld [vmem:[#allocation2 + $0xf7] sm:$0xff]
      %v848 = vld [vmem:[#allocation2 + $0xff] sm:$0xff]
      %v849 = vld [vmem:[#allocation2 + $0x107] sm:$0xff]
      %v850 = vld [vmem:[#allocation2 + $0x10f] sm:$0xff]
      %v851 = vld [vmem:[#allocation2 + $0x117] sm:$0xff]
      %v852 = vld [vmem:[#allocation2 + $0x11f] sm:$0xff]
      %v853 = vpack.c.bf16 %v822, %v821
      %v854 = vpack.c.bf16 %v824, %v823
      %v855 = vpack.c.bf16 %v826, %v825
      %v856 = vpack.c.bf16 %v828, %v827
      %v857 = vpack.c.bf16 %v830, %v829
      %v858 = vpack.c.bf16 %v832, %v831
      %v859 = vpack.c.bf16 %v834, %v833
      %v860 = vpack.c.bf16 %v836, %v835
      %v861 = vpack.c.bf16 %v838, %v837
      %v862 = vpack.c.bf16 %v840, %v839
      %v863 = vpack.c.bf16 %v842, %v841
      %v864 = vpack.c.bf16 %v844, %v843
      %v865 = vpack.c.bf16 %v846, %v845
      %v866 = vpack.c.bf16 %v848, %v847
      %v867 = vpack.c.bf16 %v850, %v849
      %v868 = vpack.c.bf16 %v852, %v851
      %s869 = scalar_lea.vmem %s3, 48
      %v870 = vld [vmem:[%s869] sm:$0xf]
      %v871 = vld [vmem:[%s869 + $0x4] sm:$0xf]
      %v874 = vunpack.c.l.b16 %v870
      %v875 = vunpack.c.l.b16 %v871
      %v876 = vpack.c.b16 %v875, %v874
      %v879 = vsel %vm421, %v853, 0
      %v882 = vsel %vm421, %v854, 0
      %v885 = vsel %vm421, %v855, 0
      %v888 = vsel %vm421, %v856, 0
      %v891 = vsel %vm421, %v857, 0
      %v894 = vsel %vm421, %v858, 0
      %v897 = vsel %vm421, %v859, 0
      %v900 = vsel %vm421, %v860, 0
      %v903 = vsel %vm421, %v861, 0
      %v906 = vsel %vm421, %v862, 0
      %v909 = vsel %vm421, %v863, 0
      %v912 = vsel %vm421, %v864, 0
      %v915 = vsel %vm421, %v865, 0
      %v918 = vsel %vm421, %v866, 0
      %v921 = vsel %vm421, %v867, 0
      %v924 = vsel %vm421, %v868, 0
      %926 = vmatpush.bf16.msra.mxu0 0
      %927 = vmatpush.bf16.msra.mxu0 0
      %928 = vmatpush.bf16.msra.mxu0 0
      %929 = vmatpush.bf16.msra.mxu0 0
      %930 = vmatpush.bf16.msra.mxu0 0
      %931 = vmatpush.bf16.msra.mxu0 0
      %932 = vmatpush.bf16.msra.mxu0 0
      %933 = vmatpush.bf16.msra.mxu0 %v876
      %934 = vmatmul.bf16.gmra.mxu0 %v879
      %v935 = vpop.f32.mrf.mxu0
      %v936 = vadd.f32 0.0, %v935
      %v937 = vpop.f32.mrf.mxu0
      %v938 = vadd.f32 0.0, %v937
      %939 = vmatmul.bf16.gmra.mxu0 %v882
      %v940 = vpop.f32.mrf.mxu0
      %v941 = vadd.f32 0.0, %v940
      %v942 = vpop.f32.mrf.mxu0
      %v943 = vadd.f32 0.0, %v942
      %944 = vmatmul.bf16.gmra.mxu0 %v885
      %v945 = vpop.f32.mrf.mxu0
      %v946 = vadd.f32 0.0, %v945
      %v947 = vpop.f32.mrf.mxu0
      %v948 = vadd.f32 0.0, %v947
      %949 = vmatmul.bf16.gmra.mxu0 %v888
      %v950 = vpop.f32.mrf.mxu0
      %v951 = vadd.f32 0.0, %v950
      %v952 = vpop.f32.mrf.mxu0
      %v953 = vadd.f32 0.0, %v952
      %954 = vmatmul.bf16.gmra.mxu0 %v891
      %v955 = vpop.f32.mrf.mxu0
      %v956 = vadd.f32 0.0, %v955
      %v957 = vpop.f32.mrf.mxu0
      %v958 = vadd.f32 0.0, %v957
      %959 = vmatmul.bf16.gmra.mxu0 %v894
      %v960 = vpop.f32.mrf.mxu0
      %v961 = vadd.f32 0.0, %v960
      %v962 = vpop.f32.mrf.mxu0
      %v963 = vadd.f32 0.0, %v962
      %964 = vmatmul.bf16.gmra.mxu0 %v897
      %v965 = vpop.f32.mrf.mxu0
      %v966 = vadd.f32 0.0, %v965
      %v967 = vpop.f32.mrf.mxu0
      %v968 = vadd.f32 0.0, %v967
      %969 = vmatmul.bf16.gmra.mxu0 %v900
      %v970 = vpop.f32.mrf.mxu0
      %v971 = vadd.f32 0.0, %v970
      %v972 = vpop.f32.mrf.mxu0
      %v973 = vadd.f32 0.0, %v972
      %974 = vmatmul.bf16.gmra.mxu0 %v903
      %v975 = vpop.f32.mrf.mxu0
      %v976 = vadd.f32 0.0, %v975
      %v977 = vpop.f32.mrf.mxu0
      %v978 = vadd.f32 0.0, %v977
      %979 = vmatmul.bf16.gmra.mxu0 %v906
      %v980 = vpop.f32.mrf.mxu0
      %v981 = vadd.f32 0.0, %v980
      %v982 = vpop.f32.mrf.mxu0
      %v983 = vadd.f32 0.0, %v982
      %984 = vmatmul.bf16.gmra.mxu0 %v909
      %v985 = vpop.f32.mrf.mxu0
      %v986 = vadd.f32 0.0, %v985
      %v987 = vpop.f32.mrf.mxu0
      %v988 = vadd.f32 0.0, %v987
      %989 = vmatmul.bf16.gmra.mxu0 %v912
      %v990 = vpop.f32.mrf.mxu0
      %v991 = vadd.f32 0.0, %v990
      %v992 = vpop.f32.mrf.mxu0
      %v993 = vadd.f32 0.0, %v992
      %994 = vmatmul.bf16.gmra.mxu0 %v915
      %v995 = vpop.f32.mrf.mxu0
      %v996 = vadd.f32 0.0, %v995
      %v997 = vpop.f32.mrf.mxu0
      %v998 = vadd.f32 0.0, %v997
      %999 = vmatmul.bf16.gmra.mxu0 %v918
      %v1000 = vpop.f32.mrf.mxu0
      %v1001 = vadd.f32 0.0, %v1000
      %v1002 = vpop.f32.mrf.mxu0
      %v1003 = vadd.f32 0.0, %v1002
      %1004 = vmatmul.bf16.gmra.mxu0 %v921
      %v1005 = vpop.f32.mrf.mxu0
      %v1006 = vadd.f32 0.0, %v1005
      %v1007 = vpop.f32.mrf.mxu0
      %v1008 = vadd.f32 0.0, %v1007
      %1009 = vmatmul.bf16.gmra.mxu0 %v924
      %v1010 = vpop.f32.mrf.mxu0
      %v1011 = vadd.f32 0.0, %v1010
      %v1012 = vpop.f32.mrf.mxu0
      %v1013 = vadd.f32 0.0, %v1012
      %1014 = vdwg.mxu0
      %v1015 = vadd.f32 %v742, %v936
      %v1016 = vadd.f32 %v744, %v938
      %v1017 = vadd.f32 %v747, %v941
      %v1018 = vadd.f32 %v749, %v943
      %v1019 = vadd.f32 %v752, %v946
      %v1020 = vadd.f32 %v754, %v948
      %v1021 = vadd.f32 %v757, %v951
      %v1022 = vadd.f32 %v759, %v953
      %v1023 = vadd.f32 %v762, %v956
      %v1024 = vadd.f32 %v764, %v958
      %v1025 = vadd.f32 %v767, %v961
      %v1026 = vadd.f32 %v769, %v963
      %v1027 = vadd.f32 %v772, %v966
      %v1028 = vadd.f32 %v774, %v968
      %v1029 = vadd.f32 %v777, %v971
      %v1030 = vadd.f32 %v779, %v973
      %v1031 = vadd.f32 %v782, %v976
      %v1032 = vadd.f32 %v784, %v978
      %v1033 = vadd.f32 %v787, %v981
      %v1034 = vadd.f32 %v789, %v983
      %v1035 = vadd.f32 %v792, %v986
      %v1036 = vadd.f32 %v794, %v988
      %v1037 = vadd.f32 %v797, %v991
      %v1038 = vadd.f32 %v799, %v993
      %v1039 = vadd.f32 %v802, %v996
      %v1040 = vadd.f32 %v804, %v998
      %v1041 = vadd.f32 %v807, %v1001
      %v1042 = vadd.f32 %v809, %v1003
      %v1043 = vadd.f32 %v812, %v1006
      %v1044 = vadd.f32 %v814, %v1008
      %v1045 = vadd.f32 %v817, %v1011
      %v1046 = vadd.f32 %v819, %v1013
      %1048 = vset.pattern.permute.xlu0 0
      %1049 = vperm.xlu0 %1048, %v460
      %v1050 = vpop.permute.xlu0 %1049
      %1053 = vset.pattern.permute.xlu0 0
      %1054 = vperm.xlu0 %1053, %v461
      %v1055 = vpop.permute.xlu0 %1054
      %1058 = vset.pattern.permute.xlu0 0
      %1059 = vperm.xlu0 %1058, %v462
      %v1060 = vpop.permute.xlu0 %1059
      %1063 = vset.pattern.permute.xlu0 0
      %1064 = vperm.xlu0 %1063, %v463
      %v1065 = vpop.permute.xlu0 %1064
      %1068 = vset.pattern.permute.xlu0 0
      %1069 = vperm.xlu0 %1068, %v464
      %v1070 = vpop.permute.xlu0 %1069
      %1073 = vset.pattern.permute.xlu0 0
      %1074 = vperm.xlu0 %1073, %v465
      %v1075 = vpop.permute.xlu0 %1074
      %1078 = vset.pattern.permute.xlu0 0
      %1079 = vperm.xlu0 %1078, %v466
      %v1080 = vpop.permute.xlu0 %1079
      %1083 = vset.pattern.permute.xlu0 0
      %1084 = vperm.xlu0 %1083, %v467
      %v1085 = vpop.permute.xlu0 %1084
      %1088 = vset.pattern.permute.xlu0 0
      %1089 = vperm.xlu0 %1088, %v468
      %v1090 = vpop.permute.xlu0 %1089
      %1093 = vset.pattern.permute.xlu0 0
      %1094 = vperm.xlu0 %1093, %v469
      %v1095 = vpop.permute.xlu0 %1094
      %1098 = vset.pattern.permute.xlu0 0
      %1099 = vperm.xlu0 %1098, %v470
      %v1100 = vpop.permute.xlu0 %1099
      %1103 = vset.pattern.permute.xlu0 0
      %1104 = vperm.xlu0 %1103, %v471
      %v1105 = vpop.permute.xlu0 %1104
      %1108 = vset.pattern.permute.xlu0 0
      %1109 = vperm.xlu0 %1108, %v472
      %v1110 = vpop.permute.xlu0 %1109
      %1113 = vset.pattern.permute.xlu0 0
      %1114 = vperm.xlu0 %1113, %v473
      %v1115 = vpop.permute.xlu0 %1114
      %1118 = vset.pattern.permute.xlu0 0
      %1119 = vperm.xlu0 %1118, %v474
      %v1120 = vpop.permute.xlu0 %1119
      %1123 = vset.pattern.permute.xlu0 0
      %1124 = vperm.xlu0 %1123, %v475
      %v1125 = vpop.permute.xlu0 %1124
      %1128 = vset.pattern.permute.xlu0 0
      %1129 = vperm.xlu0 %1128, %v476
      %v1130 = vpop.permute.xlu0 %1129
      %1133 = vset.pattern.permute.xlu0 0
      %1134 = vperm.xlu0 %1133, %v477
      %v1135 = vpop.permute.xlu0 %1134
      %1138 = vset.pattern.permute.xlu0 0
      %1139 = vperm.xlu0 %1138, %v478
      %v1140 = vpop.permute.xlu0 %1139
      %1143 = vset.pattern.permute.xlu0 0
      %1144 = vperm.xlu0 %1143, %v479
      %v1145 = vpop.permute.xlu0 %1144
      %1148 = vset.pattern.permute.xlu0 0
      %1149 = vperm.xlu0 %1148, %v480
      %v1150 = vpop.permute.xlu0 %1149
      %1153 = vset.pattern.permute.xlu0 0
      %1154 = vperm.xlu0 %1153, %v481
      %v1155 = vpop.permute.xlu0 %1154
      %1158 = vset.pattern.permute.xlu0 0
      %1159 = vperm.xlu0 %1158, %v482
      %v1160 = vpop.permute.xlu0 %1159
      %1163 = vset.pattern.permute.xlu0 0
      %1164 = vperm.xlu0 %1163, %v483
      %v1165 = vpop.permute.xlu0 %1164
      %1168 = vset.pattern.permute.xlu0 0
      %1169 = vperm.xlu0 %1168, %v484
      %v1170 = vpop.permute.xlu0 %1169
      %1173 = vset.pattern.permute.xlu0 0
      %1174 = vperm.xlu0 %1173, %v485
      %v1175 = vpop.permute.xlu0 %1174
      %1178 = vset.pattern.permute.xlu0 0
      %1179 = vperm.xlu0 %1178, %v486
      %v1180 = vpop.permute.xlu0 %1179
      %1183 = vset.pattern.permute.xlu0 0
      %1184 = vperm.xlu0 %1183, %v487
      %v1185 = vpop.permute.xlu0 %1184
      %1188 = vset.pattern.permute.xlu0 0
      %1189 = vperm.xlu0 %1188, %v488
      %v1190 = vpop.permute.xlu0 %1189
      %1193 = vset.pattern.permute.xlu0 0
      %1194 = vperm.xlu0 %1193, %v489
      %v1195 = vpop.permute.xlu0 %1194
      %1198 = vset.pattern.permute.xlu0 0
      %1199 = vperm.xlu0 %1198, %v490
      %v1200 = vpop.permute.xlu0 %1199
      %1203 = vset.pattern.permute.xlu0 0
      %1204 = vperm.xlu0 %1203, %v491
      %v1205 = vpop.permute.xlu0 %1204
      %v1207 = vmul.f32 %v1015, %v1050
      %v1208 = vmul.f32 %v1016, %v1055
      %v1209 = vmul.f32 %v1017, %v1060
      %v1210 = vmul.f32 %v1018, %v1065
      %v1211 = vmul.f32 %v1019, %v1070
      %v1212 = vmul.f32 %v1020, %v1075
      %v1213 = vmul.f32 %v1021, %v1080
      %v1214 = vmul.f32 %v1022, %v1085
      %v1215 = vmul.f32 %v1023, %v1090
      %v1216 = vmul.f32 %v1024, %v1095
      %v1217 = vmul.f32 %v1025, %v1100
      %v1218 = vmul.f32 %v1026, %v1105
      %v1219 = vmul.f32 %v1027, %v1110
      %v1220 = vmul.f32 %v1028, %v1115
      %v1221 = vmul.f32 %v1029, %v1120
      %v1222 = vmul.f32 %v1030, %v1125
      %v1223 = vmul.f32 %v1031, %v1130
      %v1224 = vmul.f32 %v1032, %v1135
      %v1225 = vmul.f32 %v1033, %v1140
      %v1226 = vmul.f32 %v1034, %v1145
      %v1227 = vmul.f32 %v1035, %v1150
      %v1228 = vmul.f32 %v1036, %v1155
      %v1229 = vmul.f32 %v1037, %v1160
      %v1230 = vmul.f32 %v1038, %v1165
      %v1231 = vmul.f32 %v1039, %v1170
      %v1232 = vmul.f32 %v1040, %v1175
      %v1233 = vmul.f32 %v1041, %v1180
      %v1234 = vmul.f32 %v1042, %v1185
      %v1235 = vmul.f32 %v1043, %v1190
      %v1236 = vmul.f32 %v1044, %v1195
      %v1237 = vmul.f32 %v1045, %v1200
      %v1238 = vmul.f32 %v1046, %v1205
      %v1239 = vadd.f32 %v1207, 0.0
      %v1240 = vadd.f32 %v1208, 0.0
      %v1241 = vadd.f32 %v1209, 0.0
      %v1242 = vadd.f32 %v1210, 0.0
      %v1243 = vadd.f32 %v1211, 0.0
      %v1244 = vadd.f32 %v1212, 0.0
      %v1245 = vadd.f32 %v1213, 0.0
      %v1246 = vadd.f32 %v1214, 0.0
      %v1247 = vadd.f32 %v1215, 0.0
      %v1248 = vadd.f32 %v1216, 0.0
      %v1249 = vadd.f32 %v1217, 0.0
      %v1250 = vadd.f32 %v1218, 0.0
      %v1251 = vadd.f32 %v1219, 0.0
      %v1252 = vadd.f32 %v1220, 0.0
      %v1253 = vadd.f32 %v1221, 0.0
      %v1254 = vadd.f32 %v1222, 0.0
      %v1255 = vadd.f32 %v1223, 0.0
      %v1256 = vadd.f32 %v1224, 0.0
      %v1257 = vadd.f32 %v1225, 0.0
      %v1258 = vadd.f32 %v1226, 0.0
      %v1259 = vadd.f32 %v1227, 0.0
      %v1260 = vadd.f32 %v1228, 0.0
      %v1261 = vadd.f32 %v1229, 0.0
      %v1262 = vadd.f32 %v1230, 0.0
      %v1263 = vadd.f32 %v1231, 0.0
      %v1264 = vadd.f32 %v1232, 0.0
      %v1265 = vadd.f32 %v1233, 0.0
      %v1266 = vadd.f32 %v1234, 0.0
      %v1267 = vadd.f32 %v1235, 0.0
      %v1268 = vadd.f32 %v1236, 0.0
      %v1269 = vadd.f32 %v1237, 0.0
      %v1270 = vadd.f32 %v1238, 0.0
      %v1271 = vld [vmem:[#allocation2 + $0x8] sm:$0xff]
      %v1272 = vld [vmem:[#allocation2 + $0x10] sm:$0xff]
      %v1273 = vld [vmem:[#allocation2 + $0x18] sm:$0xff]
      %v1274 = vld [vmem:[#allocation2 + $0x20] sm:$0xff]
      %v1275 = vld [vmem:[#allocation2 + $0x28] sm:$0xff]
      %v1276 = vld [vmem:[#allocation2 + $0x30] sm:$0xff]
      %v1277 = vld [vmem:[#allocation2 + $0x38] sm:$0xff]
      %v1278 = vld [vmem:[#allocation2 + $0x40] sm:$0xff]
      %v1279 = vld [vmem:[#allocation2 + $0x48] sm:$0xff]
      %v1280 = vld [vmem:[#allocation2 + $0x50] sm:$0xff]
      %v1281 = vld [vmem:[#allocation2 + $0x58] sm:$0xff]
      %v1282 = vld [vmem:[#allocation2 + $0x60] sm:$0xff]
      %v1283 = vld [vmem:[#allocation2 + $0x68] sm:$0xff]
      %v1284 = vld [vmem:[#allocation2 + $0x70] sm:$0xff]
      %v1285 = vld [vmem:[#allocation2 + $0x78] sm:$0xff]
      %v1286 = vld [vmem:[#allocation2 + $0x80] sm:$0xff]
      %v1287 = vld [vmem:[#allocation2 + $0x88] sm:$0xff]
      %v1288 = vld [vmem:[#allocation2 + $0x90] sm:$0xff]
      %v1289 = vld [vmem:[#allocation2 + $0x98] sm:$0xff]
      %v1290 = vld [vmem:[#allocation2 + $0xa0] sm:$0xff]
      %v1291 = vld [vmem:[#allocation2 + $0xa8] sm:$0xff]
      %v1292 = vld [vmem:[#allocation2 + $0xb0] sm:$0xff]
      %v1293 = vld [vmem:[#allocation2 + $0xb8] sm:$0xff]
      %v1294 = vld [vmem:[#allocation2 + $0xc0] sm:$0xff]
      %v1295 = vld [vmem:[#allocation2 + $0xc8] sm:$0xff]
      %v1296 = vld [vmem:[#allocation2 + $0xd0] sm:$0xff]
      %v1297 = vld [vmem:[#allocation2 + $0xd8] sm:$0xff]
      %v1298 = vld [vmem:[#allocation2 + $0xe0] sm:$0xff]
      %v1299 = vld [vmem:[#allocation2 + $0xe8] sm:$0xff]
      %v1300 = vld [vmem:[#allocation2 + $0xf0] sm:$0xff]
      %v1301 = vld [vmem:[#allocation2 + $0xf8] sm:$0xff]
      %v1302 = vld [vmem:[#allocation2 + $0x100] sm:$0xff]
      %v1303 = vpack.c.bf16 %v1272, %v1271
      %v1304 = vpack.c.bf16 %v1274, %v1273
      %v1305 = vpack.c.bf16 %v1276, %v1275
      %v1306 = vpack.c.bf16 %v1278, %v1277
      %v1307 = vpack.c.bf16 %v1280, %v1279
      %v1308 = vpack.c.bf16 %v1282, %v1281
      %v1309 = vpack.c.bf16 %v1284, %v1283
      %v1310 = vpack.c.bf16 %v1286, %v1285
      %v1311 = vpack.c.bf16 %v1288, %v1287
      %v1312 = vpack.c.bf16 %v1290, %v1289
      %v1313 = vpack.c.bf16 %v1292, %v1291
      %v1314 = vpack.c.bf16 %v1294, %v1293
      %v1315 = vpack.c.bf16 %v1296, %v1295
      %v1316 = vpack.c.bf16 %v1298, %v1297
      %v1317 = vpack.c.bf16 %v1300, %v1299
      %v1318 = vpack.c.bf16 %v1302, %v1301
      %s1319 = scalar_lea.vmem %s3, 8
      %v1320 = vld [vmem:[%s1319] sm:$0xf]
      %v1321 = vld [vmem:[%s1319 + $0x4] sm:$0xf]
      %v1322 = vld [vmem:[#allocation2 + $0x108] sm:$0xff]
      %v1323 = vld [vmem:[#allocation2 + $0x110] sm:$0xff]
      %v1324 = vpack.c.bf16 %v1323, %v1322
      %s1325 = scalar_lea.vmem %s3, 32
      %v1326 = vld [vmem:[%s1325] sm:$0xf]
      %v1327 = vld [vmem:[%s1325 + $0x4] sm:$0xf]
      %v1330 = vunpack.c.l.b16 %v1326
      %v1331 = vunpack.c.l.b16 %v1327
      %v1332 = vpack.c.b16 %v1331, %v1330
      %v1335 = vsel %vm421, %v1304, 0
      %v1338 = vsel %vm421, %v1305, 0
      %v1341 = vsel %vm421, %v1306, 0
      %v1344 = vsel %vm421, %v1307, 0
      %v1347 = vsel %vm421, %v1308, 0
      %v1350 = vsel %vm421, %v1309, 0
      %v1353 = vsel %vm421, %v1310, 0
      %v1356 = vsel %vm421, %v1311, 0
      %v1359 = vsel %vm421, %v1312, 0
      %v1362 = vsel %vm421, %v1313, 0
      %v1365 = vsel %vm421, %v1314, 0
      %v1368 = vsel %vm421, %v1315, 0
      %v1371 = vsel %vm421, %v1316, 0
      %v1374 = vsel %vm421, %v1317, 0
      %v1377 = vsel %vm421, %v1318, 0
      %v1380 = vsel %vm421, %v1324, 0
      %1382 = vmatpush.bf16.msra.mxu0 0
      %1383 = vmatpush.bf16.msra.mxu0 0
      %1384 = vmatpush.bf16.msra.mxu0 0
      %1385 = vmatpush.bf16.msra.mxu0 0
      %1386 = vmatpush.bf16.msra.mxu0 0
      %1387 = vmatpush.bf16.msra.mxu0 0
      %1388 = vmatpush.bf16.msra.mxu0 0
      %1389 = vmatpush.bf16.msra.mxu0 %v1332
      %1390 = vmatmul.bf16.gmra.mxu0 %v1335
      %v1391 = vpop.f32.mrf.mxu0
      %v1392 = vadd.f32 0.0, %v1391
      %v1393 = vpop.f32.mrf.mxu0
      %v1394 = vadd.f32 0.0, %v1393
      %1395 = vmatmul.bf16.gmra.mxu0 %v1338
      %v1396 = vpop.f32.mrf.mxu0
      %v1397 = vadd.f32 0.0, %v1396
      %v1398 = vpop.f32.mrf.mxu0
      %v1399 = vadd.f32 0.0, %v1398
      %1400 = vmatmul.bf16.gmra.mxu0 %v1341
      %v1401 = vpop.f32.mrf.mxu0
      %v1402 = vadd.f32 0.0, %v1401
      %v1403 = vpop.f32.mrf.mxu0
      %v1404 = vadd.f32 0.0, %v1403
      %1405 = vmatmul.bf16.gmra.mxu0 %v1344
      %v1406 = vpop.f32.mrf.mxu0
      %v1407 = vadd.f32 0.0, %v1406
      %v1408 = vpop.f32.mrf.mxu0
      %v1409 = vadd.f32 0.0, %v1408
      %1410 = vmatmul.bf16.gmra.mxu0 %v1347
      %v1411 = vpop.f32.mrf.mxu0
      %v1412 = vadd.f32 0.0, %v1411
      %v1413 = vpop.f32.mrf.mxu0
      %v1414 = vadd.f32 0.0, %v1413
      %1415 = vmatmul.bf16.gmra.mxu0 %v1350
      %v1416 = vpop.f32.mrf.mxu0
      %v1417 = vadd.f32 0.0, %v1416
      %v1418 = vpop.f32.mrf.mxu0
      %v1419 = vadd.f32 0.0, %v1418
      %1420 = vmatmul.bf16.gmra.mxu0 %v1353
      %v1421 = vpop.f32.mrf.mxu0
      %v1422 = vadd.f32 0.0, %v1421
      %v1423 = vpop.f32.mrf.mxu0
      %v1424 = vadd.f32 0.0, %v1423
      %1425 = vmatmul.bf16.gmra.mxu0 %v1356
      %v1426 = vpop.f32.mrf.mxu0
      %v1427 = vadd.f32 0.0, %v1426
      %v1428 = vpop.f32.mrf.mxu0
      %v1429 = vadd.f32 0.0, %v1428
      %1430 = vmatmul.bf16.gmra.mxu0 %v1359
      %v1431 = vpop.f32.mrf.mxu0
      %v1432 = vadd.f32 0.0, %v1431
      %v1433 = vpop.f32.mrf.mxu0
      %v1434 = vadd.f32 0.0, %v1433
      %1435 = vmatmul.bf16.gmra.mxu0 %v1362
      %v1436 = vpop.f32.mrf.mxu0
      %v1437 = vadd.f32 0.0, %v1436
      %v1438 = vpop.f32.mrf.mxu0
      %v1439 = vadd.f32 0.0, %v1438
      %1440 = vmatmul.bf16.gmra.mxu0 %v1365
      %v1441 = vpop.f32.mrf.mxu0
      %v1442 = vadd.f32 0.0, %v1441
      %v1443 = vpop.f32.mrf.mxu0
      %v1444 = vadd.f32 0.0, %v1443
      %1445 = vmatmul.bf16.gmra.mxu0 %v1368
      %v1446 = vpop.f32.mrf.mxu0
      %v1447 = vadd.f32 0.0, %v1446
      %v1448 = vpop.f32.mrf.mxu0
      %v1449 = vadd.f32 0.0, %v1448
      %1450 = vmatmul.bf16.gmra.mxu0 %v1371
      %v1451 = vpop.f32.mrf.mxu0
      %v1452 = vadd.f32 0.0, %v1451
      %v1453 = vpop.f32.mrf.mxu0
      %v1454 = vadd.f32 0.0, %v1453
      %1455 = vmatmul.bf16.gmra.mxu0 %v1374
      %v1456 = vpop.f32.mrf.mxu0
      %v1457 = vadd.f32 0.0, %v1456
      %v1458 = vpop.f32.mrf.mxu0
      %v1459 = vadd.f32 0.0, %v1458
      %1460 = vmatmul.bf16.gmra.mxu0 %v1377
      %v1461 = vpop.f32.mrf.mxu0
      %v1462 = vadd.f32 0.0, %v1461
      %v1463 = vpop.f32.mrf.mxu0
      %v1464 = vadd.f32 0.0, %v1463
      %1465 = vmatmul.bf16.gmra.mxu0 %v1380
      %v1466 = vpop.f32.mrf.mxu0
      %v1467 = vadd.f32 0.0, %v1466
      %v1468 = vpop.f32.mrf.mxu0
      %v1469 = vadd.f32 0.0, %v1468
      %1470 = vdwg.mxu0
      %v1473 = vunpack.c.l.b16 %v1320
      %v1474 = vunpack.c.l.b16 %v1321
      %v1475 = vpack.c.b16 %v1474, %v1473
      %v1478 = vsel %vm421, %v1303, 0
      %1480 = vmatpush.bf16.msra.mxu0 0
      %1481 = vmatpush.bf16.msra.mxu0 0
      %1482 = vmatpush.bf16.msra.mxu0 0
      %1483 = vmatpush.bf16.msra.mxu0 0
      %1484 = vmatpush.bf16.msra.mxu0 0
      %1485 = vmatpush.bf16.msra.mxu0 0
      %1486 = vmatpush.bf16.msra.mxu0 0
      %1487 = vmatpush.bf16.msra.mxu0 %v1475
      %1488 = vmatmul.bf16.gmra.mxu0 %v1478
      %v1489 = vpop.f32.mrf.mxu0
      %v1490 = vadd.f32 %v1392, %v1489
      %v1491 = vpop.f32.mrf.mxu0
      %v1492 = vadd.f32 %v1394, %v1491
      %1493 = vmatmul.bf16.gmra.mxu0 %v1335
      %v1494 = vpop.f32.mrf.mxu0
      %v1495 = vadd.f32 %v1397, %v1494
      %v1496 = vpop.f32.mrf.mxu0
      %v1497 = vadd.f32 %v1399, %v1496
      %1498 = vmatmul.bf16.gmra.mxu0 %v1338
      %v1499 = vpop.f32.mrf.mxu0
      %v1500 = vadd.f32 %v1402, %v1499
      %v1501 = vpop.f32.mrf.mxu0
      %v1502 = vadd.f32 %v1404, %v1501
      %1503 = vmatmul.bf16.gmra.mxu0 %v1341
      %v1504 = vpop.f32.mrf.mxu0
      %v1505 = vadd.f32 %v1407, %v1504
      %v1506 = vpop.f32.mrf.mxu0
      %v1507 = vadd.f32 %v1409, %v1506
      %1508 = vmatmul.bf16.gmra.mxu0 %v1344
      %v1509 = vpop.f32.mrf.mxu0
      %v1510 = vadd.f32 %v1412, %v1509
      %v1511 = vpop.f32.mrf.mxu0
      %v1512 = vadd.f32 %v1414, %v1511
      %1513 = vmatmul.bf16.gmra.mxu0 %v1347
      %v1514 = vpop.f32.mrf.mxu0
      %v1515 = vadd.f32 %v1417, %v1514
      %v1516 = vpop.f32.mrf.mxu0
      %v1517 = vadd.f32 %v1419, %v1516
      %1518 = vmatmul.bf16.gmra.mxu0 %v1350
      %v1519 = vpop.f32.mrf.mxu0
      %v1520 = vadd.f32 %v1422, %v1519
      %v1521 = vpop.f32.mrf.mxu0
      %v1522 = vadd.f32 %v1424, %v1521
      %1523 = vmatmul.bf16.gmra.mxu0 %v1353
      %v1524 = vpop.f32.mrf.mxu0
      %v1525 = vadd.f32 %v1427, %v1524
      %v1526 = vpop.f32.mrf.mxu0
      %v1527 = vadd.f32 %v1429, %v1526
      %1528 = vmatmul.bf16.gmra.mxu0 %v1356
      %v1529 = vpop.f32.mrf.mxu0
      %v1530 = vadd.f32 %v1432, %v1529
      %v1531 = vpop.f32.mrf.mxu0
      %v1532 = vadd.f32 %v1434, %v1531
      %1533 = vmatmul.bf16.gmra.mxu0 %v1359
      %v1534 = vpop.f32.mrf.mxu0
      %v1535 = vadd.f32 %v1437, %v1534
      %v1536 = vpop.f32.mrf.mxu0
      %v1537 = vadd.f32 %v1439, %v1536
      %1538 = vmatmul.bf16.gmra.mxu0 %v1362
      %v1539 = vpop.f32.mrf.mxu0
      %v1540 = vadd.f32 %v1442, %v1539
      %v1541 = vpop.f32.mrf.mxu0
      %v1542 = vadd.f32 %v1444, %v1541
      %1543 = vmatmul.bf16.gmra.mxu0 %v1365
      %v1544 = vpop.f32.mrf.mxu0
      %v1545 = vadd.f32 %v1447, %v1544
      %v1546 = vpop.f32.mrf.mxu0
      %v1547 = vadd.f32 %v1449, %v1546
      %1548 = vmatmul.bf16.gmra.mxu0 %v1368
      %v1549 = vpop.f32.mrf.mxu0
      %v1550 = vadd.f32 %v1452, %v1549
      %v1551 = vpop.f32.mrf.mxu0
      %v1552 = vadd.f32 %v1454, %v1551
      %1553 = vmatmul.bf16.gmra.mxu0 %v1371
      %v1554 = vpop.f32.mrf.mxu0
      %v1555 = vadd.f32 %v1457, %v1554
      %v1556 = vpop.f32.mrf.mxu0
      %v1557 = vadd.f32 %v1459, %v1556
      %1558 = vmatmul.bf16.gmra.mxu0 %v1374
      %v1559 = vpop.f32.mrf.mxu0
      %v1560 = vadd.f32 %v1462, %v1559
      %v1561 = vpop.f32.mrf.mxu0
      %v1562 = vadd.f32 %v1464, %v1561
      %1563 = vmatmul.bf16.gmra.mxu0 %v1377
      %v1564 = vpop.f32.mrf.mxu0
      %v1565 = vadd.f32 %v1467, %v1564
      %v1566 = vpop.f32.mrf.mxu0
      %v1567 = vadd.f32 %v1469, %v1566
      %1568 = vdwg.mxu0
      %v1569 = vld [vmem:[#allocation2 + $0x28] sm:$0xff]
      %v1570 = vld [vmem:[#allocation2 + $0x30] sm:$0xff]
      %v1571 = vld [vmem:[#allocation2 + $0x38] sm:$0xff]
      %v1572 = vld [vmem:[#allocation2 + $0x40] sm:$0xff]
      %v1573 = vld [vmem:[#allocation2 + $0x48] sm:$0xff]
      %v1574 = vld [vmem:[#allocation2 + $0x50] sm:$0xff]
      %v1575 = vld [vmem:[#allocation2 + $0x58] sm:$0xff]
      %v1576 = vld [vmem:[#allocation2 + $0x60] sm:$0xff]
      %v1577 = vld [vmem:[#allocation2 + $0x68] sm:$0xff]
      %v1578 = vld [vmem:[#allocation2 + $0x70] sm:$0xff]
      %v1579 = vld [vmem:[#allocation2 + $0x78] sm:$0xff]
      %v1580 = vld [vmem:[#allocation2 + $0x80] sm:$0xff]
      %v1581 = vld [vmem:[#allocation2 + $0x88] sm:$0xff]
      %v1582 = vld [vmem:[#allocation2 + $0x90] sm:$0xff]
      %v1583 = vld [vmem:[#allocation2 + $0x98] sm:$0xff]
      %v1584 = vld [vmem:[#allocation2 + $0xa0] sm:$0xff]
      %v1585 = vld [vmem:[#allocation2 + $0xa8] sm:$0xff]
      %v1586 = vld [vmem:[#allocation2 + $0xb0] sm:$0xff]
      %v1587 = vld [vmem:[#allocation2 + $0xb8] sm:$0xff]
      %v1588 = vld [vmem:[#allocation2 + $0xc0] sm:$0xff]
      %v1589 = vld [vmem:[#allocation2 + $0xc8] sm:$0xff]
      %v1590 = vld [vmem:[#allocation2 + $0xd0] sm:$0xff]
      %v1591 = vld [vmem:[#allocation2 + $0xd8] sm:$0xff]
      %v1592 = vld [vmem:[#allocation2 + $0xe0] sm:$0xff]
      %v1593 = vld [vmem:[#allocation2 + $0xe8] sm:$0xff]
      %v1594 = vld [vmem:[#allocation2 + $0xf0] sm:$0xff]
      %v1595 = vld [vmem:[#allocation2 + $0xf8] sm:$0xff]
      %v1596 = vld [vmem:[#allocation2 + $0x100] sm:$0xff]
      %v1597 = vld [vmem:[#allocation2 + $0x108] sm:$0xff]
      %v1598 = vld [vmem:[#allocation2 + $0x110] sm:$0xff]
      %v1599 = vld [vmem:[#allocation2 + $0x118] sm:$0xff]
      %v1600 = vld [vmem:[#allocation2 + $0x120] sm:$0xff]
      %v1601 = vpack.c.bf16 %v1570, %v1569
      %v1602 = vpack.c.bf16 %v1572, %v1571
      %v1603 = vpack.c.bf16 %v1574, %v1573
      %v1604 = vpack.c.bf16 %v1576, %v1575
      %v1605 = vpack.c.bf16 %v1578, %v1577
      %v1606 = vpack.c.bf16 %v1580, %v1579
      %v1607 = vpack.c.bf16 %v1582, %v1581
      %v1608 = vpack.c.bf16 %v1584, %v1583
      %v1609 = vpack.c.bf16 %v1586, %v1585
      %v1610 = vpack.c.bf16 %v1588, %v1587
      %v1611 = vpack.c.bf16 %v1590, %v1589
      %v1612 = vpack.c.bf16 %v1592, %v1591
      %v1613 = vpack.c.bf16 %v1594, %v1593
      %v1614 = vpack.c.bf16 %v1596, %v1595
      %v1615 = vpack.c.bf16 %v1598, %v1597
      %v1616 = vpack.c.bf16 %v1600, %v1599
      %s1617 = scalar_lea.vmem %s3, 56
      %v1618 = vld [vmem:[%s1617] sm:$0xf]
      %v1619 = vld [vmem:[%s1617 + $0x4] sm:$0xf]
      %v1622 = vunpack.c.l.b16 %v1618
      %v1623 = vunpack.c.l.b16 %v1619
      %v1624 = vpack.c.b16 %v1623, %v1622
      %v1627 = vsel %vm421, %v1601, 0
      %v1630 = vsel %vm421, %v1602, 0
      %v1633 = vsel %vm421, %v1603, 0
      %v1636 = vsel %vm421, %v1604, 0
      %v1639 = vsel %vm421, %v1605, 0
      %v1642 = vsel %vm421, %v1606, 0
      %v1645 = vsel %vm421, %v1607, 0
      %v1648 = vsel %vm421, %v1608, 0
      %v1651 = vsel %vm421, %v1609, 0
      %v1654 = vsel %vm421, %v1610, 0
      %v1657 = vsel %vm421, %v1611, 0
      %v1660 = vsel %vm421, %v1612, 0
      %v1663 = vsel %vm421, %v1613, 0
      %v1666 = vsel %vm421, %v1614, 0
      %v1669 = vsel %vm421, %v1615, 0
      %v1672 = vsel %vm421, %v1616, 0
      %1674 = vmatpush.bf16.msra.mxu0 0
      %1675 = vmatpush.bf16.msra.mxu0 0
      %1676 = vmatpush.bf16.msra.mxu0 0
      %1677 = vmatpush.bf16.msra.mxu0 0
      %1678 = vmatpush.bf16.msra.mxu0 0
      %1679 = vmatpush.bf16.msra.mxu0 0
      %1680 = vmatpush.bf16.msra.mxu0 0
      %1681 = vmatpush.bf16.msra.mxu0 %v1624
      %1682 = vmatmul.bf16.gmra.mxu0 %v1627
      %v1683 = vpop.f32.mrf.mxu0
      %v1684 = vadd.f32 0.0, %v1683
      %v1685 = vpop.f32.mrf.mxu0
      %v1686 = vadd.f32 0.0, %v1685
      %1687 = vmatmul.bf16.gmra.mxu0 %v1630
      %v1688 = vpop.f32.mrf.mxu0
      %v1689 = vadd.f32 0.0, %v1688
      %v1690 = vpop.f32.mrf.mxu0
      %v1691 = vadd.f32 0.0, %v1690
      %1692 = vmatmul.bf16.gmra.mxu0 %v1633
      %v1693 = vpop.f32.mrf.mxu0
      %v1694 = vadd.f32 0.0, %v1693
      %v1695 = vpop.f32.mrf.mxu0
      %v1696 = vadd.f32 0.0, %v1695
      %1697 = vmatmul.bf16.gmra.mxu0 %v1636
      %v1698 = vpop.f32.mrf.mxu0
      %v1699 = vadd.f32 0.0, %v1698
      %v1700 = vpop.f32.mrf.mxu0
      %v1701 = vadd.f32 0.0, %v1700
      %1702 = vmatmul.bf16.gmra.mxu0 %v1639
      %v1703 = vpop.f32.mrf.mxu0
      %v1704 = vadd.f32 0.0, %v1703
      %v1705 = vpop.f32.mrf.mxu0
      %v1706 = vadd.f32 0.0, %v1705
      %1707 = vmatmul.bf16.gmra.mxu0 %v1642
      %v1708 = vpop.f32.mrf.mxu0
      %v1709 = vadd.f32 0.0, %v1708
      %v1710 = vpop.f32.mrf.mxu0
      %v1711 = vadd.f32 0.0, %v1710
      %1712 = vmatmul.bf16.gmra.mxu0 %v1645
      %v1713 = vpop.f32.mrf.mxu0
      %v1714 = vadd.f32 0.0, %v1713
      %v1715 = vpop.f32.mrf.mxu0
      %v1716 = vadd.f32 0.0, %v1715
      %1717 = vmatmul.bf16.gmra.mxu0 %v1648
      %v1718 = vpop.f32.mrf.mxu0
      %v1719 = vadd.f32 0.0, %v1718
      %v1720 = vpop.f32.mrf.mxu0
      %v1721 = vadd.f32 0.0, %v1720
      %1722 = vmatmul.bf16.gmra.mxu0 %v1651
      %v1723 = vpop.f32.mrf.mxu0
      %v1724 = vadd.f32 0.0, %v1723
      %v1725 = vpop.f32.mrf.mxu0
      %v1726 = vadd.f32 0.0, %v1725
      %1727 = vmatmul.bf16.gmra.mxu0 %v1654
      %v1728 = vpop.f32.mrf.mxu0
      %v1729 = vadd.f32 0.0, %v1728
      %v1730 = vpop.f32.mrf.mxu0
      %v1731 = vadd.f32 0.0, %v1730
      %1732 = vmatmul.bf16.gmra.mxu0 %v1657
      %v1733 = vpop.f32.mrf.mxu0
      %v1734 = vadd.f32 0.0, %v1733
      %v1735 = vpop.f32.mrf.mxu0
      %v1736 = vadd.f32 0.0, %v1735
      %1737 = vmatmul.bf16.gmra.mxu0 %v1660
      %v1738 = vpop.f32.mrf.mxu0
      %v1739 = vadd.f32 0.0, %v1738
      %v1740 = vpop.f32.mrf.mxu0
      %v1741 = vadd.f32 0.0, %v1740
      %1742 = vmatmul.bf16.gmra.mxu0 %v1663
      %v1743 = vpop.f32.mrf.mxu0
      %v1744 = vadd.f32 0.0, %v1743
      %v1745 = vpop.f32.mrf.mxu0
      %v1746 = vadd.f32 0.0, %v1745
      %1747 = vmatmul.bf16.gmra.mxu0 %v1666
      %v1748 = vpop.f32.mrf.mxu0
      %v1749 = vadd.f32 0.0, %v1748
      %v1750 = vpop.f32.mrf.mxu0
      %v1751 = vadd.f32 0.0, %v1750
      %1752 = vmatmul.bf16.gmra.mxu0 %v1669
      %v1753 = vpop.f32.mrf.mxu0
      %v1754 = vadd.f32 0.0, %v1753
      %v1755 = vpop.f32.mrf.mxu0
      %v1756 = vadd.f32 0.0, %v1755
      %1757 = vmatmul.bf16.gmra.mxu0 %v1672
      %v1758 = vpop.f32.mrf.mxu0
      %v1759 = vadd.f32 0.0, %v1758
      %v1760 = vpop.f32.mrf.mxu0
      %v1761 = vadd.f32 0.0, %v1760
      %1762 = vdwg.mxu0
      %v1763 = vadd.f32 %v1490, %v1684
      %v1764 = vadd.f32 %v1492, %v1686
      %v1765 = vadd.f32 %v1495, %v1689
      %v1766 = vadd.f32 %v1497, %v1691
      %v1767 = vadd.f32 %v1500, %v1694
      %v1768 = vadd.f32 %v1502, %v1696
      %v1769 = vadd.f32 %v1505, %v1699
      %v1770 = vadd.f32 %v1507, %v1701
      %v1771 = vadd.f32 %v1510, %v1704
      %v1772 = vadd.f32 %v1512, %v1706
      %v1773 = vadd.f32 %v1515, %v1709
      %v1774 = vadd.f32 %v1517, %v1711
      %v1775 = vadd.f32 %v1520, %v1714
      %v1776 = vadd.f32 %v1522, %v1716
      %v1777 = vadd.f32 %v1525, %v1719
      %v1778 = vadd.f32 %v1527, %v1721
      %v1779 = vadd.f32 %v1530, %v1724
      %v1780 = vadd.f32 %v1532, %v1726
      %v1781 = vadd.f32 %v1535, %v1729
      %v1782 = vadd.f32 %v1537, %v1731
      %v1783 = vadd.f32 %v1540, %v1734
      %v1784 = vadd.f32 %v1542, %v1736
      %v1785 = vadd.f32 %v1545, %v1739
      %v1786 = vadd.f32 %v1547, %v1741
      %v1787 = vadd.f32 %v1550, %v1744
      %v1788 = vadd.f32 %v1552, %v1746
      %v1789 = vadd.f32 %v1555, %v1749
      %v1790 = vadd.f32 %v1557, %v1751
      %v1791 = vadd.f32 %v1560, %v1754
      %v1792 = vadd.f32 %v1562, %v1756
      %v1793 = vadd.f32 %v1565, %v1759
      %v1794 = vadd.f32 %v1567, %v1761
      %v1795 = vadd.f32 %v1239, %v1763
      %v1796 = vadd.f32 %v1240, %v1764
      %v1797 = vadd.f32 %v1241, %v1765
      %v1798 = vadd.f32 %v1242, %v1766
      %v1799 = vadd.f32 %v1243, %v1767
      %v1800 = vadd.f32 %v1244, %v1768
      %v1801 = vadd.f32 %v1245, %v1769
      %v1802 = vadd.f32 %v1246, %v1770
      %v1803 = vadd.f32 %v1247, %v1771
      %v1804 = vadd.f32 %v1248, %v1772
      %v1805 = vadd.f32 %v1249, %v1773
      %v1806 = vadd.f32 %v1250, %v1774
      %v1807 = vadd.f32 %v1251, %v1775
      %v1808 = vadd.f32 %v1252, %v1776
      %v1809 = vadd.f32 %v1253, %v1777
      %v1810 = vadd.f32 %v1254, %v1778
      %v1811 = vadd.f32 %v1255, %v1779
      %v1812 = vadd.f32 %v1256, %v1780
      %v1813 = vadd.f32 %v1257, %v1781
      %v1814 = vadd.f32 %v1258, %v1782
      %v1815 = vadd.f32 %v1259, %v1783
      %v1816 = vadd.f32 %v1260, %v1784
      %v1817 = vadd.f32 %v1261, %v1785
      %v1818 = vadd.f32 %v1262, %v1786
      %v1819 = vadd.f32 %v1263, %v1787
      %v1820 = vadd.f32 %v1264, %v1788
      %v1821 = vadd.f32 %v1265, %v1789
      %v1822 = vadd.f32 %v1266, %v1790
      %v1823 = vadd.f32 %v1267, %v1791
      %v1824 = vadd.f32 %v1268, %v1792
      %v1825 = vadd.f32 %v1269, %v1793
      %v1826 = vadd.f32 %v1270, %v1794
      %v1827 = vld [vmem:[#allocation2 + $0x9] sm:$0xff]
      %v1828 = vld [vmem:[#allocation2 + $0x11] sm:$0xff]
      %v1829 = vld [vmem:[#allocation2 + $0x19] sm:$0xff]
      %v1830 = vld [vmem:[#allocation2 + $0x21] sm:$0xff]
      %v1831 = vld [vmem:[#allocation2 + $0x29] sm:$0xff]
      %v1832 = vld [vmem:[#allocation2 + $0x31] sm:$0xff]
      %v1833 = vld [vmem:[#allocation2 + $0x39] sm:$0xff]
      %v1834 = vld [vmem:[#allocation2 + $0x41] sm:$0xff]
      %v1835 = vld [vmem:[#allocation2 + $0x49] sm:$0xff]
      %v1836 = vld [vmem:[#allocation2 + $0x51] sm:$0xff]
      %v1837 = vld [vmem:[#allocation2 + $0x59] sm:$0xff]
      %v1838 = vld [vmem:[#allocation2 + $0x61] sm:$0xff]
      %v1839 = vld [vmem:[#allocation2 + $0x69] sm:$0xff]
      %v1840 = vld [vmem:[#allocation2 + $0x71] sm:$0xff]
      %v1841 = vld [vmem:[#allocation2 + $0x79] sm:$0xff]
      %v1842 = vld [vmem:[#allocation2 + $0x81] sm:$0xff]
      %v1843 = vld [vmem:[#allocation2 + $0x89] sm:$0xff]
      %v1844 = vld [vmem:[#allocation2 + $0x91] sm:$0xff]
      %v1845 = vld [vmem:[#allocation2 + $0x99] sm:$0xff]
      %v1846 = vld [vmem:[#allocation2 + $0xa1] sm:$0xff]
      %v1847 = vld [vmem:[#allocation2 + $0xa9] sm:$0xff]
      %v1848 = vld [vmem:[#allocation2 + $0xb1] sm:$0xff]
      %v1849 = vld [vmem:[#allocation2 + $0xb9] sm:$0xff]
      %v1850 = vld [vmem:[#allocation2 + $0xc1] sm:$0xff]
      %v1851 = vld [vmem:[#allocation2 + $0xc9] sm:$0xff]
      %v1852 = vld [vmem:[#allocation2 + $0xd1] sm:$0xff]
      %v1853 = vld [vmem:[#allocation2 + $0xd9] sm:$0xff]
      %v1854 = vld [vmem:[#allocation2 + $0xe1] sm:$0xff]
      %v1855 = vld [vmem:[#allocation2 + $0xe9] sm:$0xff]
      %v1856 = vld [vmem:[#allocation2 + $0xf1] sm:$0xff]
      %v1857 = vld [vmem:[#allocation2 + $0xf9] sm:$0xff]
      %v1858 = vld [vmem:[#allocation2 + $0x101] sm:$0xff]
      %v1859 = vpack.c.bf16 %v1828, %v1827
      %v1860 = vpack.c.bf16 %v1830, %v1829
      %v1861 = vpack.c.bf16 %v1832, %v1831
      %v1862 = vpack.c.bf16 %v1834, %v1833
      %v1863 = vpack.c.bf16 %v1836, %v1835
      %v1864 = vpack.c.bf16 %v1838, %v1837
      %v1865 = vpack.c.bf16 %v1840, %v1839
      %v1866 = vpack.c.bf16 %v1842, %v1841
      %v1867 = vpack.c.bf16 %v1844, %v1843
      %v1868 = vpack.c.bf16 %v1846, %v1845
      %v1869 = vpack.c.bf16 %v1848, %v1847
      %v1870 = vpack.c.bf16 %v1850, %v1849
      %v1871 = vpack.c.bf16 %v1852, %v1851
      %v1872 = vpack.c.bf16 %v1854, %v1853
      %v1873 = vpack.c.bf16 %v1856, %v1855
      %v1874 = vpack.c.bf16 %v1858, %v1857
      %s1875 = scalar_lea.vmem %s3, 16
      %v1876 = vld [vmem:[%s1875] sm:$0xf]
      %v1877 = vld [vmem:[%s1875 + $0x4] sm:$0xf]
      %v1878 = vld [vmem:[#allocation2 + $0x109] sm:$0xff]
      %v1879 = vld [vmem:[#allocation2 + $0x111] sm:$0xff]
      %v1880 = vpack.c.bf16 %v1879, %v1878
      %s1881 = scalar_lea.vmem %s3, 40
      %v1882 = vld [vmem:[%s1881] sm:$0xf]
      %v1883 = vld [vmem:[%s1881 + $0x4] sm:$0xf]
      %v1886 = vunpack.c.l.b16 %v1882
      %v1887 = vunpack.c.l.b16 %v1883
      %v1888 = vpack.c.b16 %v1887, %v1886
      %v1891 = vsel %vm421, %v1860, 0
      %v1894 = vsel %vm421, %v1861, 0
      %v1897 = vsel %vm421, %v1862, 0
      %v1900 = vsel %vm421, %v1863, 0
      %v1903 = vsel %vm421, %v1864, 0
      %v1906 = vsel %vm421, %v1865, 0
      %v1909 = vsel %vm421, %v1866, 0
      %v1912 = vsel %vm421, %v1867, 0
      %v1915 = vsel %vm421, %v1868, 0
      %v1918 = vsel %vm421, %v1869, 0
      %v1921 = vsel %vm421, %v1870, 0
      %v1924 = vsel %vm421, %v1871, 0
      %v1927 = vsel %vm421, %v1872, 0
      %v1930 = vsel %vm421, %v1873, 0
      %v1933 = vsel %vm421, %v1874, 0
      %v1936 = vsel %vm421, %v1880, 0
      %1938 = vmatpush.bf16.msra.mxu0 0
      %1939 = vmatpush.bf16.msra.mxu0 0
      %1940 = vmatpush.bf16.msra.mxu0 0
      %1941 = vmatpush.bf16.msra.mxu0 0
      %1942 = vmatpush.bf16.msra.mxu0 0
      %1943 = vmatpush.bf16.msra.mxu0 0
      %1944 = vmatpush.bf16.msra.mxu0 0
      %1945 = vmatpush.bf16.msra.mxu0 %v1888
      %1946 = vmatmul.bf16.gmra.mxu0 %v1891
      %v1947 = vpop.f32.mrf.mxu0
      %v1948 = vadd.f32 0.0, %v1947
      %v1949 = vpop.f32.mrf.mxu0
      %v1950 = vadd.f32 0.0, %v1949
      %1951 = vmatmul.bf16.gmra.mxu0 %v1894
      %v1952 = vpop.f32.mrf.mxu0
      %v1953 = vadd.f32 0.0, %v1952
      %v1954 = vpop.f32.mrf.mxu0
      %v1955 = vadd.f32 0.0, %v1954
      %1956 = vmatmul.bf16.gmra.mxu0 %v1897
      %v1957 = vpop.f32.mrf.mxu0
      %v1958 = vadd.f32 0.0, %v1957
      %v1959 = vpop.f32.mrf.mxu0
      %v1960 = vadd.f32 0.0, %v1959
      %1961 = vmatmul.bf16.gmra.mxu0 %v1900
      %v1962 = vpop.f32.mrf.mxu0
      %v1963 = vadd.f32 0.0, %v1962
      %v1964 = vpop.f32.mrf.mxu0
      %v1965 = vadd.f32 0.0, %v1964
      %1966 = vmatmul.bf16.gmra.mxu0 %v1903
      %v1967 = vpop.f32.mrf.mxu0
      %v1968 = vadd.f32 0.0, %v1967
      %v1969 = vpop.f32.mrf.mxu0
      %v1970 = vadd.f32 0.0, %v1969
      %1971 = vmatmul.bf16.gmra.mxu0 %v1906
      %v1972 = vpop.f32.mrf.mxu0
      %v1973 = vadd.f32 0.0, %v1972
      %v1974 = vpop.f32.mrf.mxu0
      %v1975 = vadd.f32 0.0, %v1974
      %1976 = vmatmul.bf16.gmra.mxu0 %v1909
      %v1977 = vpop.f32.mrf.mxu0
      %v1978 = vadd.f32 0.0, %v1977
      %v1979 = vpop.f32.mrf.mxu0
      %v1980 = vadd.f32 0.0, %v1979
      %1981 = vmatmul.bf16.gmra.mxu0 %v1912
      %v1982 = vpop.f32.mrf.mxu0
      %v1983 = vadd.f32 0.0, %v1982
      %v1984 = vpop.f32.mrf.mxu0
      %v1985 = vadd.f32 0.0, %v1984
      %1986 = vmatmul.bf16.gmra.mxu0 %v1915
      %v1987 = vpop.f32.mrf.mxu0
      %v1988 = vadd.f32 0.0, %v1987
      %v1989 = vpop.f32.mrf.mxu0
      %v1990 = vadd.f32 0.0, %v1989
      %1991 = vmatmul.bf16.gmra.mxu0 %v1918
      %v1992 = vpop.f32.mrf.mxu0
      %v1993 = vadd.f32 0.0, %v1992
      %v1994 = vpop.f32.mrf.mxu0
      %v1995 = vadd.f32 0.0, %v1994
      %1996 = vmatmul.bf16.gmra.mxu0 %v1921
      %v1997 = vpop.f32.mrf.mxu0
      %v1998 = vadd.f32 0.0, %v1997
      %v1999 = vpop.f32.mrf.mxu0
      %v2000 = vadd.f32 0.0, %v1999
      %2001 = vmatmul.bf16.gmra.mxu0 %v1924
      %v2002 = vpop.f32.mrf.mxu0
      %v2003 = vadd.f32 0.0, %v2002
      %v2004 = vpop.f32.mrf.mxu0
      %v2005 = vadd.f32 0.0, %v2004
      %2006 = vmatmul.bf16.gmra.mxu0 %v1927
      %v2007 = vpop.f32.mrf.mxu0
      %v2008 = vadd.f32 0.0, %v2007
      %v2009 = vpop.f32.mrf.mxu0
      %v2010 = vadd.f32 0.0, %v2009
      %2011 = vmatmul.bf16.gmra.mxu0 %v1930
      %v2012 = vpop.f32.mrf.mxu0
      %v2013 = vadd.f32 0.0, %v2012
      %v2014 = vpop.f32.mrf.mxu0
      %v2015 = vadd.f32 0.0, %v2014
      %2016 = vmatmul.bf16.gmra.mxu0 %v1933
      %v2017 = vpop.f32.mrf.mxu0
      %v2018 = vadd.f32 0.0, %v2017
      %v2019 = vpop.f32.mrf.mxu0
      %v2020 = vadd.f32 0.0, %v2019
      %2021 = vmatmul.bf16.gmra.mxu0 %v1936
      %v2022 = vpop.f32.mrf.mxu0
      %v2023 = vadd.f32 0.0, %v2022
      %v2024 = vpop.f32.mrf.mxu0
      %v2025 = vadd.f32 0.0, %v2024
      %2026 = vdwg.mxu0
      %v2029 = vunpack.c.l.b16 %v1876
      %v2030 = vunpack.c.l.b16 %v1877
      %v2031 = vpack.c.b16 %v2030, %v2029
      %v2034 = vsel %vm421, %v1859, 0
      %2036 = vmatpush.bf16.msra.mxu0 0
      %2037 = vmatpush.bf16.msra.mxu0 0
      %2038 = vmatpush.bf16.msra.mxu0 0
      %2039 = vmatpush.bf16.msra.mxu0 0
      %2040 = vmatpush.bf16.msra.mxu0 0
      %2041 = vmatpush.bf16.msra.mxu0 0
      %2042 = vmatpush.bf16.msra.mxu0 0
      %2043 = vmatpush.bf16.msra.mxu0 %v2031
      %2044 = vmatmul.bf16.gmra.mxu0 %v2034
      %v2045 = vpop.f32.mrf.mxu0
      %v2046 = vadd.f32 %v1948, %v2045
      %v2047 = vpop.f32.mrf.mxu0
      %v2048 = vadd.f32 %v1950, %v2047
      %2049 = vmatmul.bf16.gmra.mxu0 %v1891
      %v2050 = vpop.f32.mrf.mxu0
      %v2051 = vadd.f32 %v1953, %v2050
      %v2052 = vpop.f32.mrf.mxu0
      %v2053 = vadd.f32 %v1955, %v2052
      %2054 = vmatmul.bf16.gmra.mxu0 %v1894
      %v2055 = vpop.f32.mrf.mxu0
      %v2056 = vadd.f32 %v1958, %v2055
      %v2057 = vpop.f32.mrf.mxu0
      %v2058 = vadd.f32 %v1960, %v2057
      %2059 = vmatmul.bf16.gmra.mxu0 %v1897
      %v2060 = vpop.f32.mrf.mxu0
      %v2061 = vadd.f32 %v1963, %v2060
      %v2062 = vpop.f32.mrf.mxu0
      %v2063 = vadd.f32 %v1965, %v2062
      %2064 = vmatmul.bf16.gmra.mxu0 %v1900
      %v2065 = vpop.f32.mrf.mxu0
      %v2066 = vadd.f32 %v1968, %v2065
      %v2067 = vpop.f32.mrf.mxu0
      %v2068 = vadd.f32 %v1970, %v2067
      %2069 = vmatmul.bf16.gmra.mxu0 %v1903
      %v2070 = vpop.f32.mrf.mxu0
      %v2071 = vadd.f32 %v1973, %v2070
      %v2072 = vpop.f32.mrf.mxu0
      %v2073 = vadd.f32 %v1975, %v2072
      %2074 = vmatmul.bf16.gmra.mxu0 %v1906
      %v2075 = vpop.f32.mrf.mxu0
      %v2076 = vadd.f32 %v1978, %v2075
      %v2077 = vpop.f32.mrf.mxu0
      %v2078 = vadd.f32 %v1980, %v2077
      %2079 = vmatmul.bf16.gmra.mxu0 %v1909
      %v2080 = vpop.f32.mrf.mxu0
      %v2081 = vadd.f32 %v1983, %v2080
      %v2082 = vpop.f32.mrf.mxu0
      %v2083 = vadd.f32 %v1985, %v2082
      %2084 = vmatmul.bf16.gmra.mxu0 %v1912
      %v2085 = vpop.f32.mrf.mxu0
      %v2086 = vadd.f32 %v1988, %v2085
      %v2087 = vpop.f32.mrf.mxu0
      %v2088 = vadd.f32 %v1990, %v2087
      %2089 = vmatmul.bf16.gmra.mxu0 %v1915
      %v2090 = vpop.f32.mrf.mxu0
      %v2091 = vadd.f32 %v1993, %v2090
      %v2092 = vpop.f32.mrf.mxu0
      %v2093 = vadd.f32 %v1995, %v2092
      %2094 = vmatmul.bf16.gmra.mxu0 %v1918
      %v2095 = vpop.f32.mrf.mxu0
      %v2096 = vadd.f32 %v1998, %v2095
      %v2097 = vpop.f32.mrf.mxu0
      %v2098 = vadd.f32 %v2000, %v2097
      %2099 = vmatmul.bf16.gmra.mxu0 %v1921
      %v2100 = vpop.f32.mrf.mxu0
      %v2101 = vadd.f32 %v2003, %v2100
      %v2102 = vpop.f32.mrf.mxu0
      %v2103 = vadd.f32 %v2005, %v2102
      %2104 = vmatmul.bf16.gmra.mxu0 %v1924
      %v2105 = vpop.f32.mrf.mxu0
      %v2106 = vadd.f32 %v2008, %v2105
      %v2107 = vpop.f32.mrf.mxu0
      %v2108 = vadd.f32 %v2010, %v2107
      %2109 = vmatmul.bf16.gmra.mxu0 %v1927
      %v2110 = vpop.f32.mrf.mxu0
      %v2111 = vadd.f32 %v2013, %v2110
      %v2112 = vpop.f32.mrf.mxu0
      %v2113 = vadd.f32 %v2015, %v2112
      %2114 = vmatmul.bf16.gmra.mxu0 %v1930
      %v2115 = vpop.f32.mrf.mxu0
      %v2116 = vadd.f32 %v2018, %v2115
      %v2117 = vpop.f32.mrf.mxu0
      %v2118 = vadd.f32 %v2020, %v2117
      %2119 = vmatmul.bf16.gmra.mxu0 %v1933
      %v2120 = vpop.f32.mrf.mxu0
      %v2121 = vadd.f32 %v2023, %v2120
      %v2122 = vpop.f32.mrf.mxu0
      %v2123 = vadd.f32 %v2025, %v2122
      %2124 = vdwg.mxu0
      %v2125 = vld [vmem:[#allocation2 + $0x29] sm:$0xff]
      %v2126 = vld [vmem:[#allocation2 + $0x31] sm:$0xff]
      %v2127 = vld [vmem:[#allocation2 + $0x39] sm:$0xff]
      %v2128 = vld [vmem:[#allocation2 + $0x41] sm:$0xff]
      %v2129 = vld [vmem:[#allocation2 + $0x49] sm:$0xff]
      %v2130 = vld [vmem:[#allocation2 + $0x51] sm:$0xff]
      %v2131 = vld [vmem:[#allocation2 + $0x59] sm:$0xff]
      %v2132 = vld [vmem:[#allocation2 + $0x61] sm:$0xff]
      %v2133 = vld [vmem:[#allocation2 + $0x69] sm:$0xff]
      %v2134 = vld [vmem:[#allocation2 + $0x71] sm:$0xff]
      %v2135 = vld [vmem:[#allocation2 + $0x79] sm:$0xff]
      %v2136 = vld [vmem:[#allocation2 + $0x81] sm:$0xff]
      %v2137 = vld [vmem:[#allocation2 + $0x89] sm:$0xff]
      %v2138 = vld [vmem:[#allocation2 + $0x91] sm:$0xff]
      %v2139 = vld [vmem:[#allocation2 + $0x99] sm:$0xff]
      %v2140 = vld [vmem:[#allocation2 + $0xa1] sm:$0xff]
      %v2141 = vld [vmem:[#allocation2 + $0xa9] sm:$0xff]
      %v2142 = vld [vmem:[#allocation2 + $0xb1] sm:$0xff]
      %v2143 = vld [vmem:[#allocation2 + $0xb9] sm:$0xff]
      %v2144 = vld [vmem:[#allocation2 + $0xc1] sm:$0xff]
      %v2145 = vld [vmem:[#allocation2 + $0xc9] sm:$0xff]
      %v2146 = vld [vmem:[#allocation2 + $0xd1] sm:$0xff]
      %v2147 = vld [vmem:[#allocation2 + $0xd9] sm:$0xff]
      %v2148 = vld [vmem:[#allocation2 + $0xe1] sm:$0xff]
      %v2149 = vld [vmem:[#allocation2 + $0xe9] sm:$0xff]
      %v2150 = vld [vmem:[#allocation2 + $0xf1] sm:$0xff]
      %v2151 = vld [vmem:[#allocation2 + $0xf9] sm:$0xff]
      %v2152 = vld [vmem:[#allocation2 + $0x101] sm:$0xff]
      %v2153 = vld [vmem:[#allocation2 + $0x109] sm:$0xff]
      %v2154 = vld [vmem:[#allocation2 + $0x111] sm:$0xff]
      %v2155 = vld [vmem:[#allocation2 + $0x119] sm:$0xff]
      %v2156 = vld [vmem:[#allocation2 + $0x121] sm:$0xff]
      %v2157 = vpack.c.bf16 %v2126, %v2125
      %v2158 = vpack.c.bf16 %v2128, %v2127
      %v2159 = vpack.c.bf16 %v2130, %v2129
      %v2160 = vpack.c.bf16 %v2132, %v2131
      %v2161 = vpack.c.bf16 %v2134, %v2133
      %v2162 = vpack.c.bf16 %v2136, %v2135
      %v2163 = vpack.c.bf16 %v2138, %v2137
      %v2164 = vpack.c.bf16 %v2140, %v2139
      %v2165 = vpack.c.bf16 %v2142, %v2141
      %v2166 = vpack.c.bf16 %v2144, %v2143
      %v2167 = vpack.c.bf16 %v2146, %v2145
      %v2168 = vpack.c.bf16 %v2148, %v2147
      %v2169 = vpack.c.bf16 %v2150, %v2149
      %v2170 = vpack.c.bf16 %v2152, %v2151
      %v2171 = vpack.c.bf16 %v2154, %v2153
      %v2172 = vpack.c.bf16 %v2156, %v2155
      %s2173 = scalar_lea.vmem %s3, 64
      %v2174 = vld [vmem:[%s2173] sm:$0xf]
      %v2175 = vld [vmem:[%s2173 + $0x4] sm:$0xf]
      %v2178 = vunpack.c.l.b16 %v2174
      %v2179 = vunpack.c.l.b16 %v2175
      %v2180 = vpack.c.b16 %v2179, %v2178
      %v2183 = vsel %vm421, %v2157, 0
      %v2186 = vsel %vm421, %v2158, 0
      %v2189 = vsel %vm421, %v2159, 0
      %v2192 = vsel %vm421, %v2160, 0
      %v2195 = vsel %vm421, %v2161, 0
      %v2198 = vsel %vm421, %v2162, 0
      %v2201 = vsel %vm421, %v2163, 0
      %v2204 = vsel %vm421, %v2164, 0
      %v2207 = vsel %vm421, %v2165, 0
      %v2210 = vsel %vm421, %v2166, 0
      %v2213 = vsel %vm421, %v2167, 0
      %v2216 = vsel %vm421, %v2168, 0
      %v2219 = vsel %vm421, %v2169, 0
      %v2222 = vsel %vm421, %v2170, 0
      %v2225 = vsel %vm421, %v2171, 0
      %v2228 = vsel %vm421, %v2172, 0
      %2230 = vmatpush.bf16.msra.mxu0 0
      %2231 = vmatpush.bf16.msra.mxu0 0
      %2232 = vmatpush.bf16.msra.mxu0 0
      %2233 = vmatpush.bf16.msra.mxu0 0
      %2234 = vmatpush.bf16.msra.mxu0 0
      %2235 = vmatpush.bf16.msra.mxu0 0
      %2236 = vmatpush.bf16.msra.mxu0 0
      %2237 = vmatpush.bf16.msra.mxu0 %v2180
      %2238 = vmatmul.bf16.gmra.mxu0 %v2183
      %v2239 = vpop.f32.mrf.mxu0
      %v2240 = vadd.f32 0.0, %v2239
      %v2241 = vpop.f32.mrf.mxu0
      %v2242 = vadd.f32 0.0, %v2241
      %2243 = vmatmul.bf16.gmra.mxu0 %v2186
      %v2244 = vpop.f32.mrf.mxu0
      %v2245 = vadd.f32 0.0, %v2244
      %v2246 = vpop.f32.mrf.mxu0
      %v2247 = vadd.f32 0.0, %v2246
      %2248 = vmatmul.bf16.gmra.mxu0 %v2189
      %v2249 = vpop.f32.mrf.mxu0
      %v2250 = vadd.f32 0.0, %v2249
      %v2251 = vpop.f32.mrf.mxu0
      %v2252 = vadd.f32 0.0, %v2251
      %2253 = vmatmul.bf16.gmra.mxu0 %v2192
      %v2254 = vpop.f32.mrf.mxu0
      %v2255 = vadd.f32 0.0, %v2254
      %v2256 = vpop.f32.mrf.mxu0
      %v2257 = vadd.f32 0.0, %v2256
      %2258 = vmatmul.bf16.gmra.mxu0 %v2195
      %v2259 = vpop.f32.mrf.mxu0
      %v2260 = vadd.f32 0.0, %v2259
      %v2261 = vpop.f32.mrf.mxu0
      %v2262 = vadd.f32 0.0, %v2261
      %2263 = vmatmul.bf16.gmra.mxu0 %v2198
      %v2264 = vpop.f32.mrf.mxu0
      %v2265 = vadd.f32 0.0, %v2264
      %v2266 = vpop.f32.mrf.mxu0
      %v2267 = vadd.f32 0.0, %v2266
      %2268 = vmatmul.bf16.gmra.mxu0 %v2201
      %v2269 = vpop.f32.mrf.mxu0
      %v2270 = vadd.f32 0.0, %v2269
      %v2271 = vpop.f32.mrf.mxu0
      %v2272 = vadd.f32 0.0, %v2271
      %2273 = vmatmul.bf16.gmra.mxu0 %v2204
      %v2274 = vpop.f32.mrf.mxu0
      %v2275 = vadd.f32 0.0, %v2274
      %v2276 = vpop.f32.mrf.mxu0
      %v2277 = vadd.f32 0.0, %v2276
      %2278 = vmatmul.bf16.gmra.mxu0 %v2207
      %v2279 = vpop.f32.mrf.mxu0
      %v2280 = vadd.f32 0.0, %v2279
      %v2281 = vpop.f32.mrf.mxu0
      %v2282 = vadd.f32 0.0, %v2281
      %2283 = vmatmul.bf16.gmra.mxu0 %v2210
      %v2284 = vpop.f32.mrf.mxu0
      %v2285 = vadd.f32 0.0, %v2284
      %v2286 = vpop.f32.mrf.mxu0
      %v2287 = vadd.f32 0.0, %v2286
      %2288 = vmatmul.bf16.gmra.mxu0 %v2213
      %v2289 = vpop.f32.mrf.mxu0
      %v2290 = vadd.f32 0.0, %v2289
      %v2291 = vpop.f32.mrf.mxu0
      %v2292 = vadd.f32 0.0, %v2291
      %2293 = vmatmul.bf16.gmra.mxu0 %v2216
      %v2294 = vpop.f32.mrf.mxu0
      %v2295 = vadd.f32 0.0, %v2294
      %v2296 = vpop.f32.mrf.mxu0
      %v2297 = vadd.f32 0.0, %v2296
      %2298 = vmatmul.bf16.gmra.mxu0 %v2219
      %v2299 = vpop.f32.mrf.mxu0
      %v2300 = vadd.f32 0.0, %v2299
      %v2301 = vpop.f32.mrf.mxu0
      %v2302 = vadd.f32 0.0, %v2301
      %2303 = vmatmul.bf16.gmra.mxu0 %v2222
      %v2304 = vpop.f32.mrf.mxu0
      %v2305 = vadd.f32 0.0, %v2304
      %v2306 = vpop.f32.mrf.mxu0
      %v2307 = vadd.f32 0.0, %v2306
      %2308 = vmatmul.bf16.gmra.mxu0 %v2225
      %v2309 = vpop.f32.mrf.mxu0
      %v2310 = vadd.f32 0.0, %v2309
      %v2311 = vpop.f32.mrf.mxu0
      %v2312 = vadd.f32 0.0, %v2311
      %2313 = vmatmul.bf16.gmra.mxu0 %v2228
      %v2314 = vpop.f32.mrf.mxu0
      %v2315 = vadd.f32 0.0, %v2314
      %v2316 = vpop.f32.mrf.mxu0
      %v2317 = vadd.f32 0.0, %v2316
      %2318 = vdwg.mxu0
      %v2319 = vadd.f32 %v2046, %v2240
      %v2320 = vadd.f32 %v2048, %v2242
      %v2321 = vadd.f32 %v2051, %v2245
      %v2322 = vadd.f32 %v2053, %v2247
      %v2323 = vadd.f32 %v2056, %v2250
      %v2324 = vadd.f32 %v2058, %v2252
      %v2325 = vadd.f32 %v2061, %v2255
      %v2326 = vadd.f32 %v2063, %v2257
      %v2327 = vadd.f32 %v2066, %v2260
      %v2328 = vadd.f32 %v2068, %v2262
      %v2329 = vadd.f32 %v2071, %v2265
      %v2330 = vadd.f32 %v2073, %v2267
      %v2331 = vadd.f32 %v2076, %v2270
      %v2332 = vadd.f32 %v2078, %v2272
      %v2333 = vadd.f32 %v2081, %v2275
      %v2334 = vadd.f32 %v2083, %v2277
      %v2335 = vadd.f32 %v2086, %v2280
      %v2336 = vadd.f32 %v2088, %v2282
      %v2337 = vadd.f32 %v2091, %v2285
      %v2338 = vadd.f32 %v2093, %v2287
      %v2339 = vadd.f32 %v2096, %v2290
      %v2340 = vadd.f32 %v2098, %v2292
      %v2341 = vadd.f32 %v2101, %v2295
      %v2342 = vadd.f32 %v2103, %v2297
      %v2343 = vadd.f32 %v2106, %v2300
      %v2344 = vadd.f32 %v2108, %v2302
      %v2345 = vadd.f32 %v2111, %v2305
      %v2346 = vadd.f32 %v2113, %v2307
      %v2347 = vadd.f32 %v2116, %v2310
      %v2348 = vadd.f32 %v2118, %v2312
      %v2349 = vadd.f32 %v2121, %v2315
      %v2350 = vadd.f32 %v2123, %v2317
      %2352 = vset.pattern.permute.xlu0 0
      %2353 = vperm.xlu0 %2352, %v492
      %v2354 = vpop.permute.xlu0 %2353
      %2357 = vset.pattern.permute.xlu0 0
      %2358 = vperm.xlu0 %2357, %v493
      %v2359 = vpop.permute.xlu0 %2358
      %2362 = vset.pattern.permute.xlu0 0
      %2363 = vperm.xlu0 %2362, %v494
      %v2364 = vpop.permute.xlu0 %2363
      %2367 = vset.pattern.permute.xlu0 0
      %2368 = vperm.xlu0 %2367, %v495
      %v2369 = vpop.permute.xlu0 %2368
      %2372 = vset.pattern.permute.xlu0 0
      %2373 = vperm.xlu0 %2372, %v496
      %v2374 = vpop.permute.xlu0 %2373
      %2377 = vset.pattern.permute.xlu0 0
      %2378 = vperm.xlu0 %2377, %v497
      %v2379 = vpop.permute.xlu0 %2378
      %2382 = vset.pattern.permute.xlu0 0
      %2383 = vperm.xlu0 %2382, %v498
      %v2384 = vpop.permute.xlu0 %2383
      %2387 = vset.pattern.permute.xlu0 0
      %2388 = vperm.xlu0 %2387, %v499
      %v2389 = vpop.permute.xlu0 %2388
      %2392 = vset.pattern.permute.xlu0 0
      %2393 = vperm.xlu0 %2392, %v500
      %v2394 = vpop.permute.xlu0 %2393
      %2397 = vset.pattern.permute.xlu0 0
      %2398 = vperm.xlu0 %2397, %v501
      %v2399 = vpop.permute.xlu0 %2398
      %2402 = vset.pattern.permute.xlu0 0
      %2403 = vperm.xlu0 %2402, %v502
      %v2404 = vpop.permute.xlu0 %2403
      %2407 = vset.pattern.permute.xlu0 0
      %2408 = vperm.xlu0 %2407, %v503
      %v2409 = vpop.permute.xlu0 %2408
      %2412 = vset.pattern.permute.xlu0 0
      %2413 = vperm.xlu0 %2412, %v504
      %v2414 = vpop.permute.xlu0 %2413
      %2417 = vset.pattern.permute.xlu0 0
      %2418 = vperm.xlu0 %2417, %v505
      %v2419 = vpop.permute.xlu0 %2418
      %2422 = vset.pattern.permute.xlu0 0
      %2423 = vperm.xlu0 %2422, %v506
      %v2424 = vpop.permute.xlu0 %2423
      %2427 = vset.pattern.permute.xlu0 0
      %2428 = vperm.xlu0 %2427, %v507
      %v2429 = vpop.permute.xlu0 %2428
      %2432 = vset.pattern.permute.xlu0 0
      %2433 = vperm.xlu0 %2432, %v508
      %v2434 = vpop.permute.xlu0 %2433
      %2437 = vset.pattern.permute.xlu0 0
      %2438 = vperm.xlu0 %2437, %v509
      %v2439 = vpop.permute.xlu0 %2438
      %2442 = vset.pattern.permute.xlu0 0
      %2443 = vperm.xlu0 %2442, %v510
      %v2444 = vpop.permute.xlu0 %2443
      %2447 = vset.pattern.permute.xlu0 0
      %2448 = vperm.xlu0 %2447, %v511
      %v2449 = vpop.permute.xlu0 %2448
      %2452 = vset.pattern.permute.xlu0 0
      %2453 = vperm.xlu0 %2452, %v512
      %v2454 = vpop.permute.xlu0 %2453
      %2457 = vset.pattern.permute.xlu0 0
      %2458 = vperm.xlu0 %2457, %v513
      %v2459 = vpop.permute.xlu0 %2458
      %2462 = vset.pattern.permute.xlu0 0
      %2463 = vperm.xlu0 %2462, %v514
      %v2464 = vpop.permute.xlu0 %2463
      %2467 = vset.pattern.permute.xlu0 0
      %2468 = vperm.xlu0 %2467, %v515
      %v2469 = vpop.permute.xlu0 %2468
      %2472 = vset.pattern.permute.xlu0 0
      %2473 = vperm.xlu0 %2472, %v516
      %v2474 = vpop.permute.xlu0 %2473
      %2477 = vset.pattern.permute.xlu0 0
      %2478 = vperm.xlu0 %2477, %v517
      %v2479 = vpop.permute.xlu0 %2478
      %2482 = vset.pattern.permute.xlu0 0
      %2483 = vperm.xlu0 %2482, %v518
      %v2484 = vpop.permute.xlu0 %2483
      %2487 = vset.pattern.permute.xlu0 0
      %2488 = vperm.xlu0 %2487, %v519
      %v2489 = vpop.permute.xlu0 %2488
      %2492 = vset.pattern.permute.xlu0 0
      %2493 = vperm.xlu0 %2492, %v520
      %v2494 = vpop.permute.xlu0 %2493
      %2497 = vset.pattern.permute.xlu0 0
      %2498 = vperm.xlu0 %2497, %v521
      %v2499 = vpop.permute.xlu0 %2498
      %2502 = vset.pattern.permute.xlu0 0
      %2503 = vperm.xlu0 %2502, %v522
      %v2504 = vpop.permute.xlu0 %2503
      %2507 = vset.pattern.permute.xlu0 0
      %2508 = vperm.xlu0 %2507, %v523
      %v2509 = vpop.permute.xlu0 %2508
      %v2511 = vmul.f32 %v2319, %v2354
      %v2512 = vmul.f32 %v2320, %v2359
      %v2513 = vmul.f32 %v2321, %v2364
      %v2514 = vmul.f32 %v2322, %v2369
      %v2515 = vmul.f32 %v2323, %v2374
      %v2516 = vmul.f32 %v2324, %v2379
      %v2517 = vmul.f32 %v2325, %v2384
      %v2518 = vmul.f32 %v2326, %v2389
      %v2519 = vmul.f32 %v2327, %v2394
      %v2520 = vmul.f32 %v2328, %v2399
      %v2521 = vmul.f32 %v2329, %v2404
      %v2522 = vmul.f32 %v2330, %v2409
      %v2523 = vmul.f32 %v2331, %v2414
      %v2524 = vmul.f32 %v2332, %v2419
      %v2525 = vmul.f32 %v2333, %v2424
      %v2526 = vmul.f32 %v2334, %v2429
      %v2527 = vmul.f32 %v2335, %v2434
      %v2528 = vmul.f32 %v2336, %v2439
      %v2529 = vmul.f32 %v2337, %v2444
      %v2530 = vmul.f32 %v2338, %v2449
      %v2531 = vmul.f32 %v2339, %v2454
      %v2532 = vmul.f32 %v2340, %v2459
      %v2533 = vmul.f32 %v2341, %v2464
      %v2534 = vmul.f32 %v2342, %v2469
      %v2535 = vmul.f32 %v2343, %v2474
      %v2536 = vmul.f32 %v2344, %v2479
      %v2537 = vmul.f32 %v2345, %v2484
      %v2538 = vmul.f32 %v2346, %v2489
      %v2539 = vmul.f32 %v2347, %v2494
      %v2540 = vmul.f32 %v2348, %v2499
      %v2541 = vmul.f32 %v2349, %v2504
      %v2542 = vmul.f32 %v2350, %v2509
      %v2543 = vadd.f32 %v1795, %v2511
      %v2544 = vadd.f32 %v1796, %v2512
      %v2545 = vadd.f32 %v1797, %v2513
      %v2546 = vadd.f32 %v1798, %v2514
      %v2547 = vadd.f32 %v1799, %v2515
      %v2548 = vadd.f32 %v1800, %v2516
      %v2549 = vadd.f32 %v1801, %v2517
      %v2550 = vadd.f32 %v1802, %v2518
      %v2551 = vadd.f32 %v1803, %v2519
      %v2552 = vadd.f32 %v1804, %v2520
      %v2553 = vadd.f32 %v1805, %v2521
      %v2554 = vadd.f32 %v1806, %v2522
      %v2555 = vadd.f32 %v1807, %v2523
      %v2556 = vadd.f32 %v1808, %v2524
      %v2557 = vadd.f32 %v1809, %v2525
      %v2558 = vadd.f32 %v1810, %v2526
      %v2559 = vadd.f32 %v1811, %v2527
      %v2560 = vadd.f32 %v1812, %v2528
      %v2561 = vadd.f32 %v1813, %v2529
      %v2562 = vadd.f32 %v1814, %v2530
      %v2563 = vadd.f32 %v1815, %v2531
      %v2564 = vadd.f32 %v1816, %v2532
      %v2565 = vadd.f32 %v1817, %v2533
      %v2566 = vadd.f32 %v1818, %v2534
      %v2567 = vadd.f32 %v1819, %v2535
      %v2568 = vadd.f32 %v1820, %v2536
      %v2569 = vadd.f32 %v1821, %v2537
      %v2570 = vadd.f32 %v1822, %v2538
      %v2571 = vadd.f32 %v1823, %v2539
      %v2572 = vadd.f32 %v1824, %v2540
      %v2573 = vadd.f32 %v1825, %v2541
      %v2574 = vadd.f32 %v1826, %v2542
      %vm2575 = vcmask 64512
      %2576 = vst.msk [vmem:[%s251] sm:$0xff] %vm2575, %v2543
      %2577 = vst.msk [vmem:[%s251 + $0x8] sm:$0xff] %vm2575, %v2544
      %2578 = vst.msk [vmem:[%s251 + $0x10] sm:$0xff] %vm2575, %v2545
      %2579 = vst.msk [vmem:[%s251 + $0x18] sm:$0xff] %vm2575, %v2546
      %2580 = vst.msk [vmem:[%s251 + $0x20] sm:$0xff] %vm2575, %v2547
      %2581 = vst.msk [vmem:[%s251 + $0x28] sm:$0xff] %vm2575, %v2548
      %2582 = vst.msk [vmem:[%s251 + $0x30] sm:$0xff] %vm2575, %v2549
      %2583 = vst.msk [vmem:[%s251 + $0x38] sm:$0xff] %vm2575, %v2550
      %2584 = vst.msk [vmem:[%s251 + $0x40] sm:$0xff] %vm2575, %v2551
      %2585 = vst.msk [vmem:[%s251 + $0x48] sm:$0xff] %vm2575, %v2552
      %2586 = vst.msk [vmem:[%s251 + $0x50] sm:$0xff] %vm2575, %v2553
      %2587 = vst.msk [vmem:[%s251 + $0x58] sm:$0xff] %vm2575, %v2554
      %2588 = vst.msk [vmem:[%s251 + $0x60] sm:$0xff] %vm2575, %v2555
      %2589 = vst.msk [vmem:[%s251 + $0x68] sm:$0xff] %vm2575, %v2556
      %2590 = vst.msk [vmem:[%s251 + $0x70] sm:$0xff] %vm2575, %v2557
      %2591 = vst.msk [vmem:[%s251 + $0x78] sm:$0xff] %vm2575, %v2558
      %2592 = vst.msk [vmem:[%s251 + $0x80] sm:$0xff] %vm2575, %v2559
      %2593 = vst.msk [vmem:[%s251 + $0x88] sm:$0xff] %vm2575, %v2560
      %2594 = vst.msk [vmem:[%s251 + $0x90] sm:$0xff] %vm2575, %v2561
      %2595 = vst.msk [vmem:[%s251 + $0x98] sm:$0xff] %vm2575, %v2562
      %2596 = vst.msk [vmem:[%s251 + $0xa0] sm:$0xff] %vm2575, %v2563
      %2597 = vst.msk [vmem:[%s251 + $0xa8] sm:$0xff] %vm2575, %v2564
      %2598 = vst.msk [vmem:[%s251 + $0xb0] sm:$0xff] %vm2575, %v2565
      %2599 = vst.msk [vmem:[%s251 + $0xb8] sm:$0xff] %vm2575, %v2566
      %2600 = vst.msk [vmem:[%s251 + $0xc0] sm:$0xff] %vm2575, %v2567
      %2601 = vst.msk [vmem:[%s251 + $0xc8] sm:$0xff] %vm2575, %v2568
      %2602 = vst.msk [vmem:[%s251 + $0xd0] sm:$0xff] %vm2575, %v2569
      %2603 = vst.msk [vmem:[%s251 + $0xd8] sm:$0xff] %vm2575, %v2570
      %2604 = vst.msk [vmem:[%s251 + $0xe0] sm:$0xff] %vm2575, %v2571
      %2605 = vst.msk [vmem:[%s251 + $0xe8] sm:$0xff] %vm2575, %v2572
      %2606 = vst.msk [vmem:[%s251 + $0xf0] sm:$0xff] %vm2575, %v2573
      %2607 = vst.msk [vmem:[%s251 + $0xf8] sm:$0xff] %vm2575, %v2574
      %p2608 = scmp.lt.s32.totalorder %s17, 1
      %s2609 = scalar_select %p2608, %s17, 1
      %s2610 = smul.addr %s2609, 32
      %s2611 = smul.addr %s2610, 8
      %s2612 = scalar_lea.vmem %s6, %s2611
      // Predicated region
      $region45: #{_lambda_.5} parent=43 // pred_check
        %p2613 = pneg %p166
      $region46: #{_lambda_.5} parent=43 // pred_check_branch
        %2615 = sbr.rel (%p2613) target = $region48
      $region47: #{_lambda_.5} parent=43 // pred_region
        _
      $region48: #{_lambda_.5} parent=43 // pred_fallthru
        _
    $region44: #{_lambda_.5} parent=5 // pred_fallthru
      _
    %p2616 = scmp.le.s32.totalorder 2, %s12
    // Predicated region
    $region49: #{_lambda_.5} parent=5 // pred_check
      %p2617 = pneg %p2616
    $region50: #{_lambda_.5} parent=5 // pred_check_branch
      %2619 = sbr.rel (%p2617) target = $region52
    $region51: #{_lambda_.5} parent=5 // pred_region
      %s2620 = ssub.s32 %s12, 2
      // Predicated region
      $region53: #{_lambda_.5} parent=51 // pred_check
        %p2621 = pneg %p172
      $region54: #{_lambda_.5} parent=51 // pred_check_branch
        %2623 = sbr.rel (%p2621) target = $region56
      $region55: #{_lambda_.5} parent=51 // pred_region
        %p2624 = scmp.lt.s32.totalorder %s18, 1
        %s2625 = scalar_select %p2624, %s18, 1
        %s2626 = smul.addr %s2625, 32
        %s2627 = smul.addr %s2626, 8
        %s2628 = scalar_lea.vmem %s6, %s2627
      $region56: #{_lambda_.5} parent=51 // pred_fallthru
        _
    $region52: #{_lambda_.5} parent=5 // pred_fallthru
      _
  $region6: #{_lambda_.5} parent=0 // loop_footer
    %s16 = sadd.s32 1, %s12
  $region7: #{_lambda_.5} parent=0 // loop_footer_branch
    %11 = sbr.rel target = $region3
  $region8: #{_lambda_.5} parent=0 // loop_exit
    _

</llo_original>
